<compile_context>
chip_gen: v6e
topology: v6e:2x2x1
jax: 0.10.0
libtpu: 0.0.40
codegen_flags: <defaults>
</compile_context>

<pallas_src>
import functools
import numpy as np
import jax
import jax.numpy as jnp
from jax.experimental import pallas as pl
from jax.experimental.pallas import tpu as pltpu


def _encoder_kernel(x_ref, pe_ref,
                    wqkv_ref, bqkv_ref, ow_ref, dvec_ref,
                    w1_ref, b1_ref, w2_ref,
                    out_ref,
                    x_vmem,
                    *, num_head, approx_recip, eps=1e-5):
    layer = pl.program_id(1)
    bb, S, D = x_ref.shape                    # (batch_block, seq, d_model)
    M = bb * S
    H = num_head
    hd = D // H
    cdt = wqkv_ref.dtype                      # matmul operand dtype (bf16 / f32)

    # Layer 0: load this batch block once and fold in the positional encoding.
    @pl.when(layer == 0)
    def _init():
        x_vmem[...] = (x_ref[...].astype(jnp.float32)
                       + pe_ref[...].astype(jnp.float32)).reshape(M, D)

    x = x_vmem[...]                           # (M, D) f32, resident across layers
    xc = x.astype(cdt)

    # ---------------- fused QKV projection (lane-dense, N = 3*D) ----------------
    # 1/sqrt(hd) is already folded into the Q columns of wqkv/bqkv.
    qkv = jnp.dot(xc, wqkv_ref[0], preferred_element_type=jnp.float32) + bqkv_ref[0]
    qc = qkv[:, :D].astype(cdt)               # (M, D) already scaled
    kc = qkv[:, D:2 * D].astype(cdt)
    vc = qkv[:, 2 * D:].astype(cdt)

    # ---------------- multi-head self-attention ----------------
    heads = []
    for h in range(H):                        # TODO(synk): fori_loop for H >= 8
        q3 = qc[:, h * hd:(h + 1) * hd].reshape(bb, S, hd)
        k3 = kc[:, h * hd:(h + 1) * hd].reshape(bb, S, hd)
        v3 = vc[:, h * hd:(h + 1) * hd].reshape(bb, S, hd)
        # scores: contract the head dim directly (no explicit transpose)
        s = jax.lax.dot_general(q3, k3, (((2,), (2,)), ((0,), (0,))),
                                preferred_element_type=jnp.float32)   # (bb,S,S)
        s = s - jnp.max(s, axis=-1, keepdims=True)
        p = jnp.exp(s)                                                # f32 softmax
        denom = jnp.sum(p, axis=-1, keepdims=True)
        if approx_recip:
            p = p * pl.reciprocal(denom, approx=True)                 # EUP slot
        else:
            p = p / denom
        ho = jax.lax.dot_general(p.astype(cdt), v3, (((2,), (1,)), ((0,), (0,))),
                                 preferred_element_type=jnp.float32)  # (bb,S,hd)
        heads.append(ho)
    attn = jnp.concatenate(heads, axis=-1).reshape(M, D)              # concat heads

    dvec = dvec_ref[0]                        # (6, D) f32: ob, ln1g, ln1b, b2, ln2g, ln2b
    # single full-K output projection
    x = x + jnp.dot(attn.astype(cdt), ow_ref[0],
                    preferred_element_type=jnp.float32) + dvec[0:1]

    # ---------------- LayerNorm 1 (f32) ----------------
    mu = jnp.mean(x, axis=-1, keepdims=True)
    var = jnp.mean(jnp.square(x - mu), axis=-1, keepdims=True)
    x = (x - mu) * jax.lax.rsqrt(var + eps) * dvec[1:2] + dvec[2:3]

    # ---------------- position-wise FFN ----------------
    h1 = jnp.dot(x.astype(cdt), w1_ref[0], preferred_element_type=jnp.float32) + b1_ref[0]
    h1 = jnp.maximum(h1, 0.0)
    y = jnp.dot(h1.astype(cdt), w2_ref[0], preferred_element_type=jnp.float32) + dvec[3:4]
    x = x + y

    # ---------------- LayerNorm 2 (f32) ----------------
    mu = jnp.mean(x, axis=-1, keepdims=True)
    var = jnp.mean(jnp.square(x - mu), axis=-1, keepdims=True)
    x = (x - mu) * jax.lax.rsqrt(var + eps) * dvec[4:5] + dvec[5:6]

    x_vmem[...] = x                           # carry activations to next layer

    @pl.when(layer == pl.num_programs(1) - 1)
    def _finalize():
        out_ref[...] = x.reshape(bb, S, D).astype(out_ref.dtype)


def _padded_bytes(shape, itemsize=4):
    """VMEM footprint of a tile, padded to (8, 128) on the last two dims."""
    s = list(shape)
    if len(s) >= 2:
        s[-2] = -(-s[-2] // 8) * 8
    s[-1] = -(-s[-1] // 128) * 128
    return int(np.prod(s)) * itemsize


def transformer_encoder(x, pos_encoding, layer_params, num_head, *,
                        batch_block=None, compute_dtype=jnp.bfloat16):
    B, S, D = x.shape
    L = len(layer_params)
    assert D % num_head == 0
    H = num_head
    hd = D // H
    F = layer_params[0]['w1'].shape[-1]
    f32 = jnp.float32
    cbytes = jnp.dtype(compute_dtype).itemsize

    if batch_block is None:
        # Target ~1024 resident rows per grid step (amortizes weight streaming
        # and per-step overhead, improves MXU M efficiency).
        target_rows = 1024
        batch_block = max(1, min(B, max(1, target_rows // S)))
        # v7x megacore: prefer >= 2 blocks on the parallel axis when the slab
        # stays large enough (each TC re-streams weights, so don't over-split).
        if B // batch_block < 2 and B >= 2 and (B // 2) * S >= 512:
            batch_block = max(1, B // 2)
        while B % batch_block:
            batch_block -= 1
    assert B % batch_block == 0
    n_bblocks = B // batch_block
    M = batch_block * S

    stack = lambda name: jnp.stack([p[name] for p in layer_params])

    # ---- packed weight slabs (leading L axis, streamed per layer) ----
    scale = 1.0 / np.sqrt(hd)                 # folded into the Q projection
    wqkv = jnp.concatenate([stack('qw') * scale, stack('kw'), stack('vw')],
                           axis=-1).astype(compute_dtype)          # (L, D, 3D)
    bqkv = jnp.concatenate([stack('qb') * scale, stack('kb'), stack('vb')],
                           axis=-1).astype(f32)                    # (L, 1, 3D)
    ow = stack('ow').astype(compute_dtype)                         # (L, D, D)
    w1 = stack('w1').astype(compute_dtype)                         # (L, D, F)
    b1 = stack('b1').reshape(L, 1, F).astype(f32)                  # (L, 1, F)
    w2 = stack('w2').astype(compute_dtype)                         # (L, F, D)
    # the six D-wide per-layer vectors packed into one slab
    dvec = jnp.stack([stack('ob').reshape(L, D),
                      stack('ln1g').reshape(L, D), stack('ln1b').reshape(L, D),
                      stack('b2').reshape(L, D),
                      stack('ln2g').reshape(L, D), stack('ln2b').reshape(L, D)],
                     axis=1).astype(f32)                           # (L, 6, D)

    pe = pos_encoding[:S].reshape(1, S, D).astype(f32)

    act_spec = pl.BlockSpec((batch_block, S, D), lambda b, l: (b, 0, 0))
    pe_spec = pl.BlockSpec((1, S, D), lambda b, l: (0, 0, 0))

    def layer_spec(arr):
        nz = arr.ndim - 1
        return pl.BlockSpec((1,) + arr.shape[1:],
                            lambda b, l, _nz=nz: (l,) + (0,) * _nz)

    weights = [wqkv, bqkv, ow, dvec, w1, b1, w2]
    args = [x, pe] + weights
    in_specs = [act_spec, pe_spec] + [layer_spec(a) for a in weights]

    # ---- computed VMEM budget (double-buffered inputs + scratch + temps) ----
    blk_in = (_padded_bytes((M, D)) + _padded_bytes((S, D))
              + _padded_bytes((D, 3 * D), cbytes) + _padded_bytes((1, 3 * D))
              + _padded_bytes((D, D), cbytes) + _padded_bytes((6, D))
              + _padded_bytes((D, F), cbytes) + _padded_bytes((1, F))
              + _padded_bytes((F, D), cbytes))
    blk_out = _padded_bytes((M, D))
    scratch_b = _padded_bytes((M, D))
    temps = (_padded_bytes((M, 3 * D)) + 2 * batch_block * _padded_bytes((S, S))
             + _padded_bytes((M, F)) + 2 * _padded_bytes((M, D)))
    est = 2 * blk_in + 2 * blk_out + scratch_b + temps
    # NOTE: cap below 128 MiB (v5e/v6e); on v7x (64 MiB) large configs also
    # need the F-tiling / flash-attention TODOs above.
    vmem_limit = int(min(96 << 20, max(32 << 20, int(est * 1.25) + (4 << 20))))

    # ---- advisory cost estimate (weights re-streamed per batch block) ----
    flops = L * (8 * B * S * D * D + 4 * B * S * S * D + 4 * B * S * D * F)
    transcendentals = L * B * S * (H * S + H + 4)
    weight_bytes = sum(int(a.size) * a.dtype.itemsize for a in weights)
    bytes_accessed = int(2 * x.size * x.dtype.itemsize
                         + n_bblocks * (weight_bytes + pe.size * 4))

    kernel = functools.partial(
        _encoder_kernel, num_head=H,
        approx_recip=(np.dtype(compute_dtype) != np.dtype(np.float32)))

    return pl.pallas_call(
        kernel,
        out_shape=jax.ShapeDtypeStruct((B, S, D), x.dtype),
        grid=(n_bblocks, L),
        in_specs=in_specs,
        out_specs=act_spec,
        scratch_shapes=[pltpu.VMEM((M, D), jnp.float32)],
        input_output_aliases={0: 0},
        cost_estimate=pl.CostEstimate(flops=int(flops),
                                      transcendentals=int(transcendentals),
                                      bytes_accessed=bytes_accessed),
        compiler_params=pltpu.CompilerParams(
            dimension_semantics=("parallel", "arbitrary"),
            vmem_limit_bytes=vmem_limit),
    )(*args)


# ---------------- parameter / table construction ----------------
def get_position_encoding_table(sql_len, d_model):
    # matches TransformerEncoder.get_position_encoding_table exactly
    pe = np.zeros((sql_len, d_model), dtype=np.float64)
    for pos in range(sql_len):
        for i in range(d_model):
            pe[pos, i] = pos / np.power(10000.0, 2.0 * i / d_model)
    pe[:, 0::2] = np.sin(pe[:, 0::2])
    pe[:, 1::2] = np.cos(pe[:, 1::2])
    return jnp.asarray(pe, dtype=jnp.float32)


def init_layer_params(key, d_model, d_ffn):
    ks = jax.random.split(key, 12)
    u = lambda k, shape, fan_in: jax.random.uniform(
        k, shape, jnp.float32, -1.0 / np.sqrt(fan_in), 1.0 / np.sqrt(fan_in))
    # weights stored pre-transposed: (in, out), so forward does x @ W
    return {
        'qw': u(ks[0], (d_model, d_model), d_model), 'qb': u(ks[1], (1, d_model), d_model),
        'kw': u(ks[2], (d_model, d_model), d_model), 'kb': u(ks[3], (1, d_model), d_model),
        'vw': u(ks[4], (d_model, d_model), d_model), 'vb': u(ks[5], (1, d_model), d_model),
        'ow': u(ks[6], (d_model, d_model), d_model), 'ob': u(ks[7], (1, d_model), d_model),
        'ln1g': jnp.ones((1, d_model), jnp.float32), 'ln1b': jnp.zeros((1, d_model), jnp.float32),
        'w1': u(ks[8], (d_model, d_ffn), d_model),   'b1': u(ks[9], (1, d_ffn), d_model),
        'w2': u(ks[10], (d_ffn, d_model), d_ffn),    'b2': u(ks[11], (1, d_model), d_ffn),
        'ln2g': jnp.ones((1, d_model), jnp.float32), 'ln2b': jnp.zeros((1, d_model), jnp.float32),
    }


# ---------------- pure-JAX reference for validation ----------------
def _ref_layernorm(x, g, b, eps=1e-5):
    mu = jnp.mean(x, axis=-1, keepdims=True)
    var = jnp.mean((x - mu) ** 2, axis=-1, keepdims=True)
    return (x - mu) * jax.lax.rsqrt(var + eps) * g + b


def ref_encoder(x, pos_encoding, layer_params, num_head):
    B, S, D = x.shape
    hd = D // num_head
    x = x + pos_encoding[:S]
    for p in layer_params:
        q = (x @ p['qw'] + p['qb']).reshape(B, S, num_head, hd).transpose(0, 2, 1, 3)
        k = (x @ p['kw'] + p['kb']).reshape(B, S, num_head, hd).transpose(0, 2, 1, 3)
        v = (x @ p['vw'] + p['vb']).reshape(B, S, num_head, hd).transpose(0, 2, 1, 3)
        s = jnp.einsum('bhqd,bhkd->bhqk', q, k) / np.sqrt(hd)
        w = jax.nn.softmax(s, axis=-1)
        a = jnp.einsum('bhqk,bhkd->bhqd', w, v).transpose(0, 2, 1, 3).reshape(B, S, D)
        a = a @ p['ow'] + p['ob']
        x = _ref_layernorm(x + a, p['ln1g'], p['ln1b'])
        y = jax.nn.relu(x @ p['w1'] + p['b1']) @ p['w2'] + p['b2']
        x = _ref_layernorm(x + y, p['ln2g'], p['ln2b'])
    return x


if __name__ == "__main__":
    # Small config consistent with the module; d_model / d_ffn chosen as
    # multiples of 128 so the kernel's last dim is lane-dense.
    B, S, D_MODEL, N_HEAD, D_FFN, N_LAYERS, SQL_LEN = 4, 16, 128, 4, 256, 2, 32

    key = jax.random.PRNGKey(0)
    kx, *klayers = jax.random.split(key, 1 + N_LAYERS)

    x = jax.random.normal(kx, (B, S, D_MODEL), dtype=jnp.float32)
    pos_enc = get_position_encoding_table(SQL_LEN, D_MODEL)
    layer_params = [init_layer_params(k, D_MODEL, D_FFN) for k in klayers]

    ref = jax.block_until_ready(ref_encoder(x, pos_enc, layer_params, N_HEAD))

    # f32 compute path: exact-semantics check against the pure-JAX reference
    # (explicit batch_block=2 also exercises the multi-block parallel axis).
    out_f32 = transformer_encoder(x, pos_enc, layer_params, N_HEAD,
                                  batch_block=2, compute_dtype=jnp.float32)
    out_f32 = jax.block_until_ready(out_f32)
    np.testing.assert_allclose(np.asarray(out_f32), np.asarray(ref),
                               rtol=1e-4, atol=1e-4)

    # bf16 matmul fast path (MXU-friendly on v6e/v7x), default batch_block.
    out_bf16 = transformer_encoder(x, pos_enc, layer_params, N_HEAD,
                                   compute_dtype=jnp.bfloat16)
    out_bf16 = jax.block_until_ready(out_bf16)
    np.testing.assert_allclose(np.asarray(out_bf16), np.asarray(ref),
                               rtol=7.5e-2, atol=7.5e-2)

    print("KERNEL_OK")
</pallas_src>

<mosaic_0001>
module attributes {stable_mosaic.version = 11 : i64} {
  func.func @_encoder_kernel(%arg0: i32, %arg1: i32, %arg2: memref<2x16x128xf32, #tpu.memory_space<vmem>>, %arg3: memref<1x16x128xf32, #tpu.memory_space<vmem>>, %arg4: memref<1x128x384xf32, #tpu.memory_space<vmem>>, %arg5: memref<1x1x384xf32, #tpu.memory_space<vmem>>, %arg6: memref<1x128x128xf32, #tpu.memory_space<vmem>>, %arg7: memref<1x6x128xf32, #tpu.memory_space<vmem>>, %arg8: memref<1x128x256xf32, #tpu.memory_space<vmem>>, %arg9: memref<1x1x256xf32, #tpu.memory_space<vmem>>, %arg10: memref<1x256x128xf32, #tpu.memory_space<vmem>>, %arg11: memref<2x16x128xf32, #tpu.memory_space<vmem>>, %arg12: memref<32x128xf32, #tpu.memory_space<vmem>>) attributes {dimension_semantics = [#tpu.dimension_semantics<parallel>, #tpu.dimension_semantics<arbitrary>], iteration_bounds = array<i64: 2, 2>, scalar_prefetch = 0 : i64, scratch_operands = 1 : i64, tpu.core_type = #tpu.core_type<tc>, window_params = [{transform_indices = @transform_0, window_bounds = array<i64: 2, 16, 128>}, {pipeline_mode = #tpu.pipeline_mode<synchronous>, transform_indices = @transform_1, window_bounds = array<i64: 1, 16, 128>}, {transform_indices = @transform_2, window_bounds = array<i64: 1, 128, 384>}, {transform_indices = @transform_3, window_bounds = array<i64: 1, 1, 384>}, {transform_indices = @transform_4, window_bounds = array<i64: 1, 128, 128>}, {transform_indices = @transform_5, window_bounds = array<i64: 1, 6, 128>}, {transform_indices = @transform_6, window_bounds = array<i64: 1, 128, 256>}, {transform_indices = @transform_7, window_bounds = array<i64: 1, 1, 256>}, {transform_indices = @transform_8, window_bounds = array<i64: 1, 256, 128>}, {transform_indices = @transform_9, window_bounds = array<i64: 2, 16, 128>}]} {
    %c0_i32 = arith.constant 0 : i32
    %0 = arith.cmpi eq, %arg1, %c0_i32 : i32
    %1 = arith.extui %0 : i1 to i32
    %c0_i32_0 = arith.constant 0 : i32
    %2 = arith.cmpi ne, %1, %c0_i32_0 : i32
    scf.if %2 {
      %c0_56 = arith.constant 0 : index
      %c0_57 = arith.constant 0 : index
      %c0_58 = arith.constant 0 : index
      %161 = vector.load %arg2[%c0_56, %c0_57, %c0_58] : memref<2x16x128xf32, #tpu.memory_space<vmem>>, vector<2x16x128xf32>
      %c0_59 = arith.constant 0 : index
      %c0_60 = arith.constant 0 : index
      %c0_61 = arith.constant 0 : index
      %162 = vector.load %arg3[%c0_59, %c0_60, %c0_61] : memref<1x16x128xf32, #tpu.memory_space<vmem>>, vector<1x16x128xf32>
      %163 = vector.broadcast %162 : vector<1x16x128xf32> to vector<2x16x128xf32>
      %164 = arith.addf %161, %163 : vector<2x16x128xf32>
      %165 = vector.shape_cast %164 : vector<2x16x128xf32> to vector<32x128xf32>
      %c0_62 = arith.constant 0 : index
      %c0_63 = arith.constant 0 : index
      %166 = vector.load %arg12[%c0_62, %c0_63] : memref<32x128xf32, #tpu.memory_space<vmem>>, vector<32x128xf32>
      tpu.vector_store %arg12[%c0_62, %c0_63], %165 {strides = array<i32>} : memref<32x128xf32, #tpu.memory_space<vmem>>, vector<32x128xf32>,
    } else {
    }
    %c0 = arith.constant 0 : index
    %c0_1 = arith.constant 0 : index
    %3 = vector.load %arg12[%c0, %c0_1] : memref<32x128xf32, #tpu.memory_space<vmem>>, vector<32x128xf32>
    %c0_2 = arith.constant 0 : index
    %c0_3 = arith.constant 0 : index
    %c0_4 = arith.constant 0 : index
    %4 = vector.load %arg4[%c0_2, %c0_3, %c0_4] : memref<1x128x384xf32, #tpu.memory_space<vmem>>, vector<1x128x384xf32>
    %5 = vector.shape_cast %4 : vector<1x128x384xf32> to vector<128x384xf32>
    %cst = arith.constant dense<0.000000e+00> : vector<32x384xf32>
    %6 = tpu.matmul %3, %5, %cst {dimension_numbers = #tpu.dot_dimension_numbers<[1], [0], [0], [1], [0, 0, 1, 1], [], []>} : vector<32x128xf32>, vector<128x384xf32>, vector<32x384xf32> -> vector<32x384xf32>
    %c0_5 = arith.constant 0 : index
    %c0_6 = arith.constant 0 : index
    %c0_7 = arith.constant 0 : index
    %7 = vector.load %arg5[%c0_5, %c0_6, %c0_7] : memref<1x1x384xf32, #tpu.memory_space<vmem>>, vector<1x1x384xf32>
    %8 = vector.shape_cast %7 : vector<1x1x384xf32> to vector<1x384xf32>
    %9 = vector.broadcast %8 : vector<1x384xf32> to vector<32x384xf32>
    %10 = arith.addf %6, %9 : vector<32x384xf32>
    %11 = vector.extract_strided_slice %10 {offsets = [0, 0], sizes = [32, 128], strides = [1, 1]} : vector<32x384xf32> to vector<32x128xf32>
    %12 = vector.extract_strided_slice %10 {offsets = [0, 128], sizes = [32, 128], strides = [1, 1]} : vector<32x384xf32> to vector<32x128xf32>
    %13 = vector.extract_strided_slice %10 {offsets = [0, 256], sizes = [32, 128], strides = [1, 1]} : vector<32x384xf32> to vector<32x128xf32>
    %14 = vector.extract_strided_slice %11 {offsets = [0, 0], sizes = [32, 32], strides = [1, 1]} : vector<32x128xf32> to vector<32x32xf32>
    %15 = vector.shape_cast %14 : vector<32x32xf32> to vector<2x16x32xf32>
    %16 = vector.extract_strided_slice %12 {offsets = [0, 0], sizes = [32, 32], strides = [1, 1]} : vector<32x128xf32> to vector<32x32xf32>
    %17 = vector.shape_cast %16 : vector<32x32xf32> to vector<2x16x32xf32>
    %18 = vector.extract_strided_slice %13 {offsets = [0, 0], sizes = [32, 32], strides = [1, 1]} : vector<32x128xf32> to vector<32x32xf32>
    %19 = vector.shape_cast %18 : vector<32x32xf32> to vector<2x16x32xf32>
    %cst_8 = arith.constant dense<0.000000e+00> : vector<2x16x16xf32>
    %20 = tpu.matmul %15, %17, %cst_8 {dimension_numbers = #tpu.dot_dimension_numbers<[2], [2], [1], [1], [0, 0, 0, 1, 1, 1], [0], [0]>} : vector<2x16x32xf32>, vector<2x16x32xf32>, vector<2x16x16xf32> -> vector<2x16x16xf32>
    %cst_9 = arith.constant dense<0xFF800000> : vector<2x16xf32>
    %21 = vector.multi_reduction <maximumf>, %20, %cst_9 [2] : vector<2x16x16xf32> to vector<2x16xf32>
    %22 = vector.shape_cast %21 : vector<2x16xf32> to vector<2x16x1xf32>
    %23 = vector.broadcast %22 : vector<2x16x1xf32> to vector<2x16x16xf32>
    %24 = arith.subf %20, %23 : vector<2x16x16xf32>
    %25 = math.exp %24 : vector<2x16x16xf32>
    %cst_10 = arith.constant dense<0.000000e+00> : vector<2x16xf32>
    %26 = vector.multi_reduction <add>, %25, %cst_10 [2] : vector<2x16x16xf32> to vector<2x16xf32>
    %27 = vector.shape_cast %26 : vector<2x16xf32> to vector<2x16x1xf32>
    %28 = vector.broadcast %27 : vector<2x16x1xf32> to vector<2x16x16xf32>
    %29 = arith.divf %25, %28 : vector<2x16x16xf32>
    %cst_11 = arith.constant dense<0.000000e+00> : vector<2x16x32xf32>
    %30 = tpu.matmul %29, %19, %cst_11 {dimension_numbers = #tpu.dot_dimension_numbers<[2], [1], [1], [2], [0, 0, 0, 1, 1, 2], [0], [0]>} : vector<2x16x16xf32>, vector<2x16x32xf32>, vector<2x16x32xf32> -> vector<2x16x32xf32>
    %31 = vector.extract_strided_slice %11 {offsets = [0, 32], sizes = [32, 32], strides = [1, 1]} : vector<32x128xf32> to vector<32x32xf32>
    %32 = vector.shape_cast %31 : vector<32x32xf32> to vector<2x16x32xf32>
    %33 = vector.extract_strided_slice %12 {offsets = [0, 32], sizes = [32, 32], strides = [1, 1]} : vector<32x128xf32> to vector<32x32xf32>
    %34 = vector.shape_cast %33 : vector<32x32xf32> to vector<2x16x32xf32>
    %35 = vector.extract_strided_slice %13 {offsets = [0, 32], sizes = [32, 32], strides = [1, 1]} : vector<32x128xf32> to vector<32x32xf32>
    %36 = vector.shape_cast %35 : vector<32x32xf32> to vector<2x16x32xf32>
    %cst_12 = arith.constant dense<0.000000e+00> : vector<2x16x16xf32>
    %37 = tpu.matmul %32, %34, %cst_12 {dimension_numbers = #tpu.dot_dimension_numbers<[2], [2], [1], [1], [0, 0, 0, 1, 1, 1], [0], [0]>} : vector<2x16x32xf32>, vector<2x16x32xf32>, vector<2x16x16xf32> -> vector<2x16x16xf32>
    %cst_13 = arith.constant dense<0xFF800000> : vector<2x16xf32>
    %38 = vector.multi_reduction <maximumf>, %37, %cst_13 [2] : vector<2x16x16xf32> to vector<2x16xf32>
    %39 = vector.shape_cast %38 : vector<2x16xf32> to vector<2x16x1xf32>
    %40 = vector.broadcast %39 : vector<2x16x1xf32> to vector<2x16x16xf32>
    %41 = arith.subf %37, %40 : vector<2x16x16xf32>
    %42 = math.exp %41 : vector<2x16x16xf32>
    %cst_14 = arith.constant dense<0.000000e+00> : vector<2x16xf32>
    %43 = vector.multi_reduction <add>, %42, %cst_14 [2] : vector<2x16x16xf32> to vector<2x16xf32>
    %44 = vector.shape_cast %43 : vector<2x16xf32> to vector<2x16x1xf32>
    %45 = vector.broadcast %44 : vector<2x16x1xf32> to vector<2x16x16xf32>
    %46 = arith.divf %42, %45 : vector<2x16x16xf32>
    %cst_15 = arith.constant dense<0.000000e+00> : vector<2x16x32xf32>
    %47 = tpu.matmul %46, %36, %cst_15 {dimension_numbers = #tpu.dot_dimension_numbers<[2], [1], [1], [2], [0, 0, 0, 1, 1, 2], [0], [0]>} : vector<2x16x16xf32>, vector<2x16x32xf32>, vector<2x16x32xf32> -> vector<2x16x32xf32>
    %48 = vector.extract_strided_slice %11 {offsets = [0, 64], sizes = [32, 32], strides = [1, 1]} : vector<32x128xf32> to vector<32x32xf32>
    %49 = vector.shape_cast %48 : vector<32x32xf32> to vector<2x16x32xf32>
    %50 = vector.extract_strided_slice %12 {offsets = [0, 64], sizes = [32, 32], strides = [1, 1]} : vector<32x128xf32> to vector<32x32xf32>
    %51 = vector.shape_cast %50 : vector<32x32xf32> to vector<2x16x32xf32>
    %52 = vector.extract_strided_slice %13 {offsets = [0, 64], sizes = [32, 32], strides = [1, 1]} : vector<32x128xf32> to vector<32x32xf32>
    %53 = vector.shape_cast %52 : vector<32x32xf32> to vector<2x16x32xf32>
    %cst_16 = arith.constant dense<0.000000e+00> : vector<2x16x16xf32>
    %54 = tpu.matmul %49, %51, %cst_16 {dimension_numbers = #tpu.dot_dimension_numbers<[2], [2], [1], [1], [0, 0, 0, 1, 1, 1], [0], [0]>} : vector<2x16x32xf32>, vector<2x16x32xf32>, vector<2x16x16xf32> -> vector<2x16x16xf32>
    %cst_17 = arith.constant dense<0xFF800000> : vector<2x16xf32>
    %55 = vector.multi_reduction <maximumf>, %54, %cst_17 [2] : vector<2x16x16xf32> to vector<2x16xf32>
    %56 = vector.shape_cast %55 : vector<2x16xf32> to vector<2x16x1xf32>
    %57 = vector.broadcast %56 : vector<2x16x1xf32> to vector<2x16x16xf32>
    %58 = arith.subf %54, %57 : vector<2x16x16xf32>
    %59 = math.exp %58 : vector<2x16x16xf32>
    %cst_18 = arith.constant dense<0.000000e+00> : vector<2x16xf32>
    %60 = vector.multi_reduction <add>, %59, %cst_18 [2] : vector<2x16x16xf32> to vector<2x16xf32>
    %61 = vector.shape_cast %60 : vector<2x16xf32> to vector<2x16x1xf32>
    %62 = vector.broadcast %61 : vector<2x16x1xf32> to vector<2x16x16xf32>
    %63 = arith.divf %59, %62 : vector<2x16x16xf32>
    %cst_19 = arith.constant dense<0.000000e+00> : vector<2x16x32xf32>
    %64 = tpu.matmul %63, %53, %cst_19 {dimension_numbers = #tpu.dot_dimension_numbers<[2], [1], [1], [2], [0, 0, 0, 1, 1, 2], [0], [0]>} : vector<2x16x16xf32>, vector<2x16x32xf32>, vector<2x16x32xf32> -> vector<2x16x32xf32>
    %65 = vector.extract_strided_slice %11 {offsets = [0, 96], sizes = [32, 32], strides = [1, 1]} : vector<32x128xf32> to vector<32x32xf32>
    %66 = vector.shape_cast %65 : vector<32x32xf32> to vector<2x16x32xf32>
    %67 = vector.extract_strided_slice %12 {offsets = [0, 96], sizes = [32, 32], strides = [1, 1]} : vector<32x128xf32> to vector<32x32xf32>
    %68 = vector.shape_cast %67 : vector<32x32xf32> to vector<2x16x32xf32>
    %69 = vector.extract_strided_slice %13 {offsets = [0, 96], sizes = [32, 32], strides = [1, 1]} : vector<32x128xf32> to vector<32x32xf32>
    %70 = vector.shape_cast %69 : vector<32x32xf32> to vector<2x16x32xf32>
    %cst_20 = arith.constant dense<0.000000e+00> : vector<2x16x16xf32>
    %71 = tpu.matmul %66, %68, %cst_20 {dimension_numbers = #tpu.dot_dimension_numbers<[2], [2], [1], [1], [0, 0, 0, 1, 1, 1], [0], [0]>} : vector<2x16x32xf32>, vector<2x16x32xf32>, vector<2x16x16xf32> -> vector<2x16x16xf32>
    %cst_21 = arith.constant dense<0xFF800000> : vector<2x16xf32>
    %72 = vector.multi_reduction <maximumf>, %71, %cst_21 [2] : vector<2x16x16xf32> to vector<2x16xf32>
    %73 = vector.shape_cast %72 : vector<2x16xf32> to vector<2x16x1xf32>
    %74 = vector.broadcast %73 : vector<2x16x1xf32> to vector<2x16x16xf32>
    %75 = arith.subf %71, %74 : vector<2x16x16xf32>
    %76 = math.exp %75 : vector<2x16x16xf32>
    %cst_22 = arith.constant dense<0.000000e+00> : vector<2x16xf32>
    %77 = vector.multi_reduction <add>, %76, %cst_22 [2] : vector<2x16x16xf32> to vector<2x16xf32>
    %78 = vector.shape_cast %77 : vector<2x16xf32> to vector<2x16x1xf32>
    %79 = vector.broadcast %78 : vector<2x16x1xf32> to vector<2x16x16xf32>
    %80 = arith.divf %76, %79 : vector<2x16x16xf32>
    %cst_23 = arith.constant dense<0.000000e+00> : vector<2x16x32xf32>
    %81 = tpu.matmul %80, %70, %cst_23 {dimension_numbers = #tpu.dot_dimension_numbers<[2], [1], [1], [2], [0, 0, 0, 1, 1, 2], [0], [0]>} : vector<2x16x16xf32>, vector<2x16x32xf32>, vector<2x16x32xf32> -> vector<2x16x32xf32>
    %82 = tpu.concatenate %30, %47, %64, %81 in 2 : vector<2x16x32xf32>, vector<2x16x32xf32>, vector<2x16x32xf32>, vector<2x16x32xf32> -> vector<2x16x128xf32>
    %83 = vector.shape_cast %82 : vector<2x16x128xf32> to vector<32x128xf32>
    %c0_24 = arith.constant 0 : index
    %c0_25 = arith.constant 0 : index
    %c0_26 = arith.constant 0 : index
    %84 = vector.load %arg7[%c0_24, %c0_25, %c0_26] : memref<1x6x128xf32, #tpu.memory_space<vmem>>, vector<1x6x128xf32>
    %85 = vector.shape_cast %84 : vector<1x6x128xf32> to vector<6x128xf32>
    %c0_27 = arith.constant 0 : index
    %c0_28 = arith.constant 0 : index
    %c0_29 = arith.constant 0 : index
    %86 = vector.load %arg6[%c0_27, %c0_28, %c0_29] : memref<1x128x128xf32, #tpu.memory_space<vmem>>, vector<1x128x128xf32>
    %87 = vector.shape_cast %86 : vector<1x128x128xf32> to vector<128x128xf32>
    %cst_30 = arith.constant dense<0.000000e+00> : vector<32x128xf32>
    %88 = tpu.matmul %83, %87, %cst_30 {dimension_numbers = #tpu.dot_dimension_numbers<[1], [0], [0], [1], [0, 0, 1, 1], [], []>} : vector<32x128xf32>, vector<128x128xf32>, vector<32x128xf32> -> vector<32x128xf32>
    %89 = arith.addf %3, %88 : vector<32x128xf32>
    %90 = vector.extract_strided_slice %85 {offsets = [0, 0], sizes = [1, 128], strides = [1, 1]} : vector<6x128xf32> to vector<1x128xf32>
    %91 = vector.broadcast %90 : vector<1x128xf32> to vector<32x128xf32>
    %92 = arith.addf %89, %91 : vector<32x128xf32>
    %cst_31 = arith.constant dense<0.000000e+00> : vector<32xf32>
    %93 = vector.multi_reduction <add>, %92, %cst_31 [1] : vector<32x128xf32> to vector<32xf32>
    %94 = vector.shape_cast %93 : vector<32xf32> to vector<32x1xf32>
    %cst_32 = arith.constant 1.280000e+02 : f32
    %95 = vector.broadcast %cst_32 : f32 to vector<32x1xf32>
    %96 = arith.divf %94, %95 : vector<32x1xf32>
    %97 = vector.broadcast %96 : vector<32x1xf32> to vector<32x128xf32>
    %98 = arith.subf %92, %97 : vector<32x128xf32>
    %99 = arith.mulf %98, %98 : vector<32x128xf32>
    %cst_33 = arith.constant dense<0.000000e+00> : vector<32xf32>
    %100 = vector.multi_reduction <add>, %99, %cst_33 [1] : vector<32x128xf32> to vector<32xf32>
    %101 = vector.shape_cast %100 : vector<32xf32> to vector<32x1xf32>
    %cst_34 = arith.constant 1.280000e+02 : f32
    %102 = vector.broadcast %cst_34 : f32 to vector<32x1xf32>
    %103 = arith.divf %101, %102 : vector<32x1xf32>
    %104 = vector.broadcast %96 : vector<32x1xf32> to vector<32x128xf32>
    %105 = arith.subf %92, %104 : vector<32x128xf32>
    %cst_35 = arith.constant 9.99999974E-6 : f32
    %106 = vector.broadcast %cst_35 : f32 to vector<32x1xf32>
    %107 = arith.addf %103, %106 : vector<32x1xf32>
    %108 = math.rsqrt %107 : vector<32x1xf32>
    %109 = vector.broadcast %108 : vector<32x1xf32> to vector<32x128xf32>
    %110 = arith.mulf %105, %109 : vector<32x128xf32>
    %111 = vector.extract_strided_slice %85 {offsets = [1, 0], sizes = [1, 128], strides = [1, 1]} : vector<6x128xf32> to vector<1x128xf32>
    %112 = vector.broadcast %111 : vector<1x128xf32> to vector<32x128xf32>
    %113 = arith.mulf %110, %112 : vector<32x128xf32>
    %114 = vector.extract_strided_slice %85 {offsets = [2, 0], sizes = [1, 128], strides = [1, 1]} : vector<6x128xf32> to vector<1x128xf32>
    %115 = vector.broadcast %114 : vector<1x128xf32> to vector<32x128xf32>
    %116 = arith.addf %113, %115 : vector<32x128xf32>
    %c0_36 = arith.constant 0 : index
    %c0_37 = arith.constant 0 : index
    %c0_38 = arith.constant 0 : index
    %117 = vector.load %arg8[%c0_36, %c0_37, %c0_38] : memref<1x128x256xf32, #tpu.memory_space<vmem>>, vector<1x128x256xf32>
    %118 = vector.shape_cast %117 : vector<1x128x256xf32> to vector<128x256xf32>
    %cst_39 = arith.constant dense<0.000000e+00> : vector<32x256xf32>
    %119 = tpu.matmul %116, %118, %cst_39 {dimension_numbers = #tpu.dot_dimension_numbers<[1], [0], [0], [1], [0, 0, 1, 1], [], []>} : vector<32x128xf32>, vector<128x256xf32>, vector<32x256xf32> -> vector<32x256xf32>
    %c0_40 = arith.constant 0 : index
    %c0_41 = arith.constant 0 : index
    %c0_42 = arith.constant 0 : index
    %120 = vector.load %arg9[%c0_40, %c0_41, %c0_42] : memref<1x1x256xf32, #tpu.memory_space<vmem>>, vector<1x1x256xf32>
    %121 = vector.shape_cast %120 : vector<1x1x256xf32> to vector<1x256xf32>
    %122 = vector.broadcast %121 : vector<1x256xf32> to vector<32x256xf32>
    %123 = arith.addf %119, %122 : vector<32x256xf32>
    %cst_43 = arith.constant 0.000000e+00 : f32
    %124 = vector.broadcast %cst_43 : f32 to vector<32x256xf32>
    %125 = arith.maximumf %123, %124 : vector<32x256xf32>
    %c0_44 = arith.constant 0 : index
    %c0_45 = arith.constant 0 : index
    %c0_46 = arith.constant 0 : index
    %126 = vector.load %arg10[%c0_44, %c0_45, %c0_46] : memref<1x256x128xf32, #tpu.memory_space<vmem>>, vector<1x256x128xf32>
    %127 = vector.shape_cast %126 : vector<1x256x128xf32> to vector<256x128xf32>
    %cst_47 = arith.constant dense<0.000000e+00> : vector<32x128xf32>
    %128 = tpu.matmul %125, %127, %cst_47 {dimension_numbers = #tpu.dot_dimension_numbers<[1], [0], [0], [1], [0, 0, 1, 1], [], []>} : vector<32x256xf32>, vector<256x128xf32>, vector<32x128xf32> -> vector<32x128xf32>
    %129 = vector.extract_strided_slice %85 {offsets = [3, 0], sizes = [1, 128], strides = [1, 1]} : vector<6x128xf32> to vector<1x128xf32>
    %130 = vector.broadcast %129 : vector<1x128xf32> to vector<32x128xf32>
    %131 = arith.addf %128, %130 : vector<32x128xf32>
    %132 = arith.addf %116, %131 : vector<32x128xf32>
    %cst_48 = arith.constant dense<0.000000e+00> : vector<32xf32>
    %133 = vector.multi_reduction <add>, %132, %cst_48 [1] : vector<32x128xf32> to vector<32xf32>
    %134 = vector.shape_cast %133 : vector<32xf32> to vector<32x1xf32>
    %cst_49 = arith.constant 1.280000e+02 : f32
    %135 = vector.broadcast %cst_49 : f32 to vector<32x1xf32>
    %136 = arith.divf %134, %135 : vector<32x1xf32>
    %137 = vector.broadcast %136 : vector<32x1xf32> to vector<32x128xf32>
    %138 = arith.subf %132, %137 : vector<32x128xf32>
    %139 = arith.mulf %138, %138 : vector<32x128xf32>
    %cst_50 = arith.constant dense<0.000000e+00> : vector<32xf32>
    %140 = vector.multi_reduction <add>, %139, %cst_50 [1] : vector<32x128xf32> to vector<32xf32>
    %141 = vector.shape_cast %140 : vector<32xf32> to vector<32x1xf32>
    %cst_51 = arith.constant 1.280000e+02 : f32
    %142 = vector.broadcast %cst_51 : f32 to vector<32x1xf32>
    %143 = arith.divf %141, %142 : vector<32x1xf32>
    %144 = vector.broadcast %136 : vector<32x1xf32> to vector<32x128xf32>
    %145 = arith.subf %132, %144 : vector<32x128xf32>
    %cst_52 = arith.constant 9.99999974E-6 : f32
    %146 = vector.broadcast %cst_52 : f32 to vector<32x1xf32>
    %147 = arith.addf %143, %146 : vector<32x1xf32>
    %148 = math.rsqrt %147 : vector<32x1xf32>
    %149 = vector.broadcast %148 : vector<32x1xf32> to vector<32x128xf32>
    %150 = arith.mulf %145, %149 : vector<32x128xf32>
    %151 = vector.extract_strided_slice %85 {offsets = [4, 0], sizes = [1, 128], strides = [1, 1]} : vector<6x128xf32> to vector<1x128xf32>
    %152 = vector.broadcast %151 : vector<1x128xf32> to vector<32x128xf32>
    %153 = arith.mulf %150, %152 : vector<32x128xf32>
    %154 = vector.extract_strided_slice %85 {offsets = [5, 0], sizes = [1, 128], strides = [1, 1]} : vector<6x128xf32> to vector<1x128xf32>
    %155 = vector.broadcast %154 : vector<1x128xf32> to vector<32x128xf32>
    %156 = arith.addf %153, %155 : vector<32x128xf32>
    %c0_53 = arith.constant 0 : index
    %c0_54 = arith.constant 0 : index
    %157 = vector.load %arg12[%c0_53, %c0_54] : memref<32x128xf32, #tpu.memory_space<vmem>>, vector<32x128xf32>
    tpu.vector_store %arg12[%c0_53, %c0_54], %156 {strides = array<i32>} : memref<32x128xf32, #tpu.memory_space<vmem>>, vector<32x128xf32>,
    %c1_i32 = arith.constant 1 : i32
    %158 = arith.cmpi eq, %arg1, %c1_i32 : i32
    %159 = arith.extui %158 : i1 to i32
    %c0_i32_55 = arith.constant 0 : i32
    %160 = arith.cmpi ne, %159, %c0_i32_55 : i32
    scf.if %160 {
      %161 = vector.shape_cast %156 : vector<32x128xf32> to vector<2x16x128xf32>
      %c0_56 = arith.constant 0 : index
      %c0_57 = arith.constant 0 : index
      %c0_58 = arith.constant 0 : index
      %162 = vector.load %arg11[%c0_56, %c0_57, %c0_58] : memref<2x16x128xf32, #tpu.memory_space<vmem>>, vector<2x16x128xf32>
      tpu.vector_store %arg11[%c0_56, %c0_57, %c0_58], %161 {strides = array<i32>} : memref<2x16x128xf32, #tpu.memory_space<vmem>>, vector<2x16x128xf32>,
    } else {
    }
    return
  }
  func.func @transform_0(%arg0: i32, %arg1: i32) -> (i32, i32, i32) {
    %c0_i32 = arith.constant 0 : i32
    %c0_i32_0 = arith.constant 0 : i32
    %c0_i32_1 = arith.constant 0 : i32
    return %arg0, %c0_i32, %c0_i32_0 : i32, i32, i32
  }
  func.func @transform_1(%arg0: i32, %arg1: i32) -> (i32, i32, i32) {
    %c0_i32 = arith.constant 0 : i32
    %c0_i32_0 = arith.constant 0 : i32
    %c0_i32_1 = arith.constant 0 : i32
    %c0_i32_2 = arith.constant 0 : i32
    return %c0_i32, %c0_i32_0, %c0_i32_1 : i32, i32, i32
  }
  func.func @transform_2(%arg0: i32, %arg1: i32) -> (i32, i32, i32) {
    %c0_i32 = arith.constant 0 : i32
    %c0_i32_0 = arith.constant 0 : i32
    %c0_i32_1 = arith.constant 0 : i32
    return %arg1, %c0_i32, %c0_i32_0 : i32, i32, i32
  }
  func.func @transform_3(%arg0: i32, %arg1: i32) -> (i32, i32, i32) {
    %c0_i32 = arith.constant 0 : i32
    %c0_i32_0 = arith.constant 0 : i32
    %c0_i32_1 = arith.constant 0 : i32
    return %arg1, %c0_i32, %c0_i32_0 : i32, i32, i32
  }
  func.func @transform_4(%arg0: i32, %arg1: i32) -> (i32, i32, i32) {
    %c0_i32 = arith.constant 0 : i32
    %c0_i32_0 = arith.constant 0 : i32
    %c0_i32_1 = arith.constant 0 : i32
    return %arg1, %c0_i32, %c0_i32_0 : i32, i32, i32
  }
  func.func @transform_5(%arg0: i32, %arg1: i32) -> (i32, i32, i32) {
    %c0_i32 = arith.constant 0 : i32
    %c0_i32_0 = arith.constant 0 : i32
    %c0_i32_1 = arith.constant 0 : i32
    return %arg1, %c0_i32, %c0_i32_0 : i32, i32, i32
  }
  func.func @transform_6(%arg0: i32, %arg1: i32) -> (i32, i32, i32) {
    %c0_i32 = arith.constant 0 : i32
    %c0_i32_0 = arith.constant 0 : i32
    %c0_i32_1 = arith.constant 0 : i32
    return %arg1, %c0_i32, %c0_i32_0 : i32, i32, i32
  }
  func.func @transform_7(%arg0: i32, %arg1: i32) -> (i32, i32, i32) {
    %c0_i32 = arith.constant 0 : i32
    %c0_i32_0 = arith.constant 0 : i32
    %c0_i32_1 = arith.constant 0 : i32
    return %arg1, %c0_i32, %c0_i32_0 : i32, i32, i32
  }
  func.func @transform_8(%arg0: i32, %arg1: i32) -> (i32, i32, i32) {
    %c0_i32 = arith.constant 0 : i32
    %c0_i32_0 = arith.constant 0 : i32
    %c0_i32_1 = arith.constant 0 : i32
    return %arg1, %c0_i32, %c0_i32_0 : i32, i32, i32
  }
  func.func @transform_9(%arg0: i32, %arg1: i32) -> (i32, i32, i32) {
    %c0_i32 = arith.constant 0 : i32
    %c0_i32_0 = arith.constant 0 : i32
    %c0_i32_1 = arith.constant 0 : i32
    return %arg0, %c0_i32, %c0_i32_0 : i32, i32, i32
  }
}

</mosaic_0001>

<llo_original>
// kernel: tpu_custom_call.1
$region0: #{tpu_custom_call.1}
  #allocation0 [shape = 'u32[]', space=smem, size = 0x4, offset = 0x4, fixed_abs, tag = 'smem constant byte address 0x4 - core index']
  #allocation1 [shape = 'u32[144,128]{1,0:T(1,128)}', space=vmem, size = 0x12000, scoped, tag = 'internal scratch']
  #allocation2 [shape = 'f32[32,128]{1,0:T(8,128)}', space=vmem, size = 0x4000, scoped, tag = 'scratch operand']
  %s0 = inlined_call_operand.hbm [shape: f32[4,16,128], index: 0, kind: input, shape index: {}, may-alias: {0,9}]
  %s1 = inlined_call_operand.vmem [shape: f32[1,16,128], index: 1, kind: input, shape index: {}]
  %s2 = inlined_call_operand.hbm [shape: f32[2,128,384], index: 2, kind: input, shape index: {}]
  %s3 = inlined_call_operand.vmem [shape: f32[2,1,384], index: 3, kind: input, shape index: {}]
  %s4 = inlined_call_operand.hbm [shape: f32[2,128,128], index: 4, kind: input, shape index: {}]
  %s5 = inlined_call_operand.vmem [shape: f32[2,6,128], index: 5, kind: input, shape index: {}]
  %s6 = inlined_call_operand.hbm [shape: f32[2,128,256], index: 6, kind: input, shape index: {}]
  %s7 = inlined_call_operand.vmem [shape: f32[2,1,256], index: 7, kind: input, shape index: {}]
  %s8 = inlined_call_operand.hbm [shape: f32[2,256,128], index: 8, kind: input, shape index: {}]
  %s9 = inlined_call_operand.hbm [shape: f32[4,16,128], index: 9, kind: output, shape index: {}, may-alias: {0,9}]
  %s10 = sld [smem:[#allocation0]]
  $region97: #{tpu_custom_call.1} parent=0
    _
  %s12 = ssub.s32 1, %s10
  %s13 = scalar_select 0, %s12, %s10
  $region1: #{tpu_custom_call.1} parent=0
    #allocation3 [shape = 'u8[32768]{0}', space=vmem, size = 0x8000, scoped, tag = 'input window, operand 0']
    #allocation4 [shape = 's32[2]{0}', space=sflag, size = 0x8, scoped, tag = 'scoped memory for tpu_custom_call.1']
    #allocation5 [shape = 's32[2]{0}', space=sflag, size = 0x8, scoped, tag = 'scoped memory for tpu_custom_call.1']
    #allocation6 [shape = 'u8[393216]{0}', space=vmem, size = 0x60000, scoped, tag = 'input window, operand 2']
    #allocation7 [shape = 's32[2]{0}', space=sflag, size = 0x8, scoped, tag = 'scoped memory for tpu_custom_call.1']
    #allocation8 [shape = 'u8[131072]{0}', space=vmem, size = 0x20000, scoped, tag = 'input window, operand 4']
    #allocation9 [shape = 'u8[262144]{0}', space=vmem, size = 0x40000, scoped, tag = 'input window, operand 6']
    #allocation10 [shape = 's32[2]{0}', space=sflag, size = 0x8, scoped, tag = 'scoped memory for tpu_custom_call.1']
    #allocation11 [shape = 'u8[262144]{0}', space=vmem, size = 0x40000, scoped, tag = 'input window, operand 8']
    #allocation12 [shape = 'u8[32768]{0}', space=vmem, size = 0x8000, scoped, tag = 'output window, operand 0']
    %14 = vsyncpa [#allocation4], 0
    %s15 = scalar_lea.sflag [#allocation4], 1
    %16 = vsyncpa %s15, 0
    %17 = vsyncpa [#allocation7], 0
    %s18 = scalar_lea.sflag [#allocation7], 1
    %19 = vsyncpa %s18, 0
    %20 = vsyncpa [#allocation10], 0
    %s21 = scalar_lea.sflag [#allocation10], 1
    %22 = vsyncpa %s21, 0
    %23 = vsyncpa [#allocation5], 0
    %s24 = scalar_lea.sflag [#allocation5], 1
    %25 = vsyncpa %s24, 0
    loop: start=0, step=1, limit=6
    $region2: #{tpu_custom_call.1} parent=1 // loop_pre_header
      _
    $region3: #{tpu_custom_call.1} parent=1 // loop_header
      %s27 = sphi 0, %s31
      %p28 = scmp.ge.s32.totalorder %s27, 6
      %s34 = sphi 0, %s46
      %s35 = sphi 0, %s42
      %s36 = sphi 0, %s34
      %s37 = sphi 0, %s35
      %s38 = sphi 0, %s36
      %s39 = sphi 0, %s37
      %s49 = sphi 0, %s51
      %s52 = sphi 0, %s49
      %s53 = sphi 0, %s52
      %s69 = sphi 0, %s53
      %s73 = sphi 0, %s73
      %s75 = sphi 0, %s73
      %s76 = sphi 0, %s75
      %s90 = sphi 0, %s76
      %s96 = sphi 0, %s98
      %s99 = sphi 0, %s96
      %s100 = sphi 0, %s99
      %s116 = sphi 0, %s100
      %s122 = sphi 0, %s124
      %s125 = sphi 0, %s122
      %s126 = sphi 0, %s125
      %s142 = sphi 0, %s126
      %s148 = sphi 0, %s150
      %s151 = sphi 0, %s148
      %s152 = sphi 0, %s151
      %s168 = sphi 0, %s152
      %s174 = sphi 0, %s176
      %s177 = sphi 0, %s174
      %s178 = sphi 0, %s177
      %s194 = sphi 0, %s178
      %s200 = sphi 0, %s202
      %s203 = sphi 0, %s200
      %s204 = sphi 0, %s203
      %s220 = sphi 0, %s204
      %s226 = sphi 0, %s228
      %s229 = sphi 0, %s226
      %s230 = sphi 0, %s229
      %s246 = sphi 0, %s230
      %s252 = sphi 0, %s254
      %s255 = sphi 0, %s252
      %s256 = sphi 0, %s255
      %s272 = sphi 0, %s256
      %s278 = sphi 0, %s280
      %s281 = sphi 0, %s278
      %s282 = sphi 0, %s281
      %s298 = sphi 0, %s282
    $region4: #{tpu_custom_call.1} parent=1 // loop_header_branch
      %30 = sbr.rel (%p28) target = $region8
    $region5: #{tpu_custom_call.1} parent=1 // loop_body
      %s32 = ssub.s32 %s27, 1
      %s33 = ssub.s32 %s27, 2
      %s40 = sadd.s32 1, %s35
      %p41 = scmp.ge.s32.totalorder %s40, 2
      %s42 = scalar_select %p41, 0, %s40
      %s43 = sadd.s32 1, %s34
      %s44 = scalar_select %p41, %s43, %s34
      %p45 = scmp.ge.s32.totalorder %s44, 2
      %s46 = scalar_select %p45, 0, %s44
      %s47 = ssub.s32 %s34, %s46
      %p48 = scmp.eq.s32.totalorder %s47, 0
      %s50 = sadd.s32 %s49, 1
      %s51 = scalar_select %p48, %s49, %s50
      %p54 = pneg %p48
      %p55 = scmp.eq.s32.totalorder %s27, 3
      %p56 = por %p54, %p55
      %p57 = scmp.ne.s32.totalorder %s49, %s52
      %p58 = scmp.eq.s32.totalorder %s27, 0
      %p59 = por %p57, %p58
      %p60 = scmp.ne.s32.totalorder %s49, %s52
      %p61 = scmp.eq.s32.totalorder %s32, 3
      %p62 = por %p60, %p61
      %p63 = scmp.ne.s32.totalorder %s52, %s53
      %p64 = scmp.eq.s32.totalorder %s32, 0
      %p65 = por %p63, %p64
      %p66 = scmp.ne.s32.totalorder %s52, %s53
      %p67 = scmp.eq.s32.totalorder %s33, 3
      %p68 = por %p66, %p67
      %p70 = scmp.ne.s32.totalorder %s53, %s69
      %p71 = scmp.eq.s32.totalorder %s33, 0
      %p72 = por %p70, %p71
      %s74 = sadd.s32 %s73, 1
      %p77 = scmp.eq.s32.totalorder %s27, 3
      %p78 = scmp.ne.s32.totalorder %s73, %s75
      %p79 = scmp.eq.s32.totalorder %s27, 0
      %p80 = por %p78, %p79
      %p81 = scmp.ne.s32.totalorder %s73, %s75
      %p82 = scmp.eq.s32.totalorder %s32, 3
      %p83 = por %p81, %p82
      %p84 = scmp.ne.s32.totalorder %s75, %s76
      %p85 = scmp.eq.s32.totalorder %s32, 0
      %p86 = por %p84, %p85
      %p87 = scmp.ne.s32.totalorder %s75, %s76
      %p88 = scmp.eq.s32.totalorder %s33, 3
      %p89 = por %p87, %p88
      %p91 = scmp.ne.s32.totalorder %s76, %s90
      %p92 = scmp.eq.s32.totalorder %s33, 0
      %p93 = por %p91, %p92
      %s94 = ssub.s32 %s35, %s42
      %p95 = scmp.eq.s32.totalorder %s94, 0
      %s97 = sadd.s32 %s96, 1
      %s98 = scalar_select %p95, %s96, %s97
      %p101 = pneg %p95
      %p102 = scmp.eq.s32.totalorder %s27, 3
      %p103 = por %p101, %p102
      %p104 = scmp.ne.s32.totalorder %s96, %s99
      %p105 = scmp.eq.s32.totalorder %s27, 0
      %p106 = por %p104, %p105
      %p107 = scmp.ne.s32.totalorder %s96, %s99
      %p108 = scmp.eq.s32.totalorder %s32, 3
      %p109 = por %p107, %p108
      %p110 = scmp.ne.s32.totalorder %s99, %s100
      %p111 = scmp.eq.s32.totalorder %s32, 0
      %p112 = por %p110, %p111
      %p113 = scmp.ne.s32.totalorder %s99, %s100
      %p114 = scmp.eq.s32.totalorder %s33, 3
      %p115 = por %p113, %p114
      %p117 = scmp.ne.s32.totalorder %s100, %s116
      %p118 = scmp.eq.s32.totalorder %s33, 0
      %p119 = por %p117, %p118
      %s120 = ssub.s32 %s35, %s42
      %p121 = scmp.eq.s32.totalorder %s120, 0
      %s123 = sadd.s32 %s122, 1
      %s124 = scalar_select %p121, %s122, %s123
      %p127 = pneg %p121
      %p128 = scmp.eq.s32.totalorder %s27, 3
      %p129 = por %p127, %p128
      %p130 = scmp.ne.s32.totalorder %s122, %s125
      %p131 = scmp.eq.s32.totalorder %s27, 0
      %p132 = por %p130, %p131
      %p133 = scmp.ne.s32.totalorder %s122, %s125
      %p134 = scmp.eq.s32.totalorder %s32, 3
      %p135 = por %p133, %p134
      %p136 = scmp.ne.s32.totalorder %s125, %s126
      %p137 = scmp.eq.s32.totalorder %s32, 0
      %p138 = por %p136, %p137
      %p139 = scmp.ne.s32.totalorder %s125, %s126
      %p140 = scmp.eq.s32.totalorder %s33, 3
      %p141 = por %p139, %p140
      %p143 = scmp.ne.s32.totalorder %s126, %s142
      %p144 = scmp.eq.s32.totalorder %s33, 0
      %p145 = por %p143, %p144
      %s146 = ssub.s32 %s35, %s42
      %p147 = scmp.eq.s32.totalorder %s146, 0
      %s149 = sadd.s32 %s148, 1
      %s150 = scalar_select %p147, %s148, %s149
      %p153 = pneg %p147
      %p154 = scmp.eq.s32.totalorder %s27, 3
      %p155 = por %p153, %p154
      %p156 = scmp.ne.s32.totalorder %s148, %s151
      %p157 = scmp.eq.s32.totalorder %s27, 0
      %p158 = por %p156, %p157
      %p159 = scmp.ne.s32.totalorder %s148, %s151
      %p160 = scmp.eq.s32.totalorder %s32, 3
      %p161 = por %p159, %p160
      %p162 = scmp.ne.s32.totalorder %s151, %s152
      %p163 = scmp.eq.s32.totalorder %s32, 0
      %p164 = por %p162, %p163
      %p165 = scmp.ne.s32.totalorder %s151, %s152
      %p166 = scmp.eq.s32.totalorder %s33, 3
      %p167 = por %p165, %p166
      %p169 = scmp.ne.s32.totalorder %s152, %s168
      %p170 = scmp.eq.s32.totalorder %s33, 0
      %p171 = por %p169, %p170
      %s172 = ssub.s32 %s35, %s42
      %p173 = scmp.eq.s32.totalorder %s172, 0
      %s175 = sadd.s32 %s174, 1
      %s176 = scalar_select %p173, %s174, %s175
      %p179 = pneg %p173
      %p180 = scmp.eq.s32.totalorder %s27, 3
      %p181 = por %p179, %p180
      %p182 = scmp.ne.s32.totalorder %s174, %s177
      %p183 = scmp.eq.s32.totalorder %s27, 0
      %p184 = por %p182, %p183
      %p185 = scmp.ne.s32.totalorder %s174, %s177
      %p186 = scmp.eq.s32.totalorder %s32, 3
      %p187 = por %p185, %p186
      %p188 = scmp.ne.s32.totalorder %s177, %s178
      %p189 = scmp.eq.s32.totalorder %s32, 0
      %p190 = por %p188, %p189
      %p191 = scmp.ne.s32.totalorder %s177, %s178
      %p192 = scmp.eq.s32.totalorder %s33, 3
      %p193 = por %p191, %p192
      %p195 = scmp.ne.s32.totalorder %s178, %s194
      %p196 = scmp.eq.s32.totalorder %s33, 0
      %p197 = por %p195, %p196
      %s198 = ssub.s32 %s35, %s42
      %p199 = scmp.eq.s32.totalorder %s198, 0
      %s201 = sadd.s32 %s200, 1
      %s202 = scalar_select %p199, %s200, %s201
      %p205 = pneg %p199
      %p206 = scmp.eq.s32.totalorder %s27, 3
      %p207 = por %p205, %p206
      %p208 = scmp.ne.s32.totalorder %s200, %s203
      %p209 = scmp.eq.s32.totalorder %s27, 0
      %p210 = por %p208, %p209
      %p211 = scmp.ne.s32.totalorder %s200, %s203
      %p212 = scmp.eq.s32.totalorder %s32, 3
      %p213 = por %p211, %p212
      %p214 = scmp.ne.s32.totalorder %s203, %s204
      %p215 = scmp.eq.s32.totalorder %s32, 0
      %p216 = por %p214, %p215
      %p217 = scmp.ne.s32.totalorder %s203, %s204
      %p218 = scmp.eq.s32.totalorder %s33, 3
      %p219 = por %p217, %p218
      %p221 = scmp.ne.s32.totalorder %s204, %s220
      %p222 = scmp.eq.s32.totalorder %s33, 0
      %p223 = por %p221, %p222
      %s224 = ssub.s32 %s35, %s42
      %p225 = scmp.eq.s32.totalorder %s224, 0
      %s227 = sadd.s32 %s226, 1
      %s228 = scalar_select %p225, %s226, %s227
      %p231 = pneg %p225
      %p232 = scmp.eq.s32.totalorder %s27, 3
      %p233 = por %p231, %p232
      %p234 = scmp.ne.s32.totalorder %s226, %s229
      %p235 = scmp.eq.s32.totalorder %s27, 0
      %p236 = por %p234, %p235
      %p237 = scmp.ne.s32.totalorder %s226, %s229
      %p238 = scmp.eq.s32.totalorder %s32, 3
      %p239 = por %p237, %p238
      %p240 = scmp.ne.s32.totalorder %s229, %s230
      %p241 = scmp.eq.s32.totalorder %s32, 0
      %p242 = por %p240, %p241
      %p243 = scmp.ne.s32.totalorder %s229, %s230
      %p244 = scmp.eq.s32.totalorder %s33, 3
      %p245 = por %p243, %p244
      %p247 = scmp.ne.s32.totalorder %s230, %s246
      %p248 = scmp.eq.s32.totalorder %s33, 0
      %p249 = por %p247, %p248
      %s250 = ssub.s32 %s35, %s42
      %p251 = scmp.eq.s32.totalorder %s250, 0
      %s253 = sadd.s32 %s252, 1
      %s254 = scalar_select %p251, %s252, %s253
      %p257 = pneg %p251
      %p258 = scmp.eq.s32.totalorder %s27, 3
      %p259 = por %p257, %p258
      %p260 = scmp.ne.s32.totalorder %s252, %s255
      %p261 = scmp.eq.s32.totalorder %s27, 0
      %p262 = por %p260, %p261
      %p263 = scmp.ne.s32.totalorder %s252, %s255
      %p264 = scmp.eq.s32.totalorder %s32, 3
      %p265 = por %p263, %p264
      %p266 = scmp.ne.s32.totalorder %s255, %s256
      %p267 = scmp.eq.s32.totalorder %s32, 0
      %p268 = por %p266, %p267
      %p269 = scmp.ne.s32.totalorder %s255, %s256
      %p270 = scmp.eq.s32.totalorder %s33, 3
      %p271 = por %p269, %p270
      %p273 = scmp.ne.s32.totalorder %s256, %s272
      %p274 = scmp.eq.s32.totalorder %s33, 0
      %p275 = por %p273, %p274
      %s276 = ssub.s32 %s34, %s46
      %p277 = scmp.eq.s32.totalorder %s276, 0
      %s279 = sadd.s32 %s278, 1
      %s280 = scalar_select %p277, %s278, %s279
      %p283 = pneg %p277
      %p284 = scmp.eq.s32.totalorder %s27, 3
      %p285 = por %p283, %p284
      %p286 = scmp.ne.s32.totalorder %s278, %s281
      %p287 = scmp.eq.s32.totalorder %s27, 0
      %p288 = por %p286, %p287
      %p289 = scmp.ne.s32.totalorder %s278, %s281
      %p290 = scmp.eq.s32.totalorder %s32, 3
      %p291 = por %p289, %p290
      %p292 = scmp.ne.s32.totalorder %s281, %s282
      %p293 = scmp.eq.s32.totalorder %s32, 0
      %p294 = por %p292, %p293
      %p295 = scmp.ne.s32.totalorder %s281, %s282
      %p296 = scmp.eq.s32.totalorder %s33, 3
      %p297 = por %p295, %p296
      %p299 = scmp.ne.s32.totalorder %s282, %s298
      %p300 = scmp.eq.s32.totalorder %s33, 0
      %p301 = por %p299, %p300
      %p302 = scmp.le.s32.totalorder 1, %s27
      %p303 = scmp.lt.s32.totalorder %s27, 5
      %p304 = pnand %p302, %p303
      %p305 = pneg %p304
      // Predicated region
      $region9: #{tpu_custom_call.1} parent=5 // pred_check
        _
      $region10: #{tpu_custom_call.1} parent=5 // pred_check_branch
        %307 = sbr.rel (%p304) target = $region12
      $region11: #{tpu_custom_call.1} parent=5 // pred_region
        %s308 = ssub.s32 %s27, 1
        // Predicated region
        $region13: #{tpu_custom_call.1} parent=11 // pred_check
          %p309 = pneg %p86
        $region14: #{tpu_custom_call.1} parent=11 // pred_check_branch
          %311 = sbr.rel (%p309) target = $region16
        $region15: #{tpu_custom_call.1} parent=11 // pred_region
          _
        $region16: #{tpu_custom_call.1} parent=11 // pred_fallthru
          _
      $region12: #{tpu_custom_call.1} parent=5 // pred_fallthru
        _
      %p312 = scmp.lt.s32.totalorder %s27, 4
      // Predicated region
      $region17: #{tpu_custom_call.1} parent=5 // pred_check
        %p313 = pneg %p312
      $region18: #{tpu_custom_call.1} parent=5 // pred_check_branch
        %315 = sbr.rel (%p313) target = $region20
      $region19: #{tpu_custom_call.1} parent=5 // pred_region
        // Predicated region
        $region21: #{tpu_custom_call.1} parent=19 // pred_check
          %p316 = pneg %p59
        $region22: #{tpu_custom_call.1} parent=19 // pred_check_branch
          %318 = sbr.rel (%p316) target = $region24
        $region23: #{tpu_custom_call.1} parent=19 // pred_region
          %s319 = sand.u32 %s49, 1
          %s320 = scalar_lea.sflag [#allocation4], %s319
          %s321 = sand.u32 %s49, 1
          %s322 = smul.addr %s321, 32
          %s323 = scalar_lea.vmem [#allocation3], %s322
          %s324 = smul.u32 2, %s34
          %s326 = ssub.s32 512, 512
          %327 = vsyncadd %s320, %s326
          %s328 = smul.addr %s324, 2
          %s329 = smul.addr %s328, 128
          %s330 = scalar_lea.hbm %s0, %s329
          %s331 = sshll.u32 %s323, 4
          %s332 = int_to_ptr.vmem [resolvable:$true] %s331
          %337 = dma.hbm_to_vmem [thread:$0]  %s330, 512, %s332, %s320, 128, 128, 8
        $region24: #{tpu_custom_call.1} parent=19 // pred_fallthru
          _
        // Predicated region
        $region25: #{tpu_custom_call.1} parent=19 // pred_check
          %p338 = pneg %p106
        $region26: #{tpu_custom_call.1} parent=19 // pred_check_branch
          %340 = sbr.rel (%p338) target = $region28
        $region27: #{tpu_custom_call.1} parent=19 // pred_region
          %s341 = sand.u32 %s27, 1
          %s342 = scalar_lea.sflag [#allocation7], %s341
          %s343 = sand.u32 %s96, 1
          %s344 = smul.addr %s343, 384
          %s345 = scalar_lea.vmem [#allocation6], %s344
          %s347 = ssub.s32 6144, 6144
          %348 = vsyncadd %s342, %s347
          %s349 = smul.addr %s35, 48
          %s350 = smul.addr %s349, 128
          %s351 = scalar_lea.hbm %s2, %s350
          %s352 = sshll.u32 %s345, 4
          %s353 = int_to_ptr.vmem [resolvable:$true] %s352
          %358 = dma.hbm_to_vmem [thread:$0]  %s351, 6144, %s353, %s342, 384, 384, 24
        $region28: #{tpu_custom_call.1} parent=19 // pred_fallthru
          _
        // Predicated region
        $region29: #{tpu_custom_call.1} parent=19 // pred_check
          %p359 = pneg %p132
        $region30: #{tpu_custom_call.1} parent=19 // pred_check_branch
          %361 = sbr.rel (%p359) target = $region32
        $region31: #{tpu_custom_call.1} parent=19 // pred_region
          %p362 = scmp.lt.s32.totalorder %s35, 1
          %s363 = scalar_select %p362, %s35, 1
          %s364 = smul.addr %s363, 3
          %s365 = scalar_lea.vmem %s3, %s364
        $region32: #{tpu_custom_call.1} parent=19 // pred_fallthru
          _
        // Predicated region
        $region33: #{tpu_custom_call.1} parent=19 // pred_check
          %p366 = pneg %p158
        $region34: #{tpu_custom_call.1} parent=19 // pred_check_branch
          %368 = sbr.rel (%p366) target = $region36
        $region35: #{tpu_custom_call.1} parent=19 // pred_region
          %s369 = sand.u32 %s27, 1
          %s370 = scalar_lea.sflag [#allocation7], %s369
          %s371 = sand.u32 %s148, 1
          %s372 = smul.addr %s371, 128
          %s373 = scalar_lea.vmem [#allocation8], %s372
          %s375 = ssub.s32 2048, 2048
          %376 = vsyncadd %s370, %s375
          %s377 = smul.addr %s35, 16
          %s378 = smul.addr %s377, 128
          %s379 = scalar_lea.hbm %s4, %s378
          %s380 = sshll.u32 %s373, 4
          %s381 = int_to_ptr.vmem [resolvable:$true] %s380
          %386 = dma.hbm_to_vmem [thread:$0]  %s379, 2048, %s381, %s370, 128, 128, 8
        $region36: #{tpu_custom_call.1} parent=19 // pred_fallthru
          _
        // Predicated region
        $region37: #{tpu_custom_call.1} parent=19 // pred_check
          %p387 = pneg %p184
        $region38: #{tpu_custom_call.1} parent=19 // pred_check_branch
          %389 = sbr.rel (%p387) target = $region40
        $region39: #{tpu_custom_call.1} parent=19 // pred_region
          %p390 = scmp.lt.s32.totalorder %s35, 1
          %s391 = scalar_select %p390, %s35, 1
          %s392 = smul.addr %s391, 8
          %s393 = scalar_lea.vmem %s5, %s392
        $region40: #{tpu_custom_call.1} parent=19 // pred_fallthru
          _
        // Predicated region
        $region41: #{tpu_custom_call.1} parent=19 // pred_check
          %p394 = pneg %p210
        $region42: #{tpu_custom_call.1} parent=19 // pred_check_branch
          %396 = sbr.rel (%p394) target = $region44
        $region43: #{tpu_custom_call.1} parent=19 // pred_region
          %s397 = sand.u32 %s27, 1
          %s398 = scalar_lea.sflag [#allocation10], %s397
          %s399 = sand.u32 %s200, 1
          %s400 = smul.addr %s399, 256
          %s401 = scalar_lea.vmem [#allocation9], %s400
          %s403 = ssub.s32 4096, 4096
          %404 = vsyncadd %s398, %s403
          %s405 = smul.addr %s35, 32
          %s406 = smul.addr %s405, 128
          %s407 = scalar_lea.hbm %s6, %s406
          %s408 = sshll.u32 %s401, 4
          %s409 = int_to_ptr.vmem [resolvable:$true] %s408
          %414 = dma.hbm_to_vmem [thread:$0]  %s407, 4096, %s409, %s398, 256, 256, 16
        $region44: #{tpu_custom_call.1} parent=19 // pred_fallthru
          _
        // Predicated region
        $region45: #{tpu_custom_call.1} parent=19 // pred_check
          %p415 = pneg %p236
        $region46: #{tpu_custom_call.1} parent=19 // pred_check_branch
          %417 = sbr.rel (%p415) target = $region48
        $region47: #{tpu_custom_call.1} parent=19 // pred_region
          %p418 = scmp.lt.s32.totalorder %s35, 1
          %s419 = scalar_select %p418, %s35, 1
          %s420 = smul.addr %s419, 2
          %s421 = scalar_lea.vmem %s7, %s420
        $region48: #{tpu_custom_call.1} parent=19 // pred_fallthru
          _
        // Predicated region
        $region49: #{tpu_custom_call.1} parent=19 // pred_check
          %p422 = pneg %p262
        $region50: #{tpu_custom_call.1} parent=19 // pred_check_branch
          %424 = sbr.rel (%p422) target = $region52
        $region51: #{tpu_custom_call.1} parent=19 // pred_region
          %s425 = sand.u32 %s27, 1
          %s426 = scalar_lea.sflag [#allocation10], %s425
          %s427 = sand.u32 %s252, 1
          %s428 = smul.addr %s427, 256
          %s429 = scalar_lea.vmem [#allocation11], %s428
          %s431 = ssub.s32 4096, 4096
          %432 = vsyncadd %s426, %s431
          %s433 = smul.addr %s35, 32
          %s434 = smul.addr %s433, 128
          %s435 = scalar_lea.hbm %s8, %s434
          %s436 = sshll.u32 %s429, 4
          %s437 = int_to_ptr.vmem [resolvable:$true] %s436
          %442 = dma.hbm_to_vmem [thread:$0]  %s435, 4096, %s437, %s426, 128, 128, 8
        $region52: #{tpu_custom_call.1} parent=19 // pred_fallthru
          _
      $region20: #{tpu_custom_call.1} parent=5 // pred_fallthru
        _
      %p443 = scmp.le.s32.totalorder 1, %s27
      %p444 = scmp.lt.s32.totalorder %s27, 5
      %p445 = pnand %p443, %p444
      %p446 = pneg %p445
      // Predicated region
      $region53: #{tpu_custom_call.1} parent=5 // pred_check
        _
      $region54: #{tpu_custom_call.1} parent=5 // pred_check_branch
        %448 = sbr.rel (%p445) target = $region56
      $region55: #{tpu_custom_call.1} parent=5 // pred_region
        %s449 = ssub.s32 %s27, 1
        %s450 = sand.u32 %s52, 1
        %s451 = scalar_lea.sflag [#allocation4], %s450
        %s452 = sand.u32 %s52, 1
        %s453 = smul.addr %s452, 32
        %s454 = scalar_lea.vmem [#allocation3], %s453
        // Predicated region
        $region57: #{tpu_custom_call.1} parent=55 // pred_check
          %p455 = pneg %p65
        $region58: #{tpu_custom_call.1} parent=55 // pred_check_branch
          %457 = sbr.rel (%p455) target = $region60
        $region59: #{tpu_custom_call.1} parent=55 // pred_region
          %458 = dma.done %s451, 512
        $region60: #{tpu_custom_call.1} parent=55 // pred_fallthru
          _
        %s459 = sand.u32 %s32, 1
        %s460 = scalar_lea.sflag [#allocation7], %s459
        %s461 = sand.u32 %s99, 1
        %s462 = smul.addr %s461, 384
        %s463 = scalar_lea.vmem [#allocation6], %s462
        // Predicated region
        $region61: #{tpu_custom_call.1} parent=55 // pred_check
          %p464 = pneg %p112
        $region62: #{tpu_custom_call.1} parent=55 // pred_check_branch
          %466 = sbr.rel (%p464) target = $region64
        $region63: #{tpu_custom_call.1} parent=55 // pred_region
          %467 = dma.done %s460, 6144
        $region64: #{tpu_custom_call.1} parent=55 // pred_fallthru
          _
        %s468 = sand.u32 %s32, 1
        %s469 = scalar_lea.sflag [#allocation7], %s468
        %s470 = sand.u32 %s151, 1
        %s471 = smul.addr %s470, 128
        %s472 = scalar_lea.vmem [#allocation8], %s471
        // Predicated region
        $region65: #{tpu_custom_call.1} parent=55 // pred_check
          %p473 = pneg %p164
        $region66: #{tpu_custom_call.1} parent=55 // pred_check_branch
          %475 = sbr.rel (%p473) target = $region68
        $region67: #{tpu_custom_call.1} parent=55 // pred_region
          %476 = dma.done %s469, 2048
        $region68: #{tpu_custom_call.1} parent=55 // pred_fallthru
          _
        %s477 = sand.u32 %s32, 1
        %s478 = scalar_lea.sflag [#allocation10], %s477
        %s479 = sand.u32 %s203, 1
        %s480 = smul.addr %s479, 256
        %s481 = scalar_lea.vmem [#allocation9], %s480
        // Predicated region
        $region69: #{tpu_custom_call.1} parent=55 // pred_check
          %p482 = pneg %p216
        $region70: #{tpu_custom_call.1} parent=55 // pred_check_branch
          %484 = sbr.rel (%p482) target = $region72
        $region71: #{tpu_custom_call.1} parent=55 // pred_region
          %485 = dma.done %s478, 4096
        $region72: #{tpu_custom_call.1} parent=55 // pred_fallthru
          _
        %s486 = sand.u32 %s32, 1
        %s487 = scalar_lea.sflag [#allocation10], %s486
        %s488 = sand.u32 %s255, 1
        %s489 = smul.addr %s488, 256
        %s490 = scalar_lea.vmem [#allocation11], %s489
        // Predicated region
        $region73: #{tpu_custom_call.1} parent=55 // pred_check
          %p491 = pneg %p268
        $region74: #{tpu_custom_call.1} parent=55 // pred_check_branch
          %493 = sbr.rel (%p491) target = $region76
        $region75: #{tpu_custom_call.1} parent=55 // pred_region
          %494 = dma.done %s487, 4096
        $region76: #{tpu_custom_call.1} parent=55 // pred_fallthru
          _
        %s495 = sand.u32 %s52, 1
        %s496 = scalar_lea.sflag [#allocation4], %s495
        %s497 = sand.u32 %s52, 1
        %s498 = smul.addr %s497, 32
        %s499 = scalar_lea.vmem [#allocation3], %s498
        %p500 = pneg %p65
        %p501 = pneg %p62
        %p502 = pneg %p86
        %p503 = pneg %p83
        %s504 = sand.u32 %s32, 1
        %s505 = scalar_lea.sflag [#allocation7], %s504
        %s506 = sand.u32 %s99, 1
        %s507 = smul.addr %s506, 384
        %s508 = scalar_lea.vmem [#allocation6], %s507
        %p509 = pneg %p112
        %p510 = pneg %p109
        %p511 = scmp.lt.s32.totalorder %s37, 1
        %s512 = scalar_select %p511, %s37, 1
        %s513 = smul.addr %s512, 3
        %s514 = scalar_lea.vmem %s3, %s513
        %p515 = pneg %p138
        %p516 = pneg %p135
        %s517 = sand.u32 %s32, 1
        %s518 = scalar_lea.sflag [#allocation7], %s517
        %s519 = sand.u32 %s151, 1
        %s520 = smul.addr %s519, 128
        %s521 = scalar_lea.vmem [#allocation8], %s520
        %p522 = pneg %p164
        %p523 = pneg %p161
        %p524 = scmp.lt.s32.totalorder %s37, 1
        %s525 = scalar_select %p524, %s37, 1
        %s526 = smul.addr %s525, 8
        %s527 = scalar_lea.vmem %s5, %s526
        %p528 = pneg %p190
        %p529 = pneg %p187
        %s530 = sand.u32 %s32, 1
        %s531 = scalar_lea.sflag [#allocation10], %s530
        %s532 = sand.u32 %s203, 1
        %s533 = smul.addr %s532, 256
        %s534 = scalar_lea.vmem [#allocation9], %s533
        %p535 = pneg %p216
        %p536 = pneg %p213
        %p537 = scmp.lt.s32.totalorder %s37, 1
        %s538 = scalar_select %p537, %s37, 1
        %s539 = smul.addr %s538, 2
        %s540 = scalar_lea.vmem %s7, %s539
        %p541 = pneg %p242
        %p542 = pneg %p239
        %s543 = sand.u32 %s32, 1
        %s544 = scalar_lea.sflag [#allocation10], %s543
        %s545 = sand.u32 %s255, 1
        %s546 = smul.addr %s545, 256
        %s547 = scalar_lea.vmem [#allocation11], %s546
        %p548 = pneg %p268
        %p549 = pneg %p265
        %p550 = pneg %p294
        %p551 = pneg %p291
        %s552 = sand.u32 %s281, 1
        %s553 = scalar_lea.sflag [#allocation5], %s552
        %s554 = sand.u32 %s281, 1
        %s555 = smul.addr %s554, 32
        %s556 = scalar_lea.vmem [#allocation12], %s555
        %s557 = smul.u32 2, %s36
        %p558 = scmp.lt.s32.totalorder %s37, 1
        %s559 = scalar_select %p558, %s37, 1
        %s560 = smul.addr %s559, 3
        %s561 = scalar_lea.vmem %s3, %s560
        %p562 = scmp.lt.s32.totalorder %s37, 1
        %s563 = scalar_select %p562, %s37, 1
        %s564 = smul.addr %s563, 8
        %s565 = scalar_lea.vmem %s5, %s564
        %p566 = scmp.lt.s32.totalorder %s37, 1
        %s567 = scalar_select %p566, %s37, 1
        %s568 = smul.addr %s567, 2
        %s569 = scalar_lea.vmem %s7, %s568
        %s570 = smul.u32 2, %s36
        %p571 = scmp.eq.s32.totalorder %s37, 0
        // Predicated region
        $region77: #{tpu_custom_call.1} parent=55 // pred_check
          %p572 = pneg %p571
        $region78: #{tpu_custom_call.1} parent=55 // pred_check_branch
          %574 = sbr.rel (%p572) target = $region80
        $region79: #{tpu_custom_call.1} parent=55 // pred_region
          %v575 = vld [vmem:[%s454] sm:$0xff]
          %v576 = vld [vmem:[%s454 + $0x8] sm:$0xff]
          %v577 = vld [vmem:[%s454 + $0x10] sm:$0xff]
          %v578 = vld [vmem:[%s454 + $0x18] sm:$0xff]
          %v579 = vld [vmem:[%s1] sm:$0xff]
          %v580 = vld [vmem:[%s1 + $0x8] sm:$0xff]
          %v581 = vadd.f32 %v575, %v579
          %v582 = vadd.f32 %v576, %v580
          %v583 = vadd.f32 %v577, %v579
          %v584 = vadd.f32 %v578, %v580
          %585 = vst [vmem:[#allocation2] sm:$0xff] %v581
          %586 = vst [vmem:[#allocation2 + $0x8] sm:$0xff] %v582
          %587 = vst [vmem:[#allocation2 + $0x10] sm:$0xff] %v583
          %588 = vst [vmem:[#allocation2 + $0x18] sm:$0xff] %v584
        $region80: #{tpu_custom_call.1} parent=55 // pred_fallthru
          _
        %v589 = vld [vmem:[#allocation2] sm:$0xff]
        %v590 = vld [vmem:[#allocation2 + $0x8] sm:$0xff]
        %v591 = vld [vmem:[#allocation2 + $0x10] sm:$0xff]
        %v592 = vld [vmem:[#allocation2 + $0x18] sm:$0xff]
        %v593 = vld [vmem:[%s463] sm:$0xff]
        %v594 = vld [vmem:[%s463 + $0x8] sm:$0xff]
        %v595 = vld [vmem:[%s463 + $0x10] sm:$0xff]
        %v596 = vld [vmem:[%s463 + $0x18] sm:$0xff]
        %v597 = vld [vmem:[%s463 + $0x20] sm:$0xff]
        %v598 = vld [vmem:[%s463 + $0x28] sm:$0xff]
        %v599 = vld [vmem:[%s463 + $0x30] sm:$0xff]
        %v600 = vld [vmem:[%s463 + $0x38] sm:$0xff]
        %v601 = vld [vmem:[%s463 + $0x40] sm:$0xff]
        %v602 = vld [vmem:[%s463 + $0x48] sm:$0xff]
        %v603 = vld [vmem:[%s463 + $0x50] sm:$0xff]
        %v604 = vld [vmem:[%s463 + $0x58] sm:$0xff]
        %v605 = vld [vmem:[%s463 + $0x60] sm:$0xff]
        %v606 = vld [vmem:[%s463 + $0x68] sm:$0xff]
        %v607 = vld [vmem:[%s463 + $0x70] sm:$0xff]
        %v608 = vld [vmem:[%s463 + $0x78] sm:$0xff]
        %v609 = vld [vmem:[%s463 + $0x80] sm:$0xff]
        %v610 = vld [vmem:[%s463 + $0x88] sm:$0xff]
        %v611 = vld [vmem:[%s463 + $0x90] sm:$0xff]
        %v612 = vld [vmem:[%s463 + $0x98] sm:$0xff]
        %v613 = vld [vmem:[%s463 + $0xa0] sm:$0xff]
        %v614 = vld [vmem:[%s463 + $0xa8] sm:$0xff]
        %v615 = vld [vmem:[%s463 + $0xb0] sm:$0xff]
        %v616 = vld [vmem:[%s463 + $0xb8] sm:$0xff]
        %v617 = vld [vmem:[%s463 + $0xc0] sm:$0xff]
        %v618 = vld [vmem:[%s463 + $0xc8] sm:$0xff]
        %v619 = vld [vmem:[%s463 + $0xd0] sm:$0xff]
        %v620 = vld [vmem:[%s463 + $0xd8] sm:$0xff]
        %v621 = vld [vmem:[%s463 + $0xe0] sm:$0xff]
        %v622 = vld [vmem:[%s463 + $0xe8] sm:$0xff]
        %v623 = vld [vmem:[%s463 + $0xf0] sm:$0xff]
        %v624 = vld [vmem:[%s463 + $0xf8] sm:$0xff]
        %v625 = vld [vmem:[%s463 + $0x100] sm:$0xff]
        %v626 = vld [vmem:[%s463 + $0x108] sm:$0xff]
        %v627 = vld [vmem:[%s463 + $0x110] sm:$0xff]
        %v628 = vld [vmem:[%s463 + $0x118] sm:$0xff]
        %v629 = vld [vmem:[%s463 + $0x120] sm:$0xff]
        %v630 = vld [vmem:[%s463 + $0x128] sm:$0xff]
        %v631 = vld [vmem:[%s463 + $0x130] sm:$0xff]
        %v632 = vld [vmem:[%s463 + $0x138] sm:$0xff]
        %v633 = vld [vmem:[%s463 + $0x140] sm:$0xff]
        %v634 = vld [vmem:[%s463 + $0x148] sm:$0xff]
        %v635 = vld [vmem:[%s463 + $0x150] sm:$0xff]
        %v636 = vld [vmem:[%s463 + $0x158] sm:$0xff]
        %v637 = vld [vmem:[%s463 + $0x160] sm:$0xff]
        %v638 = vld [vmem:[%s463 + $0x168] sm:$0xff]
        %v639 = vld [vmem:[%s463 + $0x170] sm:$0xff]
        %v640 = vld [vmem:[%s463 + $0x178] sm:$0xff]
        %v641 = vld [vmem:[%s561] sm:$0x7]
        %v643 = vlaneseq
        %v644 = vshrl.u32 %v643, 7
        %v645 = vsub.s32 0, %v644
        %v646 = vrot.slane %v641, %v645
        %v647 = vlaneseq
        %v648 = vshrl.u32 %v647, 7
        %v649 = vsub.s32 1, %v648
        %v650 = vrot.slane %v641, %v649
        %v651 = vlaneseq
        %v652 = vshrl.u32 %v651, 7
        %v653 = vsub.s32 2, %v652
        %v654 = vrot.slane %v641, %v653
        %658 = vmatprep.subr.mxu0 %v639
        %659 = vmatpush1.msra.mxu0 %v638
        %660 = vmatprep.subr.mxu0 %v636
        %661 = vmatpush1.msra.mxu0 %v635
        %662 = vmatprep.subr.mxu0 %v633
        %663 = vmatpush1.msra.mxu0 %v632
        %664 = vmatprep.subr.mxu0 %v630
        %665 = vmatpush1.msra.mxu0 %v629
        %666 = vmatprep.subr.mxu0 %v627
        %667 = vmatpush1.msra.mxu0 %v626
        %668 = vmatprep.subr.mxu0 %v624
        %669 = vmatpush1.msra.mxu0 %v623
        %670 = vmatprep.subr.mxu0 %v621
        %671 = vmatpush1.msra.mxu0 %v620
        %672 = vmatprep.subr.mxu0 %v618
        %673 = vmatpush1.msra.mxu0 %v617
        %674 = vmatprep.subr.mxu0 %v615
        %675 = vmatpush1.msra.mxu0 %v614
        %676 = vmatprep.subr.mxu0 %v612
        %677 = vmatpush1.msra.mxu0 %v611
        %678 = vmatprep.subr.mxu0 %v609
        %679 = vmatpush1.msra.mxu0 %v608
        %680 = vmatprep.subr.mxu0 %v606
        %681 = vmatpush1.msra.mxu0 %v605
        %682 = vmatprep.subr.mxu0 %v603
        %683 = vmatpush1.msra.mxu0 %v602
        %684 = vmatprep.subr.mxu0 %v600
        %685 = vmatpush1.msra.mxu0 %v599
        %686 = vmatprep.subr.mxu0 %v597
        %687 = vmatpush1.msra.mxu0 %v596
        %688 = vmatprep.subr.mxu0 %v594
        %689 = vmatpush1.msra.mxu0 %v593
        %690 = vmatprep.subr.mxu0 0.0
        %691 = vmatpush2.msra.mxu0 0.0
        %692 = vmatprep.subr.mxu0 0.0
        %693 = vmatpush2.msra.mxu0 0.0
        %694 = vmatprep.subr.mxu0 0.0
        %695 = vmatpush2.msra.mxu0 0.0
        %696 = vmatprep.subr.mxu0 0.0
        %697 = vmatpush2.msra.mxu0 0.0
        %698 = vmatprep.subr.mxu0 0.0
        %699 = vmatpush2.msra.mxu0 0.0
        %700 = vmatprep.subr.mxu0 0.0
        %701 = vmatpush2.msra.mxu0 0.0
        %702 = vmatprep.subr.mxu0 0.0
        %703 = vmatpush2.msra.mxu0 0.0
        %704 = vmatprep.subr.mxu0 0.0
        %705 = vmatpush2.msra.mxu0 0.0
        %706 = vmatprep.subr.mxu0 0.0
        %707 = vmatpush2.msra.mxu0 0.0
        %708 = vmatprep.subr.mxu0 0.0
        %709 = vmatpush2.msra.mxu0 0.0
        %710 = vmatprep.subr.mxu0 0.0
        %711 = vmatpush2.msra.mxu0 0.0
        %712 = vmatprep.subr.mxu0 0.0
        %713 = vmatpush2.msra.mxu0 0.0
        %714 = vmatprep.subr.mxu0 0.0
        %715 = vmatpush2.msra.mxu0 0.0
        %716 = vmatprep.subr.mxu0 0.0
        %717 = vmatpush2.msra.mxu0 0.0
        %718 = vmatprep.subr.mxu0 0.0
        %719 = vmatpush2.msra.mxu0 0.0
        %720 = vmatprep.subr.mxu0 0.0
        %721 = vmatpush2.msra.mxu0 0.0
        %722 = vmatprep.mubr.f32.mxu0 0.0
        %723 = vmatmul.mubr.f32.gmra.mxu0 %v589
        %v724 = vpop.f32.mrf.mxu0
        %v725 = vadd.f32 %v646, %v724
        %v726 = vpop.f32.mrf.mxu0
        %v727 = vadd.f32 %v650, %v726
        %728 = vmatprep.mubr.f32.mxu0 0.0
        %729 = vmatmul.mubr.f32.gmra.mxu0 %v590
        %v730 = vpop.f32.mrf.mxu0
        %v731 = vadd.f32 %v646, %v730
        %v732 = vpop.f32.mrf.mxu0
        %v733 = vadd.f32 %v650, %v732
        %734 = vmatprep.mubr.f32.mxu0 0.0
        %735 = vmatmul.mubr.f32.gmra.mxu0 %v591
        %v736 = vpop.f32.mrf.mxu0
        %v737 = vadd.f32 %v646, %v736
        %v738 = vpop.f32.mrf.mxu0
        %v739 = vadd.f32 %v650, %v738
        %740 = vmatprep.mubr.f32.mxu0 0.0
        %741 = vmatmul.mubr.f32.gmra.mxu0 %v592
        %v742 = vpop.f32.mrf.mxu0
        %v743 = vadd.f32 %v646, %v742
        %v744 = vpop.f32.mrf.mxu0
        %v745 = vadd.f32 %v650, %v744
        %746 = vdwg.mxu0
        %747 = vmatprep.subr.mxu0 0.0
        %748 = vmatpush1.msra.mxu0 %v640
        %749 = vmatprep.subr.mxu0 0.0
        %750 = vmatpush1.msra.mxu0 %v637
        %751 = vmatprep.subr.mxu0 0.0
        %752 = vmatpush1.msra.mxu0 %v634
        %753 = vmatprep.subr.mxu0 0.0
        %754 = vmatpush1.msra.mxu0 %v631
        %755 = vmatprep.subr.mxu0 0.0
        %756 = vmatpush1.msra.mxu0 %v628
        %757 = vmatprep.subr.mxu0 0.0
        %758 = vmatpush1.msra.mxu0 %v625
        %759 = vmatprep.subr.mxu0 0.0
        %760 = vmatpush1.msra.mxu0 %v622
        %761 = vmatprep.subr.mxu0 0.0
        %762 = vmatpush1.msra.mxu0 %v619
        %763 = vmatprep.subr.mxu0 0.0
        %764 = vmatpush1.msra.mxu0 %v616
        %765 = vmatprep.subr.mxu0 0.0
        %766 = vmatpush1.msra.mxu0 %v613
        %767 = vmatprep.subr.mxu0 0.0
        %768 = vmatpush1.msra.mxu0 %v610
        %769 = vmatprep.subr.mxu0 0.0
        %770 = vmatpush1.msra.mxu0 %v607
        %771 = vmatprep.subr.mxu0 0.0
        %772 = vmatpush1.msra.mxu0 %v604
        %773 = vmatprep.subr.mxu0 0.0
        %774 = vmatpush1.msra.mxu0 %v601
        %775 = vmatprep.subr.mxu0 0.0
        %776 = vmatpush1.msra.mxu0 %v598
        %777 = vmatprep.subr.mxu0 0.0
        %778 = vmatpush1.msra.mxu0 %v595
        %779 = vmatprep.subr.mxu0 0.0
        %780 = vmatpush2.msra.mxu0 0.0
        %781 = vmatprep.subr.mxu0 0.0
        %782 = vmatpush2.msra.mxu0 0.0
        %783 = vmatprep.subr.mxu0 0.0
        %784 = vmatpush2.msra.mxu0 0.0
        %785 = vmatprep.subr.mxu0 0.0
        %786 = vmatpush2.msra.mxu0 0.0
        %787 = vmatprep.subr.mxu0 0.0
        %788 = vmatpush2.msra.mxu0 0.0
        %789 = vmatprep.subr.mxu0 0.0
        %790 = vmatpush2.msra.mxu0 0.0
        %791 = vmatprep.subr.mxu0 0.0
        %792 = vmatpush2.msra.mxu0 0.0
        %793 = vmatprep.subr.mxu0 0.0
        %794 = vmatpush2.msra.mxu0 0.0
        %795 = vmatprep.subr.mxu0 0.0
        %796 = vmatpush2.msra.mxu0 0.0
        %797 = vmatprep.subr.mxu0 0.0
        %798 = vmatpush2.msra.mxu0 0.0
        %799 = vmatprep.subr.mxu0 0.0
        %800 = vmatpush2.msra.mxu0 0.0
        %801 = vmatprep.subr.mxu0 0.0
        %802 = vmatpush2.msra.mxu0 0.0
        %803 = vmatprep.subr.mxu0 0.0
        %804 = vmatpush2.msra.mxu0 0.0
        %805 = vmatprep.subr.mxu0 0.0
        %806 = vmatpush2.msra.mxu0 0.0
        %807 = vmatprep.subr.mxu0 0.0
        %808 = vmatpush2.msra.mxu0 0.0
        %809 = vmatprep.subr.mxu0 0.0
        %810 = vmatpush2.msra.mxu0 0.0
        %811 = vmatprep.mubr.f32.mxu0 0.0
        %812 = vmatmul.mubr.f32.gmra.mxu0 %v589
        %v813 = vpop.f32.mrf.mxu0
        %v814 = vadd.f32 %v654, %v813
        %v815 = vpop.f32.mrf.mxu0
        %816 = vmatprep.mubr.f32.mxu0 0.0
        %817 = vmatmul.mubr.f32.gmra.mxu0 %v590
        %v818 = vpop.f32.mrf.mxu0
        %v819 = vadd.f32 %v654, %v818
        %v820 = vpop.f32.mrf.mxu0
        %821 = vmatprep.mubr.f32.mxu0 0.0
        %822 = vmatmul.mubr.f32.gmra.mxu0 %v591
        %v823 = vpop.f32.mrf.mxu0
        %v824 = vadd.f32 %v654, %v823
        %v825 = vpop.f32.mrf.mxu0
        %826 = vmatprep.mubr.f32.mxu0 0.0
        %827 = vmatmul.mubr.f32.gmra.mxu0 %v592
        %v828 = vpop.f32.mrf.mxu0
        %v829 = vadd.f32 %v654, %v828
        %v830 = vpop.f32.mrf.mxu0
        %831 = vdwg.mxu0
        %vm832 = vcmask 261120
        %v834 = vsel %vm832, %v725, 0
        %v837 = vsel %vm832, %v731, 0
        %v840 = vsel %vm832, %v727, 0
        %v843 = vsel %vm832, %v733, 0
        %845 = vmatprep.subr.mxu0 0.0
        %846 = vmatpush1.xpose.msra.mxu0 0.0
        %847 = vmatprep.subr.mxu0 0.0
        %848 = vmatpush1.xpose.msra.mxu0 0.0
        %849 = vmatprep.subr.mxu0 0.0
        %850 = vmatpush1.xpose.msra.mxu0 0.0
        %851 = vmatprep.subr.mxu0 0.0
        %852 = vmatpush1.xpose.msra.mxu0 0.0
        %853 = vmatprep.subr.mxu0 0.0
        %854 = vmatpush1.xpose.msra.mxu0 0.0
        %855 = vmatprep.subr.mxu0 0.0
        %856 = vmatpush1.xpose.msra.mxu0 0.0
        %857 = vmatprep.subr.mxu0 0.0
        %858 = vmatpush1.xpose.msra.mxu0 0.0
        %859 = vmatprep.subr.mxu0 0.0
        %860 = vmatpush1.xpose.msra.mxu0 0.0
        %861 = vmatprep.subr.mxu0 0.0
        %862 = vmatpush1.xpose.msra.mxu0 0.0
        %863 = vmatprep.subr.mxu0 0.0
        %864 = vmatpush1.xpose.msra.mxu0 0.0
        %865 = vmatprep.subr.mxu0 0.0
        %866 = vmatpush1.xpose.msra.mxu0 0.0
        %867 = vmatprep.subr.mxu0 0.0
        %868 = vmatpush1.xpose.msra.mxu0 0.0
        %869 = vmatprep.subr.mxu0 0.0
        %870 = vmatpush1.xpose.msra.mxu0 0.0
        %871 = vmatprep.subr.mxu0 0.0
        %872 = vmatpush1.xpose.msra.mxu0 0.0
        %873 = vmatprep.subr.mxu0 0.0
        %874 = vmatpush1.xpose.msra.mxu0 %v843
        %875 = vmatprep.subr.mxu0 0.0
        %876 = vmatpush1.xpose.msra.mxu0 %v840
        %877 = vmatprep.subr.mxu0 0.0
        %878 = vmatpush2.xpose.msra.mxu0 0.0
        %879 = vmatprep.subr.mxu0 0.0
        %880 = vmatpush2.xpose.msra.mxu0 0.0
        %881 = vmatprep.subr.mxu0 0.0
        %882 = vmatpush2.xpose.msra.mxu0 0.0
        %883 = vmatprep.subr.mxu0 0.0
        %884 = vmatpush2.xpose.msra.mxu0 0.0
        %885 = vmatprep.subr.mxu0 0.0
        %886 = vmatpush2.xpose.msra.mxu0 0.0
        %887 = vmatprep.subr.mxu0 0.0
        %888 = vmatpush2.xpose.msra.mxu0 0.0
        %889 = vmatprep.subr.mxu0 0.0
        %890 = vmatpush2.xpose.msra.mxu0 0.0
        %891 = vmatprep.subr.mxu0 0.0
        %892 = vmatpush2.xpose.msra.mxu0 0.0
        %893 = vmatprep.subr.mxu0 0.0
        %894 = vmatpush2.xpose.msra.mxu0 0.0
        %895 = vmatprep.subr.mxu0 0.0
        %896 = vmatpush2.xpose.msra.mxu0 0.0
        %897 = vmatprep.subr.mxu0 0.0
        %898 = vmatpush2.xpose.msra.mxu0 0.0
        %899 = vmatprep.subr.mxu0 0.0
        %900 = vmatpush2.xpose.msra.mxu0 0.0
        %901 = vmatprep.subr.mxu0 0.0
        %902 = vmatpush2.xpose.msra.mxu0 0.0
        %903 = vmatprep.subr.mxu0 0.0
        %904 = vmatpush2.xpose.msra.mxu0 0.0
        %905 = vmatprep.subr.mxu0 0.0
        %906 = vmatpush2.xpose.msra.mxu0 0.0
        %907 = vmatprep.subr.mxu0 0.0
        %908 = vmatpush2.xpose.msra.mxu0 0.0
        %909 = vmatprep.mubr.f32.mxu0 0.0
        %910 = vmatmul.mubr.f32.gmra.mxu0 %v834
        %v911 = vpop.f32.mrf.mxu0
        %v912 = vadd.f32 0.0, %v911
        %v913 = vpop.f32.mrf.mxu0
        %914 = vmatprep.mubr.f32.mxu0 0.0
        %915 = vmatmul.mubr.f32.gmra.mxu0 %v837
        %v916 = vpop.f32.mrf.mxu0
        %v917 = vadd.f32 0.0, %v916
        %v918 = vpop.f32.mrf.mxu0
        %919 = vdwg.mxu0
        %v921 = vsel %vm832, %v737, 0
        %v924 = vsel %vm832, %v743, 0
        %v927 = vsel %vm832, %v739, 0
        %v930 = vsel %vm832, %v745, 0
        %932 = vmatprep.subr.mxu0 0.0
        %933 = vmatpush1.xpose.msra.mxu0 0.0
        %934 = vmatprep.subr.mxu0 0.0
        %935 = vmatpush1.xpose.msra.mxu0 0.0
        %936 = vmatprep.subr.mxu0 0.0
        %937 = vmatpush1.xpose.msra.mxu0 0.0
        %938 = vmatprep.subr.mxu0 0.0
        %939 = vmatpush1.xpose.msra.mxu0 0.0
        %940 = vmatprep.subr.mxu0 0.0
        %941 = vmatpush1.xpose.msra.mxu0 0.0
        %942 = vmatprep.subr.mxu0 0.0
        %943 = vmatpush1.xpose.msra.mxu0 0.0
        %944 = vmatprep.subr.mxu0 0.0
        %945 = vmatpush1.xpose.msra.mxu0 0.0
        %946 = vmatprep.subr.mxu0 0.0
        %947 = vmatpush1.xpose.msra.mxu0 0.0
        %948 = vmatprep.subr.mxu0 0.0
        %949 = vmatpush1.xpose.msra.mxu0 0.0
        %950 = vmatprep.subr.mxu0 0.0
        %951 = vmatpush1.xpose.msra.mxu0 0.0
        %952 = vmatprep.subr.mxu0 0.0
        %953 = vmatpush1.xpose.msra.mxu0 0.0
        %954 = vmatprep.subr.mxu0 0.0
        %955 = vmatpush1.xpose.msra.mxu0 0.0
        %956 = vmatprep.subr.mxu0 0.0
        %957 = vmatpush1.xpose.msra.mxu0 0.0
        %958 = vmatprep.subr.mxu0 0.0
        %959 = vmatpush1.xpose.msra.mxu0 0.0
        %960 = vmatprep.subr.mxu0 0.0
        %961 = vmatpush1.xpose.msra.mxu0 %v930
        %962 = vmatprep.subr.mxu0 0.0
        %963 = vmatpush1.xpose.msra.mxu0 %v927
        %964 = vmatprep.subr.mxu0 0.0
        %965 = vmatpush2.xpose.msra.mxu0 0.0
        %966 = vmatprep.subr.mxu0 0.0
        %967 = vmatpush2.xpose.msra.mxu0 0.0
        %968 = vmatprep.subr.mxu0 0.0
        %969 = vmatpush2.xpose.msra.mxu0 0.0
        %970 = vmatprep.subr.mxu0 0.0
        %971 = vmatpush2.xpose.msra.mxu0 0.0
        %972 = vmatprep.subr.mxu0 0.0
        %973 = vmatpush2.xpose.msra.mxu0 0.0
        %974 = vmatprep.subr.mxu0 0.0
        %975 = vmatpush2.xpose.msra.mxu0 0.0
        %976 = vmatprep.subr.mxu0 0.0
        %977 = vmatpush2.xpose.msra.mxu0 0.0
        %978 = vmatprep.subr.mxu0 0.0
        %979 = vmatpush2.xpose.msra.mxu0 0.0
        %980 = vmatprep.subr.mxu0 0.0
        %981 = vmatpush2.xpose.msra.mxu0 0.0
        %982 = vmatprep.subr.mxu0 0.0
        %983 = vmatpush2.xpose.msra.mxu0 0.0
        %984 = vmatprep.subr.mxu0 0.0
        %985 = vmatpush2.xpose.msra.mxu0 0.0
        %986 = vmatprep.subr.mxu0 0.0
        %987 = vmatpush2.xpose.msra.mxu0 0.0
        %988 = vmatprep.subr.mxu0 0.0
        %989 = vmatpush2.xpose.msra.mxu0 0.0
        %990 = vmatprep.subr.mxu0 0.0
        %991 = vmatpush2.xpose.msra.mxu0 0.0
        %992 = vmatprep.subr.mxu0 0.0
        %993 = vmatpush2.xpose.msra.mxu0 0.0
        %994 = vmatprep.subr.mxu0 0.0
        %995 = vmatpush2.xpose.msra.mxu0 0.0
        %996 = vmatprep.mubr.f32.mxu0 0.0
        %997 = vmatmul.mubr.f32.gmra.mxu0 %v921
        %v998 = vpop.f32.mrf.mxu0
        %v999 = vadd.f32 0.0, %v998
        %v1000 = vpop.f32.mrf.mxu0
        %1001 = vmatprep.mubr.f32.mxu0 0.0
        %1002 = vmatmul.mubr.f32.gmra.mxu0 %v924
        %v1003 = vpop.f32.mrf.mxu0
        %v1004 = vadd.f32 0.0, %v1003
        %v1005 = vpop.f32.mrf.mxu0
        %1006 = vdwg.mxu0
        %vm1007 = vcmask 130048
        %v1008 = vsel %vm1007, %v912, -inf
        %1009 = vmax.xlane.f32.xlu0 %v1008
        %v1010 = vpop.xlane.xlu0 %1009
        %v1011 = vsel %vm1007, %v917, -inf
        %1012 = vmax.xlane.f32.xlu0 %v1011
        %v1013 = vpop.xlane.xlu0 %1012
        %v1014 = vsel %vm1007, %v999, -inf
        %1015 = vmax.xlane.f32.xlu0 %v1014
        %v1016 = vpop.xlane.xlu0 %1015
        %v1017 = vsel %vm1007, %v1004, -inf
        %1018 = vmax.xlane.f32.xlu0 %v1017
        %v1019 = vpop.xlane.xlu0 %1018
        %v1020 = vsub.f32 %v912, %v1010
        %v1021 = vsub.f32 %v917, %v1013
        %v1022 = vsub.f32 %v999, %v1016
        %v1023 = vsub.f32 %v1004, %v1019
        %v1024 = vmul.f32 %v1020, 1.442695
        %v1025 = vpow.pop %v1024
        %v1026 = vmul.f32 %v1021, 1.442695
        %v1027 = vpow.pop %v1026
        %v1028 = vmul.f32 %v1022, 1.442695
        %v1029 = vpow.pop %v1028
        %v1030 = vmul.f32 %v1023, 1.442695
        %v1031 = vpow.pop %v1030
        %v1032 = vsel %vm1007, %v1025, 0.0
        %1033 = vadd.xlane.f32.xlu0 %v1032
        %v1034 = vpop.xlane.xlu0 %1033
        %v1035 = vsel %vm1007, %v1027, 0.0
        %1036 = vadd.xlane.f32.xlu0 %v1035
        %v1037 = vpop.xlane.xlu0 %1036
        %v1038 = vsel %vm1007, %v1029, 0.0
        %1039 = vadd.xlane.f32.xlu0 %v1038
        %v1040 = vpop.xlane.xlu0 %1039
        %v1041 = vsel %vm1007, %v1031, 0.0
        %1042 = vadd.xlane.f32.xlu0 %v1041
        %v1043 = vpop.xlane.xlu0 %1042
        %v1044 = vrcp.pop %v1034
        %v1045 = vmul.f32 %v1025, %v1044
        %v1046 = vrcp.pop %v1037
        %v1047 = vmul.f32 %v1027, %v1046
        %v1048 = vrcp.pop %v1040
        %v1049 = vmul.f32 %v1029, %v1048
        %v1050 = vrcp.pop %v1043
        %v1051 = vmul.f32 %v1031, %v1050
        %v1053 = vsel %vm1007, %v1045, 0
        %v1056 = vsel %vm1007, %v1047, 0
        %1058 = vmatprep.subr.mxu0 0.0
        %1059 = vmatpush1.msra.mxu0 0.0
        %1060 = vmatprep.subr.mxu0 0.0
        %1061 = vmatpush1.msra.mxu0 0.0
        %1062 = vmatprep.subr.mxu0 0.0
        %1063 = vmatpush1.msra.mxu0 0.0
        %1064 = vmatprep.subr.mxu0 0.0
        %1065 = vmatpush1.msra.mxu0 0.0
        %1066 = vmatprep.subr.mxu0 0.0
        %1067 = vmatpush1.msra.mxu0 0.0
        %1068 = vmatprep.subr.mxu0 0.0
        %1069 = vmatpush1.msra.mxu0 0.0
        %1070 = vmatprep.subr.mxu0 0.0
        %1071 = vmatpush1.msra.mxu0 0.0
        %1072 = vmatprep.subr.mxu0 0.0
        %1073 = vmatpush1.msra.mxu0 0.0
        %1074 = vmatprep.subr.mxu0 0.0
        %1075 = vmatpush1.msra.mxu0 0.0
        %1076 = vmatprep.subr.mxu0 0.0
        %1077 = vmatpush1.msra.mxu0 0.0
        %1078 = vmatprep.subr.mxu0 0.0
        %1079 = vmatpush1.msra.mxu0 0.0
        %1080 = vmatprep.subr.mxu0 0.0
        %1081 = vmatpush1.msra.mxu0 0.0
        %1082 = vmatprep.subr.mxu0 0.0
        %1083 = vmatpush1.msra.mxu0 0.0
        %1084 = vmatprep.subr.mxu0 0.0
        %1085 = vmatpush1.msra.mxu0 0.0
        %1086 = vmatprep.subr.mxu0 0.0
        %1087 = vmatpush1.msra.mxu0 %v819
        %1088 = vmatprep.subr.mxu0 0.0
        %1089 = vmatpush1.msra.mxu0 %v814
        %1090 = vmatprep.subr.mxu0 0.0
        %1091 = vmatpush2.msra.mxu0 0.0
        %1092 = vmatprep.subr.mxu0 0.0
        %1093 = vmatpush2.msra.mxu0 0.0
        %1094 = vmatprep.subr.mxu0 0.0
        %1095 = vmatpush2.msra.mxu0 0.0
        %1096 = vmatprep.subr.mxu0 0.0
        %1097 = vmatpush2.msra.mxu0 0.0
        %1098 = vmatprep.subr.mxu0 0.0
        %1099 = vmatpush2.msra.mxu0 0.0
        %1100 = vmatprep.subr.mxu0 0.0
        %1101 = vmatpush2.msra.mxu0 0.0
        %1102 = vmatprep.subr.mxu0 0.0
        %1103 = vmatpush2.msra.mxu0 0.0
        %1104 = vmatprep.subr.mxu0 0.0
        %1105 = vmatpush2.msra.mxu0 0.0
        %1106 = vmatprep.subr.mxu0 0.0
        %1107 = vmatpush2.msra.mxu0 0.0
        %1108 = vmatprep.subr.mxu0 0.0
        %1109 = vmatpush2.msra.mxu0 0.0
        %1110 = vmatprep.subr.mxu0 0.0
        %1111 = vmatpush2.msra.mxu0 0.0
        %1112 = vmatprep.subr.mxu0 0.0
        %1113 = vmatpush2.msra.mxu0 0.0
        %1114 = vmatprep.subr.mxu0 0.0
        %1115 = vmatpush2.msra.mxu0 0.0
        %1116 = vmatprep.subr.mxu0 0.0
        %1117 = vmatpush2.msra.mxu0 0.0
        %1118 = vmatprep.subr.mxu0 0.0
        %1119 = vmatpush2.msra.mxu0 0.0
        %1120 = vmatprep.subr.mxu0 0.0
        %1121 = vmatpush2.msra.mxu0 0.0
        %1122 = vmatprep.mubr.f32.mxu0 0.0
        %1123 = vmatmul.mubr.f32.gmra.mxu0 %v1053
        %v1124 = vpop.f32.mrf.mxu0
        %v1125 = vadd.f32 0.0, %v1124
        %v1126 = vpop.f32.mrf.mxu0
        %1127 = vmatprep.mubr.f32.mxu0 0.0
        %1128 = vmatmul.mubr.f32.gmra.mxu0 %v1056
        %v1129 = vpop.f32.mrf.mxu0
        %v1130 = vadd.f32 0.0, %v1129
        %v1131 = vpop.f32.mrf.mxu0
        %1132 = vdwg.mxu0
        %v1134 = vsel %vm1007, %v1049, 0
        %v1137 = vsel %vm1007, %v1051, 0
        %1139 = vmatprep.subr.mxu0 0.0
        %1140 = vmatpush1.msra.mxu0 0.0
        %1141 = vmatprep.subr.mxu0 0.0
        %1142 = vmatpush1.msra.mxu0 0.0
        %1143 = vmatprep.subr.mxu0 0.0
        %1144 = vmatpush1.msra.mxu0 0.0
        %1145 = vmatprep.subr.mxu0 0.0
        %1146 = vmatpush1.msra.mxu0 0.0
        %1147 = vmatprep.subr.mxu0 0.0
        %1148 = vmatpush1.msra.mxu0 0.0
        %1149 = vmatprep.subr.mxu0 0.0
        %1150 = vmatpush1.msra.mxu0 0.0
        %1151 = vmatprep.subr.mxu0 0.0
        %1152 = vmatpush1.msra.mxu0 0.0
        %1153 = vmatprep.subr.mxu0 0.0
        %1154 = vmatpush1.msra.mxu0 0.0
        %1155 = vmatprep.subr.mxu0 0.0
        %1156 = vmatpush1.msra.mxu0 0.0
        %1157 = vmatprep.subr.mxu0 0.0
        %1158 = vmatpush1.msra.mxu0 0.0
        %1159 = vmatprep.subr.mxu0 0.0
        %1160 = vmatpush1.msra.mxu0 0.0
        %1161 = vmatprep.subr.mxu0 0.0
        %1162 = vmatpush1.msra.mxu0 0.0
        %1163 = vmatprep.subr.mxu0 0.0
        %1164 = vmatpush1.msra.mxu0 0.0
        %1165 = vmatprep.subr.mxu0 0.0
        %1166 = vmatpush1.msra.mxu0 0.0
        %1167 = vmatprep.subr.mxu0 0.0
        %1168 = vmatpush1.msra.mxu0 %v829
        %1169 = vmatprep.subr.mxu0 0.0
        %1170 = vmatpush1.msra.mxu0 %v824
        %1171 = vmatprep.subr.mxu0 0.0
        %1172 = vmatpush2.msra.mxu0 0.0
        %1173 = vmatprep.subr.mxu0 0.0
        %1174 = vmatpush2.msra.mxu0 0.0
        %1175 = vmatprep.subr.mxu0 0.0
        %1176 = vmatpush2.msra.mxu0 0.0
        %1177 = vmatprep.subr.mxu0 0.0
        %1178 = vmatpush2.msra.mxu0 0.0
        %1179 = vmatprep.subr.mxu0 0.0
        %1180 = vmatpush2.msra.mxu0 0.0
        %1181 = vmatprep.subr.mxu0 0.0
        %1182 = vmatpush2.msra.mxu0 0.0
        %1183 = vmatprep.subr.mxu0 0.0
        %1184 = vmatpush2.msra.mxu0 0.0
        %1185 = vmatprep.subr.mxu0 0.0
        %1186 = vmatpush2.msra.mxu0 0.0
        %1187 = vmatprep.subr.mxu0 0.0
        %1188 = vmatpush2.msra.mxu0 0.0
        %1189 = vmatprep.subr.mxu0 0.0
        %1190 = vmatpush2.msra.mxu0 0.0
        %1191 = vmatprep.subr.mxu0 0.0
        %1192 = vmatpush2.msra.mxu0 0.0
        %1193 = vmatprep.subr.mxu0 0.0
        %1194 = vmatpush2.msra.mxu0 0.0
        %1195 = vmatprep.subr.mxu0 0.0
        %1196 = vmatpush2.msra.mxu0 0.0
        %1197 = vmatprep.subr.mxu0 0.0
        %1198 = vmatpush2.msra.mxu0 0.0
        %1199 = vmatprep.subr.mxu0 0.0
        %1200 = vmatpush2.msra.mxu0 0.0
        %1201 = vmatprep.subr.mxu0 0.0
        %1202 = vmatpush2.msra.mxu0 0.0
        %1203 = vmatprep.mubr.f32.mxu0 0.0
        %1204 = vmatmul.mubr.f32.gmra.mxu0 %v1134
        %v1205 = vpop.f32.mrf.mxu0
        %v1206 = vadd.f32 0.0, %v1205
        %v1207 = vpop.f32.mrf.mxu0
        %1208 = vmatprep.mubr.f32.mxu0 0.0
        %1209 = vmatmul.mubr.f32.gmra.mxu0 %v1137
        %v1210 = vpop.f32.mrf.mxu0
        %v1211 = vadd.f32 0.0, %v1210
        %v1212 = vpop.f32.mrf.mxu0
        %1213 = vdwg.mxu0
        %1214 = vrot.lane.b32.xlu0 %v725, 96
        %v1215 = vpop.permute.xlu0 %1214
        %1216 = vrot.lane.b32.xlu0 %v731, 96
        %v1217 = vpop.permute.xlu0 %1216
        %1218 = vrot.lane.b32.xlu0 %v727, 96
        %v1219 = vpop.permute.xlu0 %1218
        %1220 = vrot.lane.b32.xlu0 %v733, 96
        %v1221 = vpop.permute.xlu0 %1220
        %v1222 = vsel %vm832, %v1215, 0
        %v1224 = vsel %vm832, %v1217, 0
        %v1226 = vsel %vm832, %v1219, 0
        %v1228 = vsel %vm832, %v1221, 0
        %1230 = vmatprep.subr.mxu0 0.0
        %1231 = vmatpush1.xpose.msra.mxu0 0.0
        %1232 = vmatprep.subr.mxu0 0.0
        %1233 = vmatpush1.xpose.msra.mxu0 0.0
        %1234 = vmatprep.subr.mxu0 0.0
        %1235 = vmatpush1.xpose.msra.mxu0 0.0
        %1236 = vmatprep.subr.mxu0 0.0
        %1237 = vmatpush1.xpose.msra.mxu0 0.0
        %1238 = vmatprep.subr.mxu0 0.0
        %1239 = vmatpush1.xpose.msra.mxu0 0.0
        %1240 = vmatprep.subr.mxu0 0.0
        %1241 = vmatpush1.xpose.msra.mxu0 0.0
        %1242 = vmatprep.subr.mxu0 0.0
        %1243 = vmatpush1.xpose.msra.mxu0 0.0
        %1244 = vmatprep.subr.mxu0 0.0
        %1245 = vmatpush1.xpose.msra.mxu0 0.0
        %1246 = vmatprep.subr.mxu0 0.0
        %1247 = vmatpush1.xpose.msra.mxu0 0.0
        %1248 = vmatprep.subr.mxu0 0.0
        %1249 = vmatpush1.xpose.msra.mxu0 0.0
        %1250 = vmatprep.subr.mxu0 0.0
        %1251 = vmatpush1.xpose.msra.mxu0 0.0
        %1252 = vmatprep.subr.mxu0 0.0
        %1253 = vmatpush1.xpose.msra.mxu0 0.0
        %1254 = vmatprep.subr.mxu0 0.0
        %1255 = vmatpush1.xpose.msra.mxu0 0.0
        %1256 = vmatprep.subr.mxu0 0.0
        %1257 = vmatpush1.xpose.msra.mxu0 0.0
        %1258 = vmatprep.subr.mxu0 0.0
        %1259 = vmatpush1.xpose.msra.mxu0 %v1228
        %1260 = vmatprep.subr.mxu0 0.0
        %1261 = vmatpush1.xpose.msra.mxu0 %v1226
        %1262 = vmatprep.subr.mxu0 0.0
        %1263 = vmatpush2.xpose.msra.mxu0 0.0
        %1264 = vmatprep.subr.mxu0 0.0
        %1265 = vmatpush2.xpose.msra.mxu0 0.0
        %1266 = vmatprep.subr.mxu0 0.0
        %1267 = vmatpush2.xpose.msra.mxu0 0.0
        %1268 = vmatprep.subr.mxu0 0.0
        %1269 = vmatpush2.xpose.msra.mxu0 0.0
        %1270 = vmatprep.subr.mxu0 0.0
        %1271 = vmatpush2.xpose.msra.mxu0 0.0
        %1272 = vmatprep.subr.mxu0 0.0
        %1273 = vmatpush2.xpose.msra.mxu0 0.0
        %1274 = vmatprep.subr.mxu0 0.0
        %1275 = vmatpush2.xpose.msra.mxu0 0.0
        %1276 = vmatprep.subr.mxu0 0.0
        %1277 = vmatpush2.xpose.msra.mxu0 0.0
        %1278 = vmatprep.subr.mxu0 0.0
        %1279 = vmatpush2.xpose.msra.mxu0 0.0
        %1280 = vmatprep.subr.mxu0 0.0
        %1281 = vmatpush2.xpose.msra.mxu0 0.0
        %1282 = vmatprep.subr.mxu0 0.0
        %1283 = vmatpush2.xpose.msra.mxu0 0.0
        %1284 = vmatprep.subr.mxu0 0.0
        %1285 = vmatpush2.xpose.msra.mxu0 0.0
        %1286 = vmatprep.subr.mxu0 0.0
        %1287 = vmatpush2.xpose.msra.mxu0 0.0
        %1288 = vmatprep.subr.mxu0 0.0
        %1289 = vmatpush2.xpose.msra.mxu0 0.0
        %1290 = vmatprep.subr.mxu0 0.0
        %1291 = vmatpush2.xpose.msra.mxu0 0.0
        %1292 = vmatprep.subr.mxu0 0.0
        %1293 = vmatpush2.xpose.msra.mxu0 0.0
        %1294 = vmatprep.mubr.f32.mxu0 0.0
        %1295 = vmatmul.mubr.f32.gmra.mxu0 %v1222
        %v1296 = vpop.f32.mrf.mxu0
        %v1297 = vadd.f32 0.0, %v1296
        %v1298 = vpop.f32.mrf.mxu0
        %1299 = vmatprep.mubr.f32.mxu0 0.0
        %1300 = vmatmul.mubr.f32.gmra.mxu0 %v1224
        %v1301 = vpop.f32.mrf.mxu0
        %v1302 = vadd.f32 0.0, %v1301
        %v1303 = vpop.f32.mrf.mxu0
        %1304 = vdwg.mxu0
        %1305 = vrot.lane.b32.xlu0 %v737, 96
        %v1306 = vpop.permute.xlu0 %1305
        %1307 = vrot.lane.b32.xlu0 %v743, 96
        %v1308 = vpop.permute.xlu0 %1307
        %1309 = vrot.lane.b32.xlu0 %v739, 96
        %v1310 = vpop.permute.xlu0 %1309
        %1311 = vrot.lane.b32.xlu0 %v745, 96
        %v1312 = vpop.permute.xlu0 %1311
        %v1313 = vsel %vm832, %v1306, 0
        %v1315 = vsel %vm832, %v1308, 0
        %v1317 = vsel %vm832, %v1310, 0
        %v1319 = vsel %vm832, %v1312, 0
        %1321 = vmatprep.subr.mxu0 0.0
        %1322 = vmatpush1.xpose.msra.mxu0 0.0
        %1323 = vmatprep.subr.mxu0 0.0
        %1324 = vmatpush1.xpose.msra.mxu0 0.0
        %1325 = vmatprep.subr.mxu0 0.0
        %1326 = vmatpush1.xpose.msra.mxu0 0.0
        %1327 = vmatprep.subr.mxu0 0.0
        %1328 = vmatpush1.xpose.msra.mxu0 0.0
        %1329 = vmatprep.subr.mxu0 0.0
        %1330 = vmatpush1.xpose.msra.mxu0 0.0
        %1331 = vmatprep.subr.mxu0 0.0
        %1332 = vmatpush1.xpose.msra.mxu0 0.0
        %1333 = vmatprep.subr.mxu0 0.0
        %1334 = vmatpush1.xpose.msra.mxu0 0.0
        %1335 = vmatprep.subr.mxu0 0.0
        %1336 = vmatpush1.xpose.msra.mxu0 0.0
        %1337 = vmatprep.subr.mxu0 0.0
        %1338 = vmatpush1.xpose.msra.mxu0 0.0
        %1339 = vmatprep.subr.mxu0 0.0
        %1340 = vmatpush1.xpose.msra.mxu0 0.0
        %1341 = vmatprep.subr.mxu0 0.0
        %1342 = vmatpush1.xpose.msra.mxu0 0.0
        %1343 = vmatprep.subr.mxu0 0.0
        %1344 = vmatpush1.xpose.msra.mxu0 0.0
        %1345 = vmatprep.subr.mxu0 0.0
        %1346 = vmatpush1.xpose.msra.mxu0 0.0
        %1347 = vmatprep.subr.mxu0 0.0
        %1348 = vmatpush1.xpose.msra.mxu0 0.0
        %1349 = vmatprep.subr.mxu0 0.0
        %1350 = vmatpush1.xpose.msra.mxu0 %v1319
        %1351 = vmatprep.subr.mxu0 0.0
        %1352 = vmatpush1.xpose.msra.mxu0 %v1317
        %1353 = vmatprep.subr.mxu0 0.0
        %1354 = vmatpush2.xpose.msra.mxu0 0.0
        %1355 = vmatprep.subr.mxu0 0.0
        %1356 = vmatpush2.xpose.msra.mxu0 0.0
        %1357 = vmatprep.subr.mxu0 0.0
        %1358 = vmatpush2.xpose.msra.mxu0 0.0
        %1359 = vmatprep.subr.mxu0 0.0
        %1360 = vmatpush2.xpose.msra.mxu0 0.0
        %1361 = vmatprep.subr.mxu0 0.0
        %1362 = vmatpush2.xpose.msra.mxu0 0.0
        %1363 = vmatprep.subr.mxu0 0.0
        %1364 = vmatpush2.xpose.msra.mxu0 0.0
        %1365 = vmatprep.subr.mxu0 0.0
        %1366 = vmatpush2.xpose.msra.mxu0 0.0
        %1367 = vmatprep.subr.mxu0 0.0
        %1368 = vmatpush2.xpose.msra.mxu0 0.0
        %1369 = vmatprep.subr.mxu0 0.0
        %1370 = vmatpush2.xpose.msra.mxu0 0.0
        %1371 = vmatprep.subr.mxu0 0.0
        %1372 = vmatpush2.xpose.msra.mxu0 0.0
        %1373 = vmatprep.subr.mxu0 0.0
        %1374 = vmatpush2.xpose.msra.mxu0 0.0
        %1375 = vmatprep.subr.mxu0 0.0
        %1376 = vmatpush2.xpose.msra.mxu0 0.0
        %1377 = vmatprep.subr.mxu0 0.0
        %1378 = vmatpush2.xpose.msra.mxu0 0.0
        %1379 = vmatprep.subr.mxu0 0.0
        %1380 = vmatpush2.xpose.msra.mxu0 0.0
        %1381 = vmatprep.subr.mxu0 0.0
        %1382 = vmatpush2.xpose.msra.mxu0 0.0
        %1383 = vmatprep.subr.mxu0 0.0
        %1384 = vmatpush2.xpose.msra.mxu0 0.0
        %1385 = vmatprep.mubr.f32.mxu0 0.0
        %1386 = vmatmul.mubr.f32.gmra.mxu0 %v1313
        %v1387 = vpop.f32.mrf.mxu0
        %v1388 = vadd.f32 0.0, %v1387
        %v1389 = vpop.f32.mrf.mxu0
        %1390 = vmatprep.mubr.f32.mxu0 0.0
        %1391 = vmatmul.mubr.f32.gmra.mxu0 %v1315
        %v1392 = vpop.f32.mrf.mxu0
        %v1393 = vadd.f32 0.0, %v1392
        %v1394 = vpop.f32.mrf.mxu0
        %1395 = vdwg.mxu0
        %v1396 = vsel %vm1007, %v1297, -inf
        %1397 = vmax.xlane.f32.xlu0 %v1396
        %v1398 = vpop.xlane.xlu0 %1397
        %v1399 = vsel %vm1007, %v1302, -inf
        %1400 = vmax.xlane.f32.xlu0 %v1399
        %v1401 = vpop.xlane.xlu0 %1400
        %v1402 = vsel %vm1007, %v1388, -inf
        %1403 = vmax.xlane.f32.xlu0 %v1402
        %v1404 = vpop.xlane.xlu0 %1403
        %v1405 = vsel %vm1007, %v1393, -inf
        %1406 = vmax.xlane.f32.xlu0 %v1405
        %v1407 = vpop.xlane.xlu0 %1406
        %v1408 = vsub.f32 %v1297, %v1398
        %v1409 = vsub.f32 %v1302, %v1401
        %v1410 = vsub.f32 %v1388, %v1404
        %v1411 = vsub.f32 %v1393, %v1407
        %v1412 = vmul.f32 %v1408, 1.442695
        %v1413 = vpow.pop %v1412
        %v1414 = vmul.f32 %v1409, 1.442695
        %v1415 = vpow.pop %v1414
        %v1416 = vmul.f32 %v1410, 1.442695
        %v1417 = vpow.pop %v1416
        %v1418 = vmul.f32 %v1411, 1.442695
        %v1419 = vpow.pop %v1418
        %v1420 = vsel %vm1007, %v1413, 0.0
        %1421 = vadd.xlane.f32.xlu0 %v1420
        %v1422 = vpop.xlane.xlu0 %1421
        %v1423 = vsel %vm1007, %v1415, 0.0
        %1424 = vadd.xlane.f32.xlu0 %v1423
        %v1425 = vpop.xlane.xlu0 %1424
        %v1426 = vsel %vm1007, %v1417, 0.0
        %1427 = vadd.xlane.f32.xlu0 %v1426
        %v1428 = vpop.xlane.xlu0 %1427
        %v1429 = vsel %vm1007, %v1419, 0.0
        %1430 = vadd.xlane.f32.xlu0 %v1429
        %v1431 = vpop.xlane.xlu0 %1430
        %v1432 = vrcp.pop %v1422
        %v1433 = vmul.f32 %v1413, %v1432
        %v1434 = vrcp.pop %v1425
        %v1435 = vmul.f32 %v1415, %v1434
        %v1436 = vrcp.pop %v1428
        %v1437 = vmul.f32 %v1417, %v1436
        %v1438 = vrcp.pop %v1431
        %v1439 = vmul.f32 %v1419, %v1438
        %1442 = vrot.lane.b32.xlu0 %v814, 96
        %v1443 = vpop.permute.xlu0 %1442
        %1444 = vrot.lane.b32.xlu0 %v819, 96
        %v1445 = vpop.permute.xlu0 %1444
        %v1449 = vsel %vm1007, %v1433, 0
        %v1452 = vsel %vm1007, %v1435, 0
        %1454 = vmatprep.subr.mxu0 0.0
        %1455 = vmatpush1.msra.mxu0 0.0
        %1456 = vmatprep.subr.mxu0 0.0
        %1457 = vmatpush1.msra.mxu0 0.0
        %1458 = vmatprep.subr.mxu0 0.0
        %1459 = vmatpush1.msra.mxu0 0.0
        %1460 = vmatprep.subr.mxu0 0.0
        %1461 = vmatpush1.msra.mxu0 0.0
        %1462 = vmatprep.subr.mxu0 0.0
        %1463 = vmatpush1.msra.mxu0 0.0
        %1464 = vmatprep.subr.mxu0 0.0
        %1465 = vmatpush1.msra.mxu0 0.0
        %1466 = vmatprep.subr.mxu0 0.0
        %1467 = vmatpush1.msra.mxu0 0.0
        %1468 = vmatprep.subr.mxu0 0.0
        %1469 = vmatpush1.msra.mxu0 0.0
        %1470 = vmatprep.subr.mxu0 0.0
        %1471 = vmatpush1.msra.mxu0 0.0
        %1472 = vmatprep.subr.mxu0 0.0
        %1473 = vmatpush1.msra.mxu0 0.0
        %1474 = vmatprep.subr.mxu0 0.0
        %1475 = vmatpush1.msra.mxu0 0.0
        %1476 = vmatprep.subr.mxu0 0.0
        %1477 = vmatpush1.msra.mxu0 0.0
        %1478 = vmatprep.subr.mxu0 0.0
        %1479 = vmatpush1.msra.mxu0 0.0
        %1480 = vmatprep.subr.mxu0 0.0
        %1481 = vmatpush1.msra.mxu0 0.0
        %1482 = vmatprep.subr.mxu0 0.0
        %1483 = vmatpush1.msra.mxu0 %v1445
        %1484 = vmatprep.subr.mxu0 0.0
        %1485 = vmatpush1.msra.mxu0 %v1443
        %1486 = vmatprep.subr.mxu0 0.0
        %1487 = vmatpush2.msra.mxu0 0.0
        %1488 = vmatprep.subr.mxu0 0.0
        %1489 = vmatpush2.msra.mxu0 0.0
        %1490 = vmatprep.subr.mxu0 0.0
        %1491 = vmatpush2.msra.mxu0 0.0
        %1492 = vmatprep.subr.mxu0 0.0
        %1493 = vmatpush2.msra.mxu0 0.0
        %1494 = vmatprep.subr.mxu0 0.0
        %1495 = vmatpush2.msra.mxu0 0.0
        %1496 = vmatprep.subr.mxu0 0.0
        %1497 = vmatpush2.msra.mxu0 0.0
        %1498 = vmatprep.subr.mxu0 0.0
        %1499 = vmatpush2.msra.mxu0 0.0
        %1500 = vmatprep.subr.mxu0 0.0
        %1501 = vmatpush2.msra.mxu0 0.0
        %1502 = vmatprep.subr.mxu0 0.0
        %1503 = vmatpush2.msra.mxu0 0.0
        %1504 = vmatprep.subr.mxu0 0.0
        %1505 = vmatpush2.msra.mxu0 0.0
        %1506 = vmatprep.subr.mxu0 0.0
        %1507 = vmatpush2.msra.mxu0 0.0
        %1508 = vmatprep.subr.mxu0 0.0
        %1509 = vmatpush2.msra.mxu0 0.0
        %1510 = vmatprep.subr.mxu0 0.0
        %1511 = vmatpush2.msra.mxu0 0.0
        %1512 = vmatprep.subr.mxu0 0.0
        %1513 = vmatpush2.msra.mxu0 0.0
        %1514 = vmatprep.subr.mxu0 0.0
        %1515 = vmatpush2.msra.mxu0 0.0
        %1516 = vmatprep.subr.mxu0 0.0
        %1517 = vmatpush2.msra.mxu0 0.0
        %1518 = vmatprep.mubr.f32.mxu0 0.0
        %1519 = vmatmul.mubr.f32.gmra.mxu0 %v1449
        %v1520 = vpop.f32.mrf.mxu0
        %v1521 = vadd.f32 0.0, %v1520
        %v1522 = vpop.f32.mrf.mxu0
        %1523 = vmatprep.mubr.f32.mxu0 0.0
        %1524 = vmatmul.mubr.f32.gmra.mxu0 %v1452
        %v1525 = vpop.f32.mrf.mxu0
        %v1526 = vadd.f32 0.0, %v1525
        %v1527 = vpop.f32.mrf.mxu0
        %1528 = vdwg.mxu0
        %1531 = vrot.lane.b32.xlu0 %v824, 96
        %v1532 = vpop.permute.xlu0 %1531
        %1533 = vrot.lane.b32.xlu0 %v829, 96
        %v1534 = vpop.permute.xlu0 %1533
        %v1538 = vsel %vm1007, %v1437, 0
        %v1541 = vsel %vm1007, %v1439, 0
        %1543 = vmatprep.subr.mxu0 0.0
        %1544 = vmatpush1.msra.mxu0 0.0
        %1545 = vmatprep.subr.mxu0 0.0
        %1546 = vmatpush1.msra.mxu0 0.0
        %1547 = vmatprep.subr.mxu0 0.0
        %1548 = vmatpush1.msra.mxu0 0.0
        %1549 = vmatprep.subr.mxu0 0.0
        %1550 = vmatpush1.msra.mxu0 0.0
        %1551 = vmatprep.subr.mxu0 0.0
        %1552 = vmatpush1.msra.mxu0 0.0
        %1553 = vmatprep.subr.mxu0 0.0
        %1554 = vmatpush1.msra.mxu0 0.0
        %1555 = vmatprep.subr.mxu0 0.0
        %1556 = vmatpush1.msra.mxu0 0.0
        %1557 = vmatprep.subr.mxu0 0.0
        %1558 = vmatpush1.msra.mxu0 0.0
        %1559 = vmatprep.subr.mxu0 0.0
        %1560 = vmatpush1.msra.mxu0 0.0
        %1561 = vmatprep.subr.mxu0 0.0
        %1562 = vmatpush1.msra.mxu0 0.0
        %1563 = vmatprep.subr.mxu0 0.0
        %1564 = vmatpush1.msra.mxu0 0.0
        %1565 = vmatprep.subr.mxu0 0.0
        %1566 = vmatpush1.msra.mxu0 0.0
        %1567 = vmatprep.subr.mxu0 0.0
        %1568 = vmatpush1.msra.mxu0 0.0
        %1569 = vmatprep.subr.mxu0 0.0
        %1570 = vmatpush1.msra.mxu0 0.0
        %1571 = vmatprep.subr.mxu0 0.0
        %1572 = vmatpush1.msra.mxu0 %v1534
        %1573 = vmatprep.subr.mxu0 0.0
        %1574 = vmatpush1.msra.mxu0 %v1532
        %1575 = vmatprep.subr.mxu0 0.0
        %1576 = vmatpush2.msra.mxu0 0.0
        %1577 = vmatprep.subr.mxu0 0.0
        %1578 = vmatpush2.msra.mxu0 0.0
        %1579 = vmatprep.subr.mxu0 0.0
        %1580 = vmatpush2.msra.mxu0 0.0
        %1581 = vmatprep.subr.mxu0 0.0
        %1582 = vmatpush2.msra.mxu0 0.0
        %1583 = vmatprep.subr.mxu0 0.0
        %1584 = vmatpush2.msra.mxu0 0.0
        %1585 = vmatprep.subr.mxu0 0.0
        %1586 = vmatpush2.msra.mxu0 0.0
        %1587 = vmatprep.subr.mxu0 0.0
        %1588 = vmatpush2.msra.mxu0 0.0
        %1589 = vmatprep.subr.mxu0 0.0
        %1590 = vmatpush2.msra.mxu0 0.0
        %1591 = vmatprep.subr.mxu0 0.0
        %1592 = vmatpush2.msra.mxu0 0.0
        %1593 = vmatprep.subr.mxu0 0.0
        %1594 = vmatpush2.msra.mxu0 0.0
        %1595 = vmatprep.subr.mxu0 0.0
        %1596 = vmatpush2.msra.mxu0 0.0
        %1597 = vmatprep.subr.mxu0 0.0
        %1598 = vmatpush2.msra.mxu0 0.0
        %1599 = vmatprep.subr.mxu0 0.0
        %1600 = vmatpush2.msra.mxu0 0.0
        %1601 = vmatprep.subr.mxu0 0.0
        %1602 = vmatpush2.msra.mxu0 0.0
        %1603 = vmatprep.subr.mxu0 0.0
        %1604 = vmatpush2.msra.mxu0 0.0
        %1605 = vmatprep.subr.mxu0 0.0
        %1606 = vmatpush2.msra.mxu0 0.0
        %1607 = vmatprep.mubr.f32.mxu0 0.0
        %1608 = vmatmul.mubr.f32.gmra.mxu0 %v1538
        %v1609 = vpop.f32.mrf.mxu0
        %v1610 = vadd.f32 0.0, %v1609
        %v1611 = vpop.f32.mrf.mxu0
        %1612 = vmatprep.mubr.f32.mxu0 0.0
        %1613 = vmatmul.mubr.f32.gmra.mxu0 %v1541
        %v1614 = vpop.f32.mrf.mxu0
        %v1615 = vadd.f32 0.0, %v1614
        %v1616 = vpop.f32.mrf.mxu0
        %1617 = vdwg.mxu0
        %1618 = vrot.lane.b32.xlu0 %v725, 64
        %v1619 = vpop.permute.xlu0 %1618
        %1620 = vrot.lane.b32.xlu0 %v731, 64
        %v1621 = vpop.permute.xlu0 %1620
        %1622 = vrot.lane.b32.xlu0 %v727, 64
        %v1623 = vpop.permute.xlu0 %1622
        %1624 = vrot.lane.b32.xlu0 %v733, 64
        %v1625 = vpop.permute.xlu0 %1624
        %v1626 = vsel %vm832, %v1619, 0
        %v1628 = vsel %vm832, %v1621, 0
        %v1630 = vsel %vm832, %v1623, 0
        %v1632 = vsel %vm832, %v1625, 0
        %1634 = vmatprep.subr.mxu0 0.0
        %1635 = vmatpush1.xpose.msra.mxu0 0.0
        %1636 = vmatprep.subr.mxu0 0.0
        %1637 = vmatpush1.xpose.msra.mxu0 0.0
        %1638 = vmatprep.subr.mxu0 0.0
        %1639 = vmatpush1.xpose.msra.mxu0 0.0
        %1640 = vmatprep.subr.mxu0 0.0
        %1641 = vmatpush1.xpose.msra.mxu0 0.0
        %1642 = vmatprep.subr.mxu0 0.0
        %1643 = vmatpush1.xpose.msra.mxu0 0.0
        %1644 = vmatprep.subr.mxu0 0.0
        %1645 = vmatpush1.xpose.msra.mxu0 0.0
        %1646 = vmatprep.subr.mxu0 0.0
        %1647 = vmatpush1.xpose.msra.mxu0 0.0
        %1648 = vmatprep.subr.mxu0 0.0
        %1649 = vmatpush1.xpose.msra.mxu0 0.0
        %1650 = vmatprep.subr.mxu0 0.0
        %1651 = vmatpush1.xpose.msra.mxu0 0.0
        %1652 = vmatprep.subr.mxu0 0.0
        %1653 = vmatpush1.xpose.msra.mxu0 0.0
        %1654 = vmatprep.subr.mxu0 0.0
        %1655 = vmatpush1.xpose.msra.mxu0 0.0
        %1656 = vmatprep.subr.mxu0 0.0
        %1657 = vmatpush1.xpose.msra.mxu0 0.0
        %1658 = vmatprep.subr.mxu0 0.0
        %1659 = vmatpush1.xpose.msra.mxu0 0.0
        %1660 = vmatprep.subr.mxu0 0.0
        %1661 = vmatpush1.xpose.msra.mxu0 0.0
        %1662 = vmatprep.subr.mxu0 0.0
        %1663 = vmatpush1.xpose.msra.mxu0 %v1632
        %1664 = vmatprep.subr.mxu0 0.0
        %1665 = vmatpush1.xpose.msra.mxu0 %v1630
        %1666 = vmatprep.subr.mxu0 0.0
        %1667 = vmatpush2.xpose.msra.mxu0 0.0
        %1668 = vmatprep.subr.mxu0 0.0
        %1669 = vmatpush2.xpose.msra.mxu0 0.0
        %1670 = vmatprep.subr.mxu0 0.0
        %1671 = vmatpush2.xpose.msra.mxu0 0.0
        %1672 = vmatprep.subr.mxu0 0.0
        %1673 = vmatpush2.xpose.msra.mxu0 0.0
        %1674 = vmatprep.subr.mxu0 0.0
        %1675 = vmatpush2.xpose.msra.mxu0 0.0
        %1676 = vmatprep.subr.mxu0 0.0
        %1677 = vmatpush2.xpose.msra.mxu0 0.0
        %1678 = vmatprep.subr.mxu0 0.0
        %1679 = vmatpush2.xpose.msra.mxu0 0.0
        %1680 = vmatprep.subr.mxu0 0.0
        %1681 = vmatpush2.xpose.msra.mxu0 0.0
        %1682 = vmatprep.subr.mxu0 0.0
        %1683 = vmatpush2.xpose.msra.mxu0 0.0
        %1684 = vmatprep.subr.mxu0 0.0
        %1685 = vmatpush2.xpose.msra.mxu0 0.0
        %1686 = vmatprep.subr.mxu0 0.0
        %1687 = vmatpush2.xpose.msra.mxu0 0.0
        %1688 = vmatprep.subr.mxu0 0.0
        %1689 = vmatpush2.xpose.msra.mxu0 0.0
        %1690 = vmatprep.subr.mxu0 0.0
        %1691 = vmatpush2.xpose.msra.mxu0 0.0
        %1692 = vmatprep.subr.mxu0 0.0
        %1693 = vmatpush2.xpose.msra.mxu0 0.0
        %1694 = vmatprep.subr.mxu0 0.0
        %1695 = vmatpush2.xpose.msra.mxu0 0.0
        %1696 = vmatprep.subr.mxu0 0.0
        %1697 = vmatpush2.xpose.msra.mxu0 0.0
        %1698 = vmatprep.mubr.f32.mxu0 0.0
        %1699 = vmatmul.mubr.f32.gmra.mxu0 %v1626
        %v1700 = vpop.f32.mrf.mxu0
        %v1701 = vadd.f32 0.0, %v1700
        %v1702 = vpop.f32.mrf.mxu0
        %1703 = vmatprep.mubr.f32.mxu0 0.0
        %1704 = vmatmul.mubr.f32.gmra.mxu0 %v1628
        %v1705 = vpop.f32.mrf.mxu0
        %v1706 = vadd.f32 0.0, %v1705
        %v1707 = vpop.f32.mrf.mxu0
        %1708 = vdwg.mxu0
        %1709 = vrot.lane.b32.xlu0 %v737, 64
        %v1710 = vpop.permute.xlu0 %1709
        %1711 = vrot.lane.b32.xlu0 %v743, 64
        %v1712 = vpop.permute.xlu0 %1711
        %1713 = vrot.lane.b32.xlu0 %v739, 64
        %v1714 = vpop.permute.xlu0 %1713
        %1715 = vrot.lane.b32.xlu0 %v745, 64
        %v1716 = vpop.permute.xlu0 %1715
        %v1717 = vsel %vm832, %v1710, 0
        %v1719 = vsel %vm832, %v1712, 0
        %v1721 = vsel %vm832, %v1714, 0
        %v1723 = vsel %vm832, %v1716, 0
        %1725 = vmatprep.subr.mxu0 0.0
        %1726 = vmatpush1.xpose.msra.mxu0 0.0
        %1727 = vmatprep.subr.mxu0 0.0
        %1728 = vmatpush1.xpose.msra.mxu0 0.0
        %1729 = vmatprep.subr.mxu0 0.0
        %1730 = vmatpush1.xpose.msra.mxu0 0.0
        %1731 = vmatprep.subr.mxu0 0.0
        %1732 = vmatpush1.xpose.msra.mxu0 0.0
        %1733 = vmatprep.subr.mxu0 0.0
        %1734 = vmatpush1.xpose.msra.mxu0 0.0
        %1735 = vmatprep.subr.mxu0 0.0
        %1736 = vmatpush1.xpose.msra.mxu0 0.0
        %1737 = vmatprep.subr.mxu0 0.0
        %1738 = vmatpush1.xpose.msra.mxu0 0.0
        %1739 = vmatprep.subr.mxu0 0.0
        %1740 = vmatpush1.xpose.msra.mxu0 0.0
        %1741 = vmatprep.subr.mxu0 0.0
        %1742 = vmatpush1.xpose.msra.mxu0 0.0
        %1743 = vmatprep.subr.mxu0 0.0
        %1744 = vmatpush1.xpose.msra.mxu0 0.0
        %1745 = vmatprep.subr.mxu0 0.0
        %1746 = vmatpush1.xpose.msra.mxu0 0.0
        %1747 = vmatprep.subr.mxu0 0.0
        %1748 = vmatpush1.xpose.msra.mxu0 0.0
        %1749 = vmatprep.subr.mxu0 0.0
        %1750 = vmatpush1.xpose.msra.mxu0 0.0
        %1751 = vmatprep.subr.mxu0 0.0
        %1752 = vmatpush1.xpose.msra.mxu0 0.0
        %1753 = vmatprep.subr.mxu0 0.0
        %1754 = vmatpush1.xpose.msra.mxu0 %v1723
        %1755 = vmatprep.subr.mxu0 0.0
        %1756 = vmatpush1.xpose.msra.mxu0 %v1721
        %1757 = vmatprep.subr.mxu0 0.0
        %1758 = vmatpush2.xpose.msra.mxu0 0.0
        %1759 = vmatprep.subr.mxu0 0.0
        %1760 = vmatpush2.xpose.msra.mxu0 0.0
        %1761 = vmatprep.subr.mxu0 0.0
        %1762 = vmatpush2.xpose.msra.mxu0 0.0
        %1763 = vmatprep.subr.mxu0 0.0
        %1764 = vmatpush2.xpose.msra.mxu0 0.0
        %1765 = vmatprep.subr.mxu0 0.0
        %1766 = vmatpush2.xpose.msra.mxu0 0.0
        %1767 = vmatprep.subr.mxu0 0.0
        %1768 = vmatpush2.xpose.msra.mxu0 0.0
        %1769 = vmatprep.subr.mxu0 0.0
        %1770 = vmatpush2.xpose.msra.mxu0 0.0
        %1771 = vmatprep.subr.mxu0 0.0
        %1772 = vmatpush2.xpose.msra.mxu0 0.0
        %1773 = vmatprep.subr.mxu0 0.0
        %1774 = vmatpush2.xpose.msra.mxu0 0.0
        %1775 = vmatprep.subr.mxu0 0.0
        %1776 = vmatpush2.xpose.msra.mxu0 0.0
        %1777 = vmatprep.subr.mxu0 0.0
        %1778 = vmatpush2.xpose.msra.mxu0 0.0
        %1779 = vmatprep.subr.mxu0 0.0
        %1780 = vmatpush2.xpose.msra.mxu0 0.0
        %1781 = vmatprep.subr.mxu0 0.0
        %1782 = vmatpush2.xpose.msra.mxu0 0.0
        %1783 = vmatprep.subr.mxu0 0.0
        %1784 = vmatpush2.xpose.msra.mxu0 0.0
        %1785 = vmatprep.subr.mxu0 0.0
        %1786 = vmatpush2.xpose.msra.mxu0 0.0
        %1787 = vmatprep.subr.mxu0 0.0
        %1788 = vmatpush2.xpose.msra.mxu0 0.0
        %1789 = vmatprep.mubr.f32.mxu0 0.0
        %1790 = vmatmul.mubr.f32.gmra.mxu0 %v1717
        %v1791 = vpop.f32.mrf.mxu0
        %v1792 = vadd.f32 0.0, %v1791
        %v1793 = vpop.f32.mrf.mxu0
        %1794 = vmatprep.mubr.f32.mxu0 0.0
        %1795 = vmatmul.mubr.f32.gmra.mxu0 %v1719
        %v1796 = vpop.f32.mrf.mxu0
        %v1797 = vadd.f32 0.0, %v1796
        %v1798 = vpop.f32.mrf.mxu0
        %1799 = vdwg.mxu0
        %v1800 = vsel %vm1007, %v1701, -inf
        %1801 = vmax.xlane.f32.xlu0 %v1800
        %v1802 = vpop.xlane.xlu0 %1801
        %v1803 = vsel %vm1007, %v1706, -inf
        %1804 = vmax.xlane.f32.xlu0 %v1803
        %v1805 = vpop.xlane.xlu0 %1804
        %v1806 = vsel %vm1007, %v1792, -inf
        %1807 = vmax.xlane.f32.xlu0 %v1806
        %v1808 = vpop.xlane.xlu0 %1807
        %v1809 = vsel %vm1007, %v1797, -inf
        %1810 = vmax.xlane.f32.xlu0 %v1809
        %v1811 = vpop.xlane.xlu0 %1810
        %v1812 = vsub.f32 %v1701, %v1802
        %v1813 = vsub.f32 %v1706, %v1805
        %v1814 = vsub.f32 %v1792, %v1808
        %v1815 = vsub.f32 %v1797, %v1811
        %v1816 = vmul.f32 %v1812, 1.442695
        %v1817 = vpow.pop %v1816
        %v1818 = vmul.f32 %v1813, 1.442695
        %v1819 = vpow.pop %v1818
        %v1820 = vmul.f32 %v1814, 1.442695
        %v1821 = vpow.pop %v1820
        %v1822 = vmul.f32 %v1815, 1.442695
        %v1823 = vpow.pop %v1822
        %v1824 = vsel %vm1007, %v1817, 0.0
        %1825 = vadd.xlane.f32.xlu0 %v1824
        %v1826 = vpop.xlane.xlu0 %1825
        %v1827 = vsel %vm1007, %v1819, 0.0
        %1828 = vadd.xlane.f32.xlu0 %v1827
        %v1829 = vpop.xlane.xlu0 %1828
        %v1830 = vsel %vm1007, %v1821, 0.0
        %1831 = vadd.xlane.f32.xlu0 %v1830
        %v1832 = vpop.xlane.xlu0 %1831
        %v1833 = vsel %vm1007, %v1823, 0.0
        %1834 = vadd.xlane.f32.xlu0 %v1833
        %v1835 = vpop.xlane.xlu0 %1834
        %v1836 = vrcp.pop %v1826
        %v1837 = vmul.f32 %v1817, %v1836
        %v1838 = vrcp.pop %v1829
        %v1839 = vmul.f32 %v1819, %v1838
        %v1840 = vrcp.pop %v1832
        %v1841 = vmul.f32 %v1821, %v1840
        %v1842 = vrcp.pop %v1835
        %v1843 = vmul.f32 %v1823, %v1842
        %1844 = vrot.lane.b32.xlu0 %v814, 64
        %v1845 = vpop.permute.xlu0 %1844
        %1846 = vrot.lane.b32.xlu0 %v819, 64
        %v1847 = vpop.permute.xlu0 %1846
        %v1851 = vsel %vm1007, %v1837, 0
        %v1854 = vsel %vm1007, %v1839, 0
        %1856 = vmatprep.subr.mxu0 0.0
        %1857 = vmatpush1.msra.mxu0 0.0
        %1858 = vmatprep.subr.mxu0 0.0
        %1859 = vmatpush1.msra.mxu0 0.0
        %1860 = vmatprep.subr.mxu0 0.0
        %1861 = vmatpush1.msra.mxu0 0.0
        %1862 = vmatprep.subr.mxu0 0.0
        %1863 = vmatpush1.msra.mxu0 0.0
        %1864 = vmatprep.subr.mxu0 0.0
        %1865 = vmatpush1.msra.mxu0 0.0
        %1866 = vmatprep.subr.mxu0 0.0
        %1867 = vmatpush1.msra.mxu0 0.0
        %1868 = vmatprep.subr.mxu0 0.0
        %1869 = vmatpush1.msra.mxu0 0.0
        %1870 = vmatprep.subr.mxu0 0.0
        %1871 = vmatpush1.msra.mxu0 0.0
        %1872 = vmatprep.subr.mxu0 0.0
        %1873 = vmatpush1.msra.mxu0 0.0
        %1874 = vmatprep.subr.mxu0 0.0
        %1875 = vmatpush1.msra.mxu0 0.0
        %1876 = vmatprep.subr.mxu0 0.0
        %1877 = vmatpush1.msra.mxu0 0.0
        %1878 = vmatprep.subr.mxu0 0.0
        %1879 = vmatpush1.msra.mxu0 0.0
        %1880 = vmatprep.subr.mxu0 0.0
        %1881 = vmatpush1.msra.mxu0 0.0
        %1882 = vmatprep.subr.mxu0 0.0
        %1883 = vmatpush1.msra.mxu0 0.0
        %1884 = vmatprep.subr.mxu0 0.0
        %1885 = vmatpush1.msra.mxu0 %v1847
        %1886 = vmatprep.subr.mxu0 0.0
        %1887 = vmatpush1.msra.mxu0 %v1845
        %1888 = vmatprep.subr.mxu0 0.0
        %1889 = vmatpush2.msra.mxu0 0.0
        %1890 = vmatprep.subr.mxu0 0.0
        %1891 = vmatpush2.msra.mxu0 0.0
        %1892 = vmatprep.subr.mxu0 0.0
        %1893 = vmatpush2.msra.mxu0 0.0
        %1894 = vmatprep.subr.mxu0 0.0
        %1895 = vmatpush2.msra.mxu0 0.0
        %1896 = vmatprep.subr.mxu0 0.0
        %1897 = vmatpush2.msra.mxu0 0.0
        %1898 = vmatprep.subr.mxu0 0.0
        %1899 = vmatpush2.msra.mxu0 0.0
        %1900 = vmatprep.subr.mxu0 0.0
        %1901 = vmatpush2.msra.mxu0 0.0
        %1902 = vmatprep.subr.mxu0 0.0
        %1903 = vmatpush2.msra.mxu0 0.0
        %1904 = vmatprep.subr.mxu0 0.0
        %1905 = vmatpush2.msra.mxu0 0.0
        %1906 = vmatprep.subr.mxu0 0.0
        %1907 = vmatpush2.msra.mxu0 0.0
        %1908 = vmatprep.subr.mxu0 0.0
        %1909 = vmatpush2.msra.mxu0 0.0
        %1910 = vmatprep.subr.mxu0 0.0
        %1911 = vmatpush2.msra.mxu0 0.0
        %1912 = vmatprep.subr.mxu0 0.0
        %1913 = vmatpush2.msra.mxu0 0.0
        %1914 = vmatprep.subr.mxu0 0.0
        %1915 = vmatpush2.msra.mxu0 0.0
        %1916 = vmatprep.subr.mxu0 0.0
        %1917 = vmatpush2.msra.mxu0 0.0
        %1918 = vmatprep.subr.mxu0 0.0
        %1919 = vmatpush2.msra.mxu0 0.0
        %1920 = vmatprep.mubr.f32.mxu0 0.0
        %1921 = vmatmul.mubr.f32.gmra.mxu0 %v1851
        %v1922 = vpop.f32.mrf.mxu0
        %v1923 = vadd.f32 0.0, %v1922
        %v1924 = vpop.f32.mrf.mxu0
        %1925 = vmatprep.mubr.f32.mxu0 0.0
        %1926 = vmatmul.mubr.f32.gmra.mxu0 %v1854
        %v1927 = vpop.f32.mrf.mxu0
        %v1928 = vadd.f32 0.0, %v1927
        %v1929 = vpop.f32.mrf.mxu0
        %1930 = vdwg.mxu0
        %1931 = vrot.lane.b32.xlu0 %v824, 64
        %v1932 = vpop.permute.xlu0 %1931
        %1933 = vrot.lane.b32.xlu0 %v829, 64
        %v1934 = vpop.permute.xlu0 %1933
        %v1938 = vsel %vm1007, %v1841, 0
        %v1941 = vsel %vm1007, %v1843, 0
        %1943 = vmatprep.subr.mxu0 0.0
        %1944 = vmatpush1.msra.mxu0 0.0
        %1945 = vmatprep.subr.mxu0 0.0
        %1946 = vmatpush1.msra.mxu0 0.0
        %1947 = vmatprep.subr.mxu0 0.0
        %1948 = vmatpush1.msra.mxu0 0.0
        %1949 = vmatprep.subr.mxu0 0.0
        %1950 = vmatpush1.msra.mxu0 0.0
        %1951 = vmatprep.subr.mxu0 0.0
        %1952 = vmatpush1.msra.mxu0 0.0
        %1953 = vmatprep.subr.mxu0 0.0
        %1954 = vmatpush1.msra.mxu0 0.0
        %1955 = vmatprep.subr.mxu0 0.0
        %1956 = vmatpush1.msra.mxu0 0.0
        %1957 = vmatprep.subr.mxu0 0.0
        %1958 = vmatpush1.msra.mxu0 0.0
        %1959 = vmatprep.subr.mxu0 0.0
        %1960 = vmatpush1.msra.mxu0 0.0
        %1961 = vmatprep.subr.mxu0 0.0
        %1962 = vmatpush1.msra.mxu0 0.0
        %1963 = vmatprep.subr.mxu0 0.0
        %1964 = vmatpush1.msra.mxu0 0.0
        %1965 = vmatprep.subr.mxu0 0.0
        %1966 = vmatpush1.msra.mxu0 0.0
        %1967 = vmatprep.subr.mxu0 0.0
        %1968 = vmatpush1.msra.mxu0 0.0
        %1969 = vmatprep.subr.mxu0 0.0
        %1970 = vmatpush1.msra.mxu0 0.0
        %1971 = vmatprep.subr.mxu0 0.0
        %1972 = vmatpush1.msra.mxu0 %v1934
        %1973 = vmatprep.subr.mxu0 0.0
        %1974 = vmatpush1.msra.mxu0 %v1932
        %1975 = vmatprep.subr.mxu0 0.0
        %1976 = vmatpush2.msra.mxu0 0.0
        %1977 = vmatprep.subr.mxu0 0.0
        %1978 = vmatpush2.msra.mxu0 0.0
        %1979 = vmatprep.subr.mxu0 0.0
        %1980 = vmatpush2.msra.mxu0 0.0
        %1981 = vmatprep.subr.mxu0 0.0
        %1982 = vmatpush2.msra.mxu0 0.0
        %1983 = vmatprep.subr.mxu0 0.0
        %1984 = vmatpush2.msra.mxu0 0.0
        %1985 = vmatprep.subr.mxu0 0.0
        %1986 = vmatpush2.msra.mxu0 0.0
        %1987 = vmatprep.subr.mxu0 0.0
        %1988 = vmatpush2.msra.mxu0 0.0
        %1989 = vmatprep.subr.mxu0 0.0
        %1990 = vmatpush2.msra.mxu0 0.0
        %1991 = vmatprep.subr.mxu0 0.0
        %1992 = vmatpush2.msra.mxu0 0.0
        %1993 = vmatprep.subr.mxu0 0.0
        %1994 = vmatpush2.msra.mxu0 0.0
        %1995 = vmatprep.subr.mxu0 0.0
        %1996 = vmatpush2.msra.mxu0 0.0
        %1997 = vmatprep.subr.mxu0 0.0
        %1998 = vmatpush2.msra.mxu0 0.0
        %1999 = vmatprep.subr.mxu0 0.0
        %2000 = vmatpush2.msra.mxu0 0.0
        %2001 = vmatprep.subr.mxu0 0.0
        %2002 = vmatpush2.msra.mxu0 0.0
        %2003 = vmatprep.subr.mxu0 0.0
        %2004 = vmatpush2.msra.mxu0 0.0
        %2005 = vmatprep.subr.mxu0 0.0
        %2006 = vmatpush2.msra.mxu0 0.0
        %2007 = vmatprep.mubr.f32.mxu0 0.0
        %2008 = vmatmul.mubr.f32.gmra.mxu0 %v1938
        %v2009 = vpop.f32.mrf.mxu0
        %v2010 = vadd.f32 0.0, %v2009
        %v2011 = vpop.f32.mrf.mxu0
        %2012 = vmatprep.mubr.f32.mxu0 0.0
        %2013 = vmatmul.mubr.f32.gmra.mxu0 %v1941
        %v2014 = vpop.f32.mrf.mxu0
        %v2015 = vadd.f32 0.0, %v2014
        %v2016 = vpop.f32.mrf.mxu0
        %2017 = vdwg.mxu0
        %2018 = vrot.lane.b32.xlu0 %v725, 32
        %v2019 = vpop.permute.xlu0 %2018
        %2020 = vrot.lane.b32.xlu0 %v731, 32
        %v2021 = vpop.permute.xlu0 %2020
        %2022 = vrot.lane.b32.xlu0 %v727, 32
        %v2023 = vpop.permute.xlu0 %2022
        %2024 = vrot.lane.b32.xlu0 %v733, 32
        %v2025 = vpop.permute.xlu0 %2024
        %v2026 = vsel %vm832, %v2019, 0
        %v2028 = vsel %vm832, %v2021, 0
        %v2030 = vsel %vm832, %v2023, 0
        %v2032 = vsel %vm832, %v2025, 0
        %2034 = vmatprep.subr.mxu0 0.0
        %2035 = vmatpush1.xpose.msra.mxu0 0.0
        %2036 = vmatprep.subr.mxu0 0.0
        %2037 = vmatpush1.xpose.msra.mxu0 0.0
        %2038 = vmatprep.subr.mxu0 0.0
        %2039 = vmatpush1.xpose.msra.mxu0 0.0
        %2040 = vmatprep.subr.mxu0 0.0
        %2041 = vmatpush1.xpose.msra.mxu0 0.0
        %2042 = vmatprep.subr.mxu0 0.0
        %2043 = vmatpush1.xpose.msra.mxu0 0.0
        %2044 = vmatprep.subr.mxu0 0.0
        %2045 = vmatpush1.xpose.msra.mxu0 0.0
        %2046 = vmatprep.subr.mxu0 0.0
        %2047 = vmatpush1.xpose.msra.mxu0 0.0
        %2048 = vmatprep.subr.mxu0 0.0
        %2049 = vmatpush1.xpose.msra.mxu0 0.0
        %2050 = vmatprep.subr.mxu0 0.0
        %2051 = vmatpush1.xpose.msra.mxu0 0.0
        %2052 = vmatprep.subr.mxu0 0.0
        %2053 = vmatpush1.xpose.msra.mxu0 0.0
        %2054 = vmatprep.subr.mxu0 0.0
        %2055 = vmatpush1.xpose.msra.mxu0 0.0
        %2056 = vmatprep.subr.mxu0 0.0
        %2057 = vmatpush1.xpose.msra.mxu0 0.0
        %2058 = vmatprep.subr.mxu0 0.0
        %2059 = vmatpush1.xpose.msra.mxu0 0.0
        %2060 = vmatprep.subr.mxu0 0.0
        %2061 = vmatpush1.xpose.msra.mxu0 0.0
        %2062 = vmatprep.subr.mxu0 0.0
        %2063 = vmatpush1.xpose.msra.mxu0 %v2032
        %2064 = vmatprep.subr.mxu0 0.0
        %2065 = vmatpush1.xpose.msra.mxu0 %v2030
        %2066 = vmatprep.subr.mxu0 0.0
        %2067 = vmatpush2.xpose.msra.mxu0 0.0
        %2068 = vmatprep.subr.mxu0 0.0
        %2069 = vmatpush2.xpose.msra.mxu0 0.0
        %2070 = vmatprep.subr.mxu0 0.0
        %2071 = vmatpush2.xpose.msra.mxu0 0.0
        %2072 = vmatprep.subr.mxu0 0.0
        %2073 = vmatpush2.xpose.msra.mxu0 0.0
        %2074 = vmatprep.subr.mxu0 0.0
        %2075 = vmatpush2.xpose.msra.mxu0 0.0
        %2076 = vmatprep.subr.mxu0 0.0
        %2077 = vmatpush2.xpose.msra.mxu0 0.0
        %2078 = vmatprep.subr.mxu0 0.0
        %2079 = vmatpush2.xpose.msra.mxu0 0.0
        %2080 = vmatprep.subr.mxu0 0.0
        %2081 = vmatpush2.xpose.msra.mxu0 0.0
        %2082 = vmatprep.subr.mxu0 0.0
        %2083 = vmatpush2.xpose.msra.mxu0 0.0
        %2084 = vmatprep.subr.mxu0 0.0
        %2085 = vmatpush2.xpose.msra.mxu0 0.0
        %2086 = vmatprep.subr.mxu0 0.0
        %2087 = vmatpush2.xpose.msra.mxu0 0.0
        %2088 = vmatprep.subr.mxu0 0.0
        %2089 = vmatpush2.xpose.msra.mxu0 0.0
        %2090 = vmatprep.subr.mxu0 0.0
        %2091 = vmatpush2.xpose.msra.mxu0 0.0
        %2092 = vmatprep.subr.mxu0 0.0
        %2093 = vmatpush2.xpose.msra.mxu0 0.0
        %2094 = vmatprep.subr.mxu0 0.0
        %2095 = vmatpush2.xpose.msra.mxu0 0.0
        %2096 = vmatprep.subr.mxu0 0.0
        %2097 = vmatpush2.xpose.msra.mxu0 0.0
        %2098 = vmatprep.mubr.f32.mxu0 0.0
        %2099 = vmatmul.mubr.f32.gmra.mxu0 %v2026
        %v2100 = vpop.f32.mrf.mxu0
        %v2101 = vadd.f32 0.0, %v2100
        %v2102 = vpop.f32.mrf.mxu0
        %2103 = vmatprep.mubr.f32.mxu0 0.0
        %2104 = vmatmul.mubr.f32.gmra.mxu0 %v2028
        %v2105 = vpop.f32.mrf.mxu0
        %v2106 = vadd.f32 0.0, %v2105
        %v2107 = vpop.f32.mrf.mxu0
        %2108 = vdwg.mxu0
        %2109 = vrot.lane.b32.xlu0 %v737, 32
        %v2110 = vpop.permute.xlu0 %2109
        %2111 = vrot.lane.b32.xlu0 %v743, 32
        %v2112 = vpop.permute.xlu0 %2111
        %2113 = vrot.lane.b32.xlu0 %v739, 32
        %v2114 = vpop.permute.xlu0 %2113
        %2115 = vrot.lane.b32.xlu0 %v745, 32
        %v2116 = vpop.permute.xlu0 %2115
        %v2117 = vsel %vm832, %v2110, 0
        %v2119 = vsel %vm832, %v2112, 0
        %v2121 = vsel %vm832, %v2114, 0
        %v2123 = vsel %vm832, %v2116, 0
        %2125 = vmatprep.subr.mxu0 0.0
        %2126 = vmatpush1.xpose.msra.mxu0 0.0
        %2127 = vmatprep.subr.mxu0 0.0
        %2128 = vmatpush1.xpose.msra.mxu0 0.0
        %2129 = vmatprep.subr.mxu0 0.0
        %2130 = vmatpush1.xpose.msra.mxu0 0.0
        %2131 = vmatprep.subr.mxu0 0.0
        %2132 = vmatpush1.xpose.msra.mxu0 0.0
        %2133 = vmatprep.subr.mxu0 0.0
        %2134 = vmatpush1.xpose.msra.mxu0 0.0
        %2135 = vmatprep.subr.mxu0 0.0
        %2136 = vmatpush1.xpose.msra.mxu0 0.0
        %2137 = vmatprep.subr.mxu0 0.0
        %2138 = vmatpush1.xpose.msra.mxu0 0.0
        %2139 = vmatprep.subr.mxu0 0.0
        %2140 = vmatpush1.xpose.msra.mxu0 0.0
        %2141 = vmatprep.subr.mxu0 0.0
        %2142 = vmatpush1.xpose.msra.mxu0 0.0
        %2143 = vmatprep.subr.mxu0 0.0
        %2144 = vmatpush1.xpose.msra.mxu0 0.0
        %2145 = vmatprep.subr.mxu0 0.0
        %2146 = vmatpush1.xpose.msra.mxu0 0.0
        %2147 = vmatprep.subr.mxu0 0.0
        %2148 = vmatpush1.xpose.msra.mxu0 0.0
        %2149 = vmatprep.subr.mxu0 0.0
        %2150 = vmatpush1.xpose.msra.mxu0 0.0
        %2151 = vmatprep.subr.mxu0 0.0
        %2152 = vmatpush1.xpose.msra.mxu0 0.0
        %2153 = vmatprep.subr.mxu0 0.0
        %2154 = vmatpush1.xpose.msra.mxu0 %v2123
        %2155 = vmatprep.subr.mxu0 0.0
        %2156 = vmatpush1.xpose.msra.mxu0 %v2121
        %2157 = vmatprep.subr.mxu0 0.0
        %2158 = vmatpush2.xpose.msra.mxu0 0.0
        %2159 = vmatprep.subr.mxu0 0.0
        %2160 = vmatpush2.xpose.msra.mxu0 0.0
        %2161 = vmatprep.subr.mxu0 0.0
        %2162 = vmatpush2.xpose.msra.mxu0 0.0
        %2163 = vmatprep.subr.mxu0 0.0
        %2164 = vmatpush2.xpose.msra.mxu0 0.0
        %2165 = vmatprep.subr.mxu0 0.0
        %2166 = vmatpush2.xpose.msra.mxu0 0.0
        %2167 = vmatprep.subr.mxu0 0.0
        %2168 = vmatpush2.xpose.msra.mxu0 0.0
        %2169 = vmatprep.subr.mxu0 0.0
        %2170 = vmatpush2.xpose.msra.mxu0 0.0
        %2171 = vmatprep.subr.mxu0 0.0
        %2172 = vmatpush2.xpose.msra.mxu0 0.0
        %2173 = vmatprep.subr.mxu0 0.0
        %2174 = vmatpush2.xpose.msra.mxu0 0.0
        %2175 = vmatprep.subr.mxu0 0.0
        %2176 = vmatpush2.xpose.msra.mxu0 0.0
        %2177 = vmatprep.subr.mxu0 0.0
        %2178 = vmatpush2.xpose.msra.mxu0 0.0
        %2179 = vmatprep.subr.mxu0 0.0
        %2180 = vmatpush2.xpose.msra.mxu0 0.0
        %2181 = vmatprep.subr.mxu0 0.0
        %2182 = vmatpush2.xpose.msra.mxu0 0.0
        %2183 = vmatprep.subr.mxu0 0.0
        %2184 = vmatpush2.xpose.msra.mxu0 0.0
        %2185 = vmatprep.subr.mxu0 0.0
        %2186 = vmatpush2.xpose.msra.mxu0 0.0
        %2187 = vmatprep.subr.mxu0 0.0
        %2188 = vmatpush2.xpose.msra.mxu0 0.0
        %2189 = vmatprep.mubr.f32.mxu0 0.0
        %2190 = vmatmul.mubr.f32.gmra.mxu0 %v2117
        %v2191 = vpop.f32.mrf.mxu0
        %v2192 = vadd.f32 0.0, %v2191
        %v2193 = vpop.f32.mrf.mxu0
        %2194 = vmatprep.mubr.f32.mxu0 0.0
        %2195 = vmatmul.mubr.f32.gmra.mxu0 %v2119
        %v2196 = vpop.f32.mrf.mxu0
        %v2197 = vadd.f32 0.0, %v2196
        %v2198 = vpop.f32.mrf.mxu0
        %2199 = vdwg.mxu0
        %v2200 = vsel %vm1007, %v2101, -inf
        %2201 = vmax.xlane.f32.xlu0 %v2200
        %v2202 = vpop.xlane.xlu0 %2201
        %v2203 = vsel %vm1007, %v2106, -inf
        %2204 = vmax.xlane.f32.xlu0 %v2203
        %v2205 = vpop.xlane.xlu0 %2204
        %v2206 = vsel %vm1007, %v2192, -inf
        %2207 = vmax.xlane.f32.xlu0 %v2206
        %v2208 = vpop.xlane.xlu0 %2207
        %v2209 = vsel %vm1007, %v2197, -inf
        %2210 = vmax.xlane.f32.xlu0 %v2209
        %v2211 = vpop.xlane.xlu0 %2210
        %v2212 = vsub.f32 %v2101, %v2202
        %v2213 = vsub.f32 %v2106, %v2205
        %v2214 = vsub.f32 %v2192, %v2208
        %v2215 = vsub.f32 %v2197, %v2211
        %v2216 = vmul.f32 %v2212, 1.442695
        %v2217 = vpow.pop %v2216
        %v2218 = vmul.f32 %v2213, 1.442695
        %v2219 = vpow.pop %v2218
        %v2220 = vmul.f32 %v2214, 1.442695
        %v2221 = vpow.pop %v2220
        %v2222 = vmul.f32 %v2215, 1.442695
        %v2223 = vpow.pop %v2222
        %v2224 = vsel %vm1007, %v2217, 0.0
        %2225 = vadd.xlane.f32.xlu0 %v2224
        %v2226 = vpop.xlane.xlu0 %2225
        %v2227 = vsel %vm1007, %v2219, 0.0
        %2228 = vadd.xlane.f32.xlu0 %v2227
        %v2229 = vpop.xlane.xlu0 %2228
        %v2230 = vsel %vm1007, %v2221, 0.0
        %2231 = vadd.xlane.f32.xlu0 %v2230
        %v2232 = vpop.xlane.xlu0 %2231
        %v2233 = vsel %vm1007, %v2223, 0.0
        %2234 = vadd.xlane.f32.xlu0 %v2233
        %v2235 = vpop.xlane.xlu0 %2234
        %v2236 = vrcp.pop %v2226
        %v2237 = vmul.f32 %v2217, %v2236
        %v2238 = vrcp.pop %v2229
        %v2239 = vmul.f32 %v2219, %v2238
        %v2240 = vrcp.pop %v2232
        %v2241 = vmul.f32 %v2221, %v2240
        %v2242 = vrcp.pop %v2235
        %v2243 = vmul.f32 %v2223, %v2242
        %2244 = vrot.lane.b32.xlu0 %v814, 32
        %v2245 = vpop.permute.xlu0 %2244
        %2246 = vrot.lane.b32.xlu0 %v819, 32
        %v2247 = vpop.permute.xlu0 %2246
        %v2251 = vsel %vm1007, %v2237, 0
        %v2254 = vsel %vm1007, %v2239, 0
        %2256 = vmatprep.subr.mxu0 0.0
        %2257 = vmatpush1.msra.mxu0 0.0
        %2258 = vmatprep.subr.mxu0 0.0
        %2259 = vmatpush1.msra.mxu0 0.0
        %2260 = vmatprep.subr.mxu0 0.0
        %2261 = vmatpush1.msra.mxu0 0.0
        %2262 = vmatprep.subr.mxu0 0.0
        %2263 = vmatpush1.msra.mxu0 0.0
        %2264 = vmatprep.subr.mxu0 0.0
        %2265 = vmatpush1.msra.mxu0 0.0
        %2266 = vmatprep.subr.mxu0 0.0
        %2267 = vmatpush1.msra.mxu0 0.0
        %2268 = vmatprep.subr.mxu0 0.0
        %2269 = vmatpush1.msra.mxu0 0.0
        %2270 = vmatprep.subr.mxu0 0.0
        %2271 = vmatpush1.msra.mxu0 0.0
        %2272 = vmatprep.subr.mxu0 0.0
        %2273 = vmatpush1.msra.mxu0 0.0
        %2274 = vmatprep.subr.mxu0 0.0
        %2275 = vmatpush1.msra.mxu0 0.0
        %2276 = vmatprep.subr.mxu0 0.0
        %2277 = vmatpush1.msra.mxu0 0.0
        %2278 = vmatprep.subr.mxu0 0.0
        %2279 = vmatpush1.msra.mxu0 0.0
        %2280 = vmatprep.subr.mxu0 0.0
        %2281 = vmatpush1.msra.mxu0 0.0
        %2282 = vmatprep.subr.mxu0 0.0
        %2283 = vmatpush1.msra.mxu0 0.0
        %2284 = vmatprep.subr.mxu0 0.0
        %2285 = vmatpush1.msra.mxu0 %v2247
        %2286 = vmatprep.subr.mxu0 0.0
        %2287 = vmatpush1.msra.mxu0 %v2245
        %2288 = vmatprep.subr.mxu0 0.0
        %2289 = vmatpush2.msra.mxu0 0.0
        %2290 = vmatprep.subr.mxu0 0.0
        %2291 = vmatpush2.msra.mxu0 0.0
        %2292 = vmatprep.subr.mxu0 0.0
        %2293 = vmatpush2.msra.mxu0 0.0
        %2294 = vmatprep.subr.mxu0 0.0
        %2295 = vmatpush2.msra.mxu0 0.0
        %2296 = vmatprep.subr.mxu0 0.0
        %2297 = vmatpush2.msra.mxu0 0.0
        %2298 = vmatprep.subr.mxu0 0.0
        %2299 = vmatpush2.msra.mxu0 0.0
        %2300 = vmatprep.subr.mxu0 0.0
        %2301 = vmatpush2.msra.mxu0 0.0
        %2302 = vmatprep.subr.mxu0 0.0
        %2303 = vmatpush2.msra.mxu0 0.0
        %2304 = vmatprep.subr.mxu0 0.0
        %2305 = vmatpush2.msra.mxu0 0.0
        %2306 = vmatprep.subr.mxu0 0.0
        %2307 = vmatpush2.msra.mxu0 0.0
        %2308 = vmatprep.subr.mxu0 0.0
        %2309 = vmatpush2.msra.mxu0 0.0
        %2310 = vmatprep.subr.mxu0 0.0
        %2311 = vmatpush2.msra.mxu0 0.0
        %2312 = vmatprep.subr.mxu0 0.0
        %2313 = vmatpush2.msra.mxu0 0.0
        %2314 = vmatprep.subr.mxu0 0.0
        %2315 = vmatpush2.msra.mxu0 0.0
        %2316 = vmatprep.subr.mxu0 0.0
        %2317 = vmatpush2.msra.mxu0 0.0
        %2318 = vmatprep.subr.mxu0 0.0
        %2319 = vmatpush2.msra.mxu0 0.0
        %2320 = vmatprep.mubr.f32.mxu0 0.0
        %2321 = vmatmul.mubr.f32.gmra.mxu0 %v2251
        %v2322 = vpop.f32.mrf.mxu0
        %v2323 = vadd.f32 0.0, %v2322
        %v2324 = vpop.f32.mrf.mxu0
        %2325 = vmatprep.mubr.f32.mxu0 0.0
        %2326 = vmatmul.mubr.f32.gmra.mxu0 %v2254
        %v2327 = vpop.f32.mrf.mxu0
        %v2328 = vadd.f32 0.0, %v2327
        %v2329 = vpop.f32.mrf.mxu0
        %2330 = vdwg.mxu0
        %2331 = vrot.lane.b32.xlu0 %v824, 32
        %v2332 = vpop.permute.xlu0 %2331
        %2333 = vrot.lane.b32.xlu0 %v829, 32
        %v2334 = vpop.permute.xlu0 %2333
        %v2338 = vsel %vm1007, %v2241, 0
        %v2341 = vsel %vm1007, %v2243, 0
        %2343 = vmatprep.subr.mxu0 0.0
        %2344 = vmatpush1.msra.mxu0 0.0
        %2345 = vmatprep.subr.mxu0 0.0
        %2346 = vmatpush1.msra.mxu0 0.0
        %2347 = vmatprep.subr.mxu0 0.0
        %2348 = vmatpush1.msra.mxu0 0.0
        %2349 = vmatprep.subr.mxu0 0.0
        %2350 = vmatpush1.msra.mxu0 0.0
        %2351 = vmatprep.subr.mxu0 0.0
        %2352 = vmatpush1.msra.mxu0 0.0
        %2353 = vmatprep.subr.mxu0 0.0
        %2354 = vmatpush1.msra.mxu0 0.0
        %2355 = vmatprep.subr.mxu0 0.0
        %2356 = vmatpush1.msra.mxu0 0.0
        %2357 = vmatprep.subr.mxu0 0.0
        %2358 = vmatpush1.msra.mxu0 0.0
        %2359 = vmatprep.subr.mxu0 0.0
        %2360 = vmatpush1.msra.mxu0 0.0
        %2361 = vmatprep.subr.mxu0 0.0
        %2362 = vmatpush1.msra.mxu0 0.0
        %2363 = vmatprep.subr.mxu0 0.0
        %2364 = vmatpush1.msra.mxu0 0.0
        %2365 = vmatprep.subr.mxu0 0.0
        %2366 = vmatpush1.msra.mxu0 0.0
        %2367 = vmatprep.subr.mxu0 0.0
        %2368 = vmatpush1.msra.mxu0 0.0
        %2369 = vmatprep.subr.mxu0 0.0
        %2370 = vmatpush1.msra.mxu0 0.0
        %2371 = vmatprep.subr.mxu0 0.0
        %2372 = vmatpush1.msra.mxu0 %v2334
        %2373 = vmatprep.subr.mxu0 0.0
        %2374 = vmatpush1.msra.mxu0 %v2332
        %2375 = vmatprep.subr.mxu0 0.0
        %2376 = vmatpush2.msra.mxu0 0.0
        %2377 = vmatprep.subr.mxu0 0.0
        %2378 = vmatpush2.msra.mxu0 0.0
        %2379 = vmatprep.subr.mxu0 0.0
        %2380 = vmatpush2.msra.mxu0 0.0
        %2381 = vmatprep.subr.mxu0 0.0
        %2382 = vmatpush2.msra.mxu0 0.0
        %2383 = vmatprep.subr.mxu0 0.0
        %2384 = vmatpush2.msra.mxu0 0.0
        %2385 = vmatprep.subr.mxu0 0.0
        %2386 = vmatpush2.msra.mxu0 0.0
        %2387 = vmatprep.subr.mxu0 0.0
        %2388 = vmatpush2.msra.mxu0 0.0
        %2389 = vmatprep.subr.mxu0 0.0
        %2390 = vmatpush2.msra.mxu0 0.0
        %2391 = vmatprep.subr.mxu0 0.0
        %2392 = vmatpush2.msra.mxu0 0.0
        %2393 = vmatprep.subr.mxu0 0.0
        %2394 = vmatpush2.msra.mxu0 0.0
        %2395 = vmatprep.subr.mxu0 0.0
        %2396 = vmatpush2.msra.mxu0 0.0
        %2397 = vmatprep.subr.mxu0 0.0
        %2398 = vmatpush2.msra.mxu0 0.0
        %2399 = vmatprep.subr.mxu0 0.0
        %2400 = vmatpush2.msra.mxu0 0.0
        %2401 = vmatprep.subr.mxu0 0.0
        %2402 = vmatpush2.msra.mxu0 0.0
        %2403 = vmatprep.subr.mxu0 0.0
        %2404 = vmatpush2.msra.mxu0 0.0
        %2405 = vmatprep.subr.mxu0 0.0
        %2406 = vmatpush2.msra.mxu0 0.0
        %2407 = vmatprep.mubr.f32.mxu0 0.0
        %2408 = vmatmul.mubr.f32.gmra.mxu0 %v2338
        %v2409 = vpop.f32.mrf.mxu0
        %v2410 = vadd.f32 0.0, %v2409
        %v2411 = vpop.f32.mrf.mxu0
        %2412 = vmatprep.mubr.f32.mxu0 0.0
        %2413 = vmatmul.mubr.f32.gmra.mxu0 %v2341
        %v2414 = vpop.f32.mrf.mxu0
        %v2415 = vadd.f32 0.0, %v2414
        %v2416 = vpop.f32.mrf.mxu0
        %2417 = vdwg.mxu0
        %2422 = vrot.lane.b32.xlu0 %v1521, 32
        %v2423 = vpop.permute.xlu0 %2422
        %2424 = vrot.lane.b32.xlu0 %v1526, 32
        %v2425 = vpop.permute.xlu0 %2424
        %2426 = vrot.lane.b32.xlu0 %v1610, 32
        %v2427 = vpop.permute.xlu0 %2426
        %2428 = vrot.lane.b32.xlu0 %v1615, 32
        %v2429 = vpop.permute.xlu0 %2428
        %2438 = vrot.lane.b32.xlu0 %v1923, 64
        %v2439 = vpop.permute.xlu0 %2438
        %2440 = vrot.lane.b32.xlu0 %v1928, 64
        %v2441 = vpop.permute.xlu0 %2440
        %2442 = vrot.lane.b32.xlu0 %v2010, 64
        %v2443 = vpop.permute.xlu0 %2442
        %2444 = vrot.lane.b32.xlu0 %v2015, 64
        %v2445 = vpop.permute.xlu0 %2444
        %2454 = vrot.lane.b32.xlu0 %v2323, 96
        %v2455 = vpop.permute.xlu0 %2454
        %2456 = vrot.lane.b32.xlu0 %v2328, 96
        %v2457 = vpop.permute.xlu0 %2456
        %2458 = vrot.lane.b32.xlu0 %v2410, 96
        %v2459 = vpop.permute.xlu0 %2458
        %2460 = vrot.lane.b32.xlu0 %v2415, 96
        %v2461 = vpop.permute.xlu0 %2460
        %v2466 = vsel %vm832, %v1125, %v2423
        %v2467 = vsel %vm832, %v1130, %v2425
        %v2468 = vsel %vm832, %v1206, %v2427
        %v2469 = vsel %vm832, %v1211, %v2429
        %vm2470 = vcmask 523264
        %v2471 = vsel %vm2470, %v2466, %v2439
        %v2472 = vsel %vm2470, %v2467, %v2441
        %v2473 = vsel %vm2470, %v2468, %v2443
        %v2474 = vsel %vm2470, %v2469, %v2445
        %vm2475 = vcmask 785408
        %v2476 = vsel %vm2475, %v2471, %v2455
        %v2477 = vsel %vm2475, %v2472, %v2457
        %v2478 = vsel %vm2475, %v2473, %v2459
        %v2479 = vsel %vm2475, %v2474, %v2461
        %v2480 = vld [vmem:[%s565] sm:$0x3f]
        %v2481 = vld [vmem:[%s472] sm:$0xff]
        %v2482 = vld [vmem:[%s472 + $0x8] sm:$0xff]
        %v2483 = vld [vmem:[%s472 + $0x10] sm:$0xff]
        %v2484 = vld [vmem:[%s472 + $0x18] sm:$0xff]
        %v2485 = vld [vmem:[%s472 + $0x20] sm:$0xff]
        %v2486 = vld [vmem:[%s472 + $0x28] sm:$0xff]
        %v2487 = vld [vmem:[%s472 + $0x30] sm:$0xff]
        %v2488 = vld [vmem:[%s472 + $0x38] sm:$0xff]
        %v2489 = vld [vmem:[%s472 + $0x40] sm:$0xff]
        %v2490 = vld [vmem:[%s472 + $0x48] sm:$0xff]
        %v2491 = vld [vmem:[%s472 + $0x50] sm:$0xff]
        %v2492 = vld [vmem:[%s472 + $0x58] sm:$0xff]
        %v2493 = vld [vmem:[%s472 + $0x60] sm:$0xff]
        %v2494 = vld [vmem:[%s472 + $0x68] sm:$0xff]
        %v2495 = vld [vmem:[%s472 + $0x70] sm:$0xff]
        %v2496 = vld [vmem:[%s472 + $0x78] sm:$0xff]
        %2497 = vmatprep.subr.mxu0 0.0
        %2498 = vmatpush1.msra.mxu0 %v2496
        %2499 = vmatprep.subr.mxu0 0.0
        %2500 = vmatpush1.msra.mxu0 %v2495
        %2501 = vmatprep.subr.mxu0 0.0
        %2502 = vmatpush1.msra.mxu0 %v2494
        %2503 = vmatprep.subr.mxu0 0.0
        %2504 = vmatpush1.msra.mxu0 %v2493
        %2505 = vmatprep.subr.mxu0 0.0
        %2506 = vmatpush1.msra.mxu0 %v2492
        %2507 = vmatprep.subr.mxu0 0.0
        %2508 = vmatpush1.msra.mxu0 %v2491
        %2509 = vmatprep.subr.mxu0 0.0
        %2510 = vmatpush1.msra.mxu0 %v2490
        %2511 = vmatprep.subr.mxu0 0.0
        %2512 = vmatpush1.msra.mxu0 %v2489
        %2513 = vmatprep.subr.mxu0 0.0
        %2514 = vmatpush1.msra.mxu0 %v2488
        %2515 = vmatprep.subr.mxu0 0.0
        %2516 = vmatpush1.msra.mxu0 %v2487
        %2517 = vmatprep.subr.mxu0 0.0
        %2518 = vmatpush1.msra.mxu0 %v2486
        %2519 = vmatprep.subr.mxu0 0.0
        %2520 = vmatpush1.msra.mxu0 %v2485
        %2521 = vmatprep.subr.mxu0 0.0
        %2522 = vmatpush1.msra.mxu0 %v2484
        %2523 = vmatprep.subr.mxu0 0.0
        %2524 = vmatpush1.msra.mxu0 %v2483
        %2525 = vmatprep.subr.mxu0 0.0
        %2526 = vmatpush1.msra.mxu0 %v2482
        %2527 = vmatprep.subr.mxu0 0.0
        %2528 = vmatpush1.msra.mxu0 %v2481
        %2529 = vmatprep.subr.mxu0 0.0
        %2530 = vmatpush2.msra.mxu0 0.0
        %2531 = vmatprep.subr.mxu0 0.0
        %2532 = vmatpush2.msra.mxu0 0.0
        %2533 = vmatprep.subr.mxu0 0.0
        %2534 = vmatpush2.msra.mxu0 0.0
        %2535 = vmatprep.subr.mxu0 0.0
        %2536 = vmatpush2.msra.mxu0 0.0
        %2537 = vmatprep.subr.mxu0 0.0
        %2538 = vmatpush2.msra.mxu0 0.0
        %2539 = vmatprep.subr.mxu0 0.0
        %2540 = vmatpush2.msra.mxu0 0.0
        %2541 = vmatprep.subr.mxu0 0.0
        %2542 = vmatpush2.msra.mxu0 0.0
        %2543 = vmatprep.subr.mxu0 0.0
        %2544 = vmatpush2.msra.mxu0 0.0
        %2545 = vmatprep.subr.mxu0 0.0
        %2546 = vmatpush2.msra.mxu0 0.0
        %2547 = vmatprep.subr.mxu0 0.0
        %2548 = vmatpush2.msra.mxu0 0.0
        %2549 = vmatprep.subr.mxu0 0.0
        %2550 = vmatpush2.msra.mxu0 0.0
        %2551 = vmatprep.subr.mxu0 0.0
        %2552 = vmatpush2.msra.mxu0 0.0
        %2553 = vmatprep.subr.mxu0 0.0
        %2554 = vmatpush2.msra.mxu0 0.0
        %2555 = vmatprep.subr.mxu0 0.0
        %2556 = vmatpush2.msra.mxu0 0.0
        %2557 = vmatprep.subr.mxu0 0.0
        %2558 = vmatpush2.msra.mxu0 0.0
        %2559 = vmatprep.subr.mxu0 0.0
        %2560 = vmatpush2.msra.mxu0 0.0
        %2561 = vmatprep.mubr.f32.mxu0 0.0
        %2562 = vmatmul.mubr.f32.gmra.mxu0 %v2476
        %v2563 = vpop.f32.mrf.mxu0
        %v2564 = vadd.f32 0.0, %v2563
        %v2565 = vpop.f32.mrf.mxu0
        %2566 = vmatprep.mubr.f32.mxu0 0.0
        %2567 = vmatmul.mubr.f32.gmra.mxu0 %v2477
        %v2568 = vpop.f32.mrf.mxu0
        %v2569 = vadd.f32 0.0, %v2568
        %v2570 = vpop.f32.mrf.mxu0
        %2571 = vmatprep.mubr.f32.mxu0 0.0
        %2572 = vmatmul.mubr.f32.gmra.mxu0 %v2478
        %v2573 = vpop.f32.mrf.mxu0
        %v2574 = vadd.f32 0.0, %v2573
        %v2575 = vpop.f32.mrf.mxu0
        %2576 = vmatprep.mubr.f32.mxu0 0.0
        %2577 = vmatmul.mubr.f32.gmra.mxu0 %v2479
        %v2578 = vpop.f32.mrf.mxu0
        %v2579 = vadd.f32 0.0, %v2578
        %v2580 = vpop.f32.mrf.mxu0
        %2581 = vdwg.mxu0
        %v2582 = vadd.f32 %v589, %v2564
        %v2583 = vadd.f32 %v590, %v2569
        %v2584 = vadd.f32 %v591, %v2574
        %v2585 = vadd.f32 %v592, %v2579
        %v2586 = vlaneseq
        %v2587 = vshrl.u32 %v2586, 7
        %v2588 = vsub.s32 0, %v2587
        %v2589 = vrot.slane %v2480, %v2588
        %v2590 = vadd.f32 %v2582, %v2589
        %v2591 = vadd.f32 %v2583, %v2589
        %v2592 = vadd.f32 %v2584, %v2589
        %v2593 = vadd.f32 %v2585, %v2589
        %2594 = vadd.xlane.f32.xlu0 %v2590
        %v2595 = vpop.xlane.xlu0 %2594
        %2596 = vadd.xlane.f32.xlu0 %v2591
        %v2597 = vpop.xlane.xlu0 %2596
        %2598 = vadd.xlane.f32.xlu0 %v2592
        %v2599 = vpop.xlane.xlu0 %2598
        %2600 = vadd.xlane.f32.xlu0 %v2593
        %v2601 = vpop.xlane.xlu0 %2600
        %v2602 = vrcp.pop 128.0
        %v2603 = vmul.f32 %v2595, %v2602
        %v2604 = vmul.f32 %v2597, %v2602
        %v2605 = vmul.f32 %v2599, %v2602
        %v2606 = vmul.f32 %v2601, %v2602
        %v2607 = vsub.f32 %v2590, %v2603
        %v2608 = vsub.f32 %v2591, %v2604
        %v2609 = vsub.f32 %v2592, %v2605
        %v2610 = vsub.f32 %v2593, %v2606
        %v2611 = vmul.f32 %v2607, %v2607
        %v2612 = vmul.f32 %v2608, %v2608
        %v2613 = vmul.f32 %v2609, %v2609
        %v2614 = vmul.f32 %v2610, %v2610
        %2615 = vadd.xlane.f32.xlu0 %v2611
        %v2616 = vpop.xlane.xlu0 %2615
        %2617 = vadd.xlane.f32.xlu0 %v2612
        %v2618 = vpop.xlane.xlu0 %2617
        %2619 = vadd.xlane.f32.xlu0 %v2613
        %v2620 = vpop.xlane.xlu0 %2619
        %2621 = vadd.xlane.f32.xlu0 %v2614
        %v2622 = vpop.xlane.xlu0 %2621
        %v2623 = vmul.f32 %v2616, %v2602
        %v2624 = vmul.f32 %v2618, %v2602
        %v2625 = vmul.f32 %v2620, %v2602
        %v2626 = vmul.f32 %v2622, %v2602
        %v2627 = vadd.f32 %v2623, 1e-05
        %v2628 = vadd.f32 %v2624, 1e-05
        %v2629 = vadd.f32 %v2625, 1e-05
        %v2630 = vadd.f32 %v2626, 1e-05
        %v2631 = vrsqrt.pop %v2627
        %v2632 = vrsqrt.pop %v2628
        %v2633 = vrsqrt.pop %v2629
        %v2634 = vrsqrt.pop %v2630
        %v2635 = vmul.f32 %v2607, %v2631
        %v2636 = vmul.f32 %v2608, %v2632
        %v2637 = vmul.f32 %v2609, %v2633
        %v2638 = vmul.f32 %v2610, %v2634
        %v2639 = vlaneseq
        %v2640 = vshrl.u32 %v2639, 7
        %v2641 = vsub.s32 1, %v2640
        %v2642 = vrot.slane %v2480, %v2641
        %v2643 = vmul.f32 %v2635, %v2642
        %v2644 = vmul.f32 %v2636, %v2642
        %v2645 = vmul.f32 %v2637, %v2642
        %v2646 = vmul.f32 %v2638, %v2642
        %v2647 = vlaneseq
        %v2648 = vshrl.u32 %v2647, 7
        %v2649 = vsub.s32 2, %v2648
        %v2650 = vrot.slane %v2480, %v2649
        %v2651 = vadd.f32 %v2643, %v2650
        %v2652 = vadd.f32 %v2644, %v2650
        %v2653 = vadd.f32 %v2645, %v2650
        %v2654 = vadd.f32 %v2646, %v2650
        %v2655 = vld [vmem:[%s481] sm:$0xff]
        %v2656 = vld [vmem:[%s481 + $0x8] sm:$0xff]
        %v2657 = vld [vmem:[%s481 + $0x10] sm:$0xff]
        %v2658 = vld [vmem:[%s481 + $0x18] sm:$0xff]
        %v2659 = vld [vmem:[%s481 + $0x20] sm:$0xff]
        %v2660 = vld [vmem:[%s481 + $0x28] sm:$0xff]
        %v2661 = vld [vmem:[%s481 + $0x30] sm:$0xff]
        %v2662 = vld [vmem:[%s481 + $0x38] sm:$0xff]
        %v2663 = vld [vmem:[%s481 + $0x40] sm:$0xff]
        %v2664 = vld [vmem:[%s481 + $0x48] sm:$0xff]
        %v2665 = vld [vmem:[%s481 + $0x50] sm:$0xff]
        %v2666 = vld [vmem:[%s481 + $0x58] sm:$0xff]
        %v2667 = vld [vmem:[%s481 + $0x60] sm:$0xff]
        %v2668 = vld [vmem:[%s481 + $0x68] sm:$0xff]
        %v2669 = vld [vmem:[%s481 + $0x70] sm:$0xff]
        %v2670 = vld [vmem:[%s481 + $0x78] sm:$0xff]
        %v2671 = vld [vmem:[%s481 + $0x80] sm:$0xff]
        %v2672 = vld [vmem:[%s481 + $0x88] sm:$0xff]
        %v2673 = vld [vmem:[%s481 + $0x90] sm:$0xff]
        %v2674 = vld [vmem:[%s481 + $0x98] sm:$0xff]
        %v2675 = vld [vmem:[%s481 + $0xa0] sm:$0xff]
        %v2676 = vld [vmem:[%s481 + $0xa8] sm:$0xff]
        %v2677 = vld [vmem:[%s481 + $0xb0] sm:$0xff]
        %v2678 = vld [vmem:[%s481 + $0xb8] sm:$0xff]
        %v2679 = vld [vmem:[%s481 + $0xc0] sm:$0xff]
        %v2680 = vld [vmem:[%s481 + $0xc8] sm:$0xff]
        %v2681 = vld [vmem:[%s481 + $0xd0] sm:$0xff]
        %v2682 = vld [vmem:[%s481 + $0xd8] sm:$0xff]
        %v2683 = vld [vmem:[%s481 + $0xe0] sm:$0xff]
        %v2684 = vld [vmem:[%s481 + $0xe8] sm:$0xff]
        %v2685 = vld [vmem:[%s481 + $0xf0] sm:$0xff]
        %v2686 = vld [vmem:[%s481 + $0xf8] sm:$0xff]
        %v2687 = vld [vmem:[%s569] sm:$0x3]
        %v2689 = vlaneseq
        %v2690 = vshrl.u32 %v2689, 7
        %v2691 = vsub.s32 0, %v2690
        %v2692 = vrot.slane %v2687, %v2691
        %v2693 = vlaneseq
        %v2694 = vshrl.u32 %v2693, 7
        %v2695 = vsub.s32 1, %v2694
        %v2696 = vrot.slane %v2687, %v2695
        %2699 = vmatprep.subr.mxu0 %v2686
        %2700 = vmatpush1.msra.mxu0 %v2685
        %2701 = vmatprep.subr.mxu0 %v2684
        %2702 = vmatpush1.msra.mxu0 %v2683
        %2703 = vmatprep.subr.mxu0 %v2682
        %2704 = vmatpush1.msra.mxu0 %v2681
        %2705 = vmatprep.subr.mxu0 %v2680
        %2706 = vmatpush1.msra.mxu0 %v2679
        %2707 = vmatprep.subr.mxu0 %v2678
        %2708 = vmatpush1.msra.mxu0 %v2677
        %2709 = vmatprep.subr.mxu0 %v2676
        %2710 = vmatpush1.msra.mxu0 %v2675
        %2711 = vmatprep.subr.mxu0 %v2674
        %2712 = vmatpush1.msra.mxu0 %v2673
        %2713 = vmatprep.subr.mxu0 %v2672
        %2714 = vmatpush1.msra.mxu0 %v2671
        %2715 = vmatprep.subr.mxu0 %v2670
        %2716 = vmatpush1.msra.mxu0 %v2669
        %2717 = vmatprep.subr.mxu0 %v2668
        %2718 = vmatpush1.msra.mxu0 %v2667
        %2719 = vmatprep.subr.mxu0 %v2666
        %2720 = vmatpush1.msra.mxu0 %v2665
        %2721 = vmatprep.subr.mxu0 %v2664
        %2722 = vmatpush1.msra.mxu0 %v2663
        %2723 = vmatprep.subr.mxu0 %v2662
        %2724 = vmatpush1.msra.mxu0 %v2661
        %2725 = vmatprep.subr.mxu0 %v2660
        %2726 = vmatpush1.msra.mxu0 %v2659
        %2727 = vmatprep.subr.mxu0 %v2658
        %2728 = vmatpush1.msra.mxu0 %v2657
        %2729 = vmatprep.subr.mxu0 %v2656
        %2730 = vmatpush1.msra.mxu0 %v2655
        %2731 = vmatprep.subr.mxu0 0.0
        %2732 = vmatpush2.msra.mxu0 0.0
        %2733 = vmatprep.subr.mxu0 0.0
        %2734 = vmatpush2.msra.mxu0 0.0
        %2735 = vmatprep.subr.mxu0 0.0
        %2736 = vmatpush2.msra.mxu0 0.0
        %2737 = vmatprep.subr.mxu0 0.0
        %2738 = vmatpush2.msra.mxu0 0.0
        %2739 = vmatprep.subr.mxu0 0.0
        %2740 = vmatpush2.msra.mxu0 0.0
        %2741 = vmatprep.subr.mxu0 0.0
        %2742 = vmatpush2.msra.mxu0 0.0
        %2743 = vmatprep.subr.mxu0 0.0
        %2744 = vmatpush2.msra.mxu0 0.0
        %2745 = vmatprep.subr.mxu0 0.0
        %2746 = vmatpush2.msra.mxu0 0.0
        %2747 = vmatprep.subr.mxu0 0.0
        %2748 = vmatpush2.msra.mxu0 0.0
        %2749 = vmatprep.subr.mxu0 0.0
        %2750 = vmatpush2.msra.mxu0 0.0
        %2751 = vmatprep.subr.mxu0 0.0
        %2752 = vmatpush2.msra.mxu0 0.0
        %2753 = vmatprep.subr.mxu0 0.0
        %2754 = vmatpush2.msra.mxu0 0.0
        %2755 = vmatprep.subr.mxu0 0.0
        %2756 = vmatpush2.msra.mxu0 0.0
        %2757 = vmatprep.subr.mxu0 0.0
        %2758 = vmatpush2.msra.mxu0 0.0
        %2759 = vmatprep.subr.mxu0 0.0
        %2760 = vmatpush2.msra.mxu0 0.0
        %2761 = vmatprep.subr.mxu0 0.0
        %2762 = vmatpush2.msra.mxu0 0.0
        %2763 = vmatprep.mubr.f32.mxu0 0.0
        %2764 = vmatmul.mubr.f32.gmra.mxu0 %v2651
        %v2765 = vpop.f32.mrf.mxu0
        %v2766 = vadd.f32 %v2692, %v2765
        %v2767 = vpop.f32.mrf.mxu0
        %v2768 = vadd.f32 %v2696, %v2767
        %2769 = vmatprep.mubr.f32.mxu0 0.0
        %2770 = vmatmul.mubr.f32.gmra.mxu0 %v2652
        %v2771 = vpop.f32.mrf.mxu0
        %v2772 = vadd.f32 %v2692, %v2771
        %v2773 = vpop.f32.mrf.mxu0
        %v2774 = vadd.f32 %v2696, %v2773
        %2775 = vmatprep.mubr.f32.mxu0 0.0
        %2776 = vmatmul.mubr.f32.gmra.mxu0 %v2653
        %v2777 = vpop.f32.mrf.mxu0
        %v2778 = vadd.f32 %v2692, %v2777
        %v2779 = vpop.f32.mrf.mxu0
        %v2780 = vadd.f32 %v2696, %v2779
        %2781 = vmatprep.mubr.f32.mxu0 0.0
        %2782 = vmatmul.mubr.f32.gmra.mxu0 %v2654
        %v2783 = vpop.f32.mrf.mxu0
        %v2784 = vadd.f32 %v2692, %v2783
        %v2785 = vpop.f32.mrf.mxu0
        %v2786 = vadd.f32 %v2696, %v2785
        %2787 = vdwg.mxu0
        %v2788 = vmax.f32 %v2766, 0.0
        %v2789 = vmax.f32 %v2768, 0.0
        %v2790 = vmax.f32 %v2772, 0.0
        %v2791 = vmax.f32 %v2774, 0.0
        %v2792 = vmax.f32 %v2778, 0.0
        %v2793 = vmax.f32 %v2780, 0.0
        %v2794 = vmax.f32 %v2784, 0.0
        %v2795 = vmax.f32 %v2786, 0.0
        %v2796 = vld [vmem:[%s490] sm:$0xff]
        %v2797 = vld [vmem:[%s490 + $0x8] sm:$0xff]
        %v2798 = vld [vmem:[%s490 + $0x10] sm:$0xff]
        %v2799 = vld [vmem:[%s490 + $0x18] sm:$0xff]
        %v2800 = vld [vmem:[%s490 + $0x20] sm:$0xff]
        %v2801 = vld [vmem:[%s490 + $0x28] sm:$0xff]
        %v2802 = vld [vmem:[%s490 + $0x30] sm:$0xff]
        %v2803 = vld [vmem:[%s490 + $0x38] sm:$0xff]
        %v2804 = vld [vmem:[%s490 + $0x40] sm:$0xff]
        %v2805 = vld [vmem:[%s490 + $0x48] sm:$0xff]
        %v2806 = vld [vmem:[%s490 + $0x50] sm:$0xff]
        %v2807 = vld [vmem:[%s490 + $0x58] sm:$0xff]
        %v2808 = vld [vmem:[%s490 + $0x60] sm:$0xff]
        %v2809 = vld [vmem:[%s490 + $0x68] sm:$0xff]
        %v2810 = vld [vmem:[%s490 + $0x70] sm:$0xff]
        %v2811 = vld [vmem:[%s490 + $0x78] sm:$0xff]
        %v2812 = vld [vmem:[%s490 + $0x80] sm:$0xff]
        %v2813 = vld [vmem:[%s490 + $0x88] sm:$0xff]
        %v2814 = vld [vmem:[%s490 + $0x90] sm:$0xff]
        %v2815 = vld [vmem:[%s490 + $0x98] sm:$0xff]
        %v2816 = vld [vmem:[%s490 + $0xa0] sm:$0xff]
        %v2817 = vld [vmem:[%s490 + $0xa8] sm:$0xff]
        %v2818 = vld [vmem:[%s490 + $0xb0] sm:$0xff]
        %v2819 = vld [vmem:[%s490 + $0xb8] sm:$0xff]
        %v2820 = vld [vmem:[%s490 + $0xc0] sm:$0xff]
        %v2821 = vld [vmem:[%s490 + $0xc8] sm:$0xff]
        %v2822 = vld [vmem:[%s490 + $0xd0] sm:$0xff]
        %v2823 = vld [vmem:[%s490 + $0xd8] sm:$0xff]
        %v2824 = vld [vmem:[%s490 + $0xe0] sm:$0xff]
        %v2825 = vld [vmem:[%s490 + $0xe8] sm:$0xff]
        %v2826 = vld [vmem:[%s490 + $0xf0] sm:$0xff]
        %v2827 = vld [vmem:[%s490 + $0xf8] sm:$0xff]
        %v2828 = vlaneseq
        %v2829 = vshrl.u32 %v2828, 7
        %v2830 = vsub.s32 3, %v2829
        %v2831 = vrot.slane %v2480, %v2830
        %2832 = vmatprep.subr.mxu0 0.0
        %2833 = vmatpush1.msra.mxu0 %v2811
        %2834 = vmatprep.subr.mxu0 0.0
        %2835 = vmatpush1.msra.mxu0 %v2810
        %2836 = vmatprep.subr.mxu0 0.0
        %2837 = vmatpush1.msra.mxu0 %v2809
        %2838 = vmatprep.subr.mxu0 0.0
        %2839 = vmatpush1.msra.mxu0 %v2808
        %2840 = vmatprep.subr.mxu0 0.0
        %2841 = vmatpush1.msra.mxu0 %v2807
        %2842 = vmatprep.subr.mxu0 0.0
        %2843 = vmatpush1.msra.mxu0 %v2806
        %2844 = vmatprep.subr.mxu0 0.0
        %2845 = vmatpush1.msra.mxu0 %v2805
        %2846 = vmatprep.subr.mxu0 0.0
        %2847 = vmatpush1.msra.mxu0 %v2804
        %2848 = vmatprep.subr.mxu0 0.0
        %2849 = vmatpush1.msra.mxu0 %v2803
        %2850 = vmatprep.subr.mxu0 0.0
        %2851 = vmatpush1.msra.mxu0 %v2802
        %2852 = vmatprep.subr.mxu0 0.0
        %2853 = vmatpush1.msra.mxu0 %v2801
        %2854 = vmatprep.subr.mxu0 0.0
        %2855 = vmatpush1.msra.mxu0 %v2800
        %2856 = vmatprep.subr.mxu0 0.0
        %2857 = vmatpush1.msra.mxu0 %v2799
        %2858 = vmatprep.subr.mxu0 0.0
        %2859 = vmatpush1.msra.mxu0 %v2798
        %2860 = vmatprep.subr.mxu0 0.0
        %2861 = vmatpush1.msra.mxu0 %v2797
        %2862 = vmatprep.subr.mxu0 0.0
        %2863 = vmatpush1.msra.mxu0 %v2796
        %2864 = vmatprep.subr.mxu0 0.0
        %2865 = vmatpush2.msra.mxu0 %v2827
        %2866 = vmatprep.subr.mxu0 0.0
        %2867 = vmatpush2.msra.mxu0 %v2826
        %2868 = vmatprep.subr.mxu0 0.0
        %2869 = vmatpush2.msra.mxu0 %v2825
        %2870 = vmatprep.subr.mxu0 0.0
        %2871 = vmatpush2.msra.mxu0 %v2824
        %2872 = vmatprep.subr.mxu0 0.0
        %2873 = vmatpush2.msra.mxu0 %v2823
        %2874 = vmatprep.subr.mxu0 0.0
        %2875 = vmatpush2.msra.mxu0 %v2822
        %2876 = vmatprep.subr.mxu0 0.0
        %2877 = vmatpush2.msra.mxu0 %v2821
        %2878 = vmatprep.subr.mxu0 0.0
        %2879 = vmatpush2.msra.mxu0 %v2820
        %2880 = vmatprep.subr.mxu0 0.0
        %2881 = vmatpush2.msra.mxu0 %v2819
        %2882 = vmatprep.subr.mxu0 0.0
        %2883 = vmatpush2.msra.mxu0 %v2818
        %2884 = vmatprep.subr.mxu0 0.0
        %2885 = vmatpush2.msra.mxu0 %v2817
        %2886 = vmatprep.subr.mxu0 0.0
        %2887 = vmatpush2.msra.mxu0 %v2816
        %2888 = vmatprep.subr.mxu0 0.0
        %2889 = vmatpush2.msra.mxu0 %v2815
        %2890 = vmatprep.subr.mxu0 0.0
        %2891 = vmatpush2.msra.mxu0 %v2814
        %2892 = vmatprep.subr.mxu0 0.0
        %2893 = vmatpush2.msra.mxu0 %v2813
        %2894 = vmatprep.subr.mxu0 0.0
        %2895 = vmatpush2.msra.mxu0 %v2812
        %2896 = vmatprep.mubr.f32.mxu0 %v2789
        %2897 = vmatmul.mubr.f32.gmra.mxu0 %v2788
        %v2898 = vpop.f32.mrf.mxu0
        %v2899 = vadd.f32 %v2831, %v2898
        %v2900 = vpop.f32.mrf.mxu0
        %2901 = vmatprep.mubr.f32.mxu0 %v2791
        %2902 = vmatmul.mubr.f32.gmra.mxu0 %v2790
        %v2903 = vpop.f32.mrf.mxu0
        %v2904 = vadd.f32 %v2831, %v2903
        %v2905 = vpop.f32.mrf.mxu0
        %2906 = vmatprep.mubr.f32.mxu0 %v2793
        %2907 = vmatmul.mubr.f32.gmra.mxu0 %v2792
        %v2908 = vpop.f32.mrf.mxu0
        %v2909 = vadd.f32 %v2831, %v2908
        %v2910 = vpop.f32.mrf.mxu0
        %2911 = vmatprep.mubr.f32.mxu0 %v2795
        %2912 = vmatmul.mubr.f32.gmra.mxu0 %v2794
        %v2913 = vpop.f32.mrf.mxu0
        %v2914 = vadd.f32 %v2831, %v2913
        %v2915 = vpop.f32.mrf.mxu0
        %2916 = vdwg.mxu0
        %v2917 = vadd.f32 %v2651, %v2899
        %v2918 = vadd.f32 %v2652, %v2904
        %v2919 = vadd.f32 %v2653, %v2909
        %v2920 = vadd.f32 %v2654, %v2914
        %2921 = vadd.xlane.f32.xlu0 %v2917
        %v2922 = vpop.xlane.xlu0 %2921
        %2923 = vadd.xlane.f32.xlu0 %v2918
        %v2924 = vpop.xlane.xlu0 %2923
        %2925 = vadd.xlane.f32.xlu0 %v2919
        %v2926 = vpop.xlane.xlu0 %2925
        %2927 = vadd.xlane.f32.xlu0 %v2920
        %v2928 = vpop.xlane.xlu0 %2927
        %v2929 = vmul.f32 %v2922, %v2602
        %v2930 = vmul.f32 %v2924, %v2602
        %v2931 = vmul.f32 %v2926, %v2602
        %v2932 = vmul.f32 %v2928, %v2602
        %v2933 = vsub.f32 %v2917, %v2929
        %v2934 = vsub.f32 %v2918, %v2930
        %v2935 = vsub.f32 %v2919, %v2931
        %v2936 = vsub.f32 %v2920, %v2932
        %v2937 = vmul.f32 %v2933, %v2933
        %v2938 = vmul.f32 %v2934, %v2934
        %v2939 = vmul.f32 %v2935, %v2935
        %v2940 = vmul.f32 %v2936, %v2936
        %2941 = vadd.xlane.f32.xlu0 %v2937
        %v2942 = vpop.xlane.xlu0 %2941
        %2943 = vadd.xlane.f32.xlu0 %v2938
        %v2944 = vpop.xlane.xlu0 %2943
        %2945 = vadd.xlane.f32.xlu0 %v2939
        %v2946 = vpop.xlane.xlu0 %2945
        %2947 = vadd.xlane.f32.xlu0 %v2940
        %v2948 = vpop.xlane.xlu0 %2947
        %v2949 = vmul.f32 %v2942, %v2602
        %v2950 = vmul.f32 %v2944, %v2602
        %v2951 = vmul.f32 %v2946, %v2602
        %v2952 = vmul.f32 %v2948, %v2602
        %v2953 = vadd.f32 %v2949, 1e-05
        %v2954 = vadd.f32 %v2950, 1e-05
        %v2955 = vadd.f32 %v2951, 1e-05
        %v2956 = vadd.f32 %v2952, 1e-05
        %v2957 = vrsqrt.pop %v2953
        %v2958 = vrsqrt.pop %v2954
        %v2959 = vrsqrt.pop %v2955
        %v2960 = vrsqrt.pop %v2956
        %v2961 = vmul.f32 %v2933, %v2957
        %v2962 = vmul.f32 %v2934, %v2958
        %v2963 = vmul.f32 %v2935, %v2959
        %v2964 = vmul.f32 %v2936, %v2960
        %v2965 = vlaneseq
        %v2966 = vshrl.u32 %v2965, 7
        %v2967 = vsub.s32 4, %v2966
        %v2968 = vrot.slane %v2480, %v2967
        %v2969 = vmul.f32 %v2961, %v2968
        %v2970 = vmul.f32 %v2962, %v2968
        %v2971 = vmul.f32 %v2963, %v2968
        %v2972 = vmul.f32 %v2964, %v2968
        %v2973 = vlaneseq
        %v2974 = vshrl.u32 %v2973, 7
        %v2975 = vsub.s32 5, %v2974
        %v2976 = vrot.slane %v2480, %v2975
        %v2977 = vadd.f32 %v2969, %v2976
        %v2978 = vadd.f32 %v2970, %v2976
        %v2979 = vadd.f32 %v2971, %v2976
        %v2980 = vadd.f32 %v2972, %v2976
        %2981 = vst [vmem:[#allocation2] sm:$0xff] %v2977
        %2982 = vst [vmem:[#allocation2 + $0x8] sm:$0xff] %v2978
        %2983 = vst [vmem:[#allocation2 + $0x10] sm:$0xff] %v2979
        %2984 = vst [vmem:[#allocation2 + $0x18] sm:$0xff] %v2980
        %p2985 = scmp.eq.s32.totalorder %s37, 1
        // Predicated region
        $region81: #{tpu_custom_call.1} parent=55 // pred_check
          %p2986 = pneg %p2985
        $region82: #{tpu_custom_call.1} parent=55 // pred_check_branch
          %2988 = sbr.rel (%p2986) target = $region84
        $region83: #{tpu_custom_call.1} parent=55 // pred_region
          %2989 = vst [vmem:[%s556] sm:$0xff] %v2977
          %2990 = vst [vmem:[%s556 + $0x8] sm:$0xff] %v2978
          %2991 = vst [vmem:[%s556 + $0x10] sm:$0xff] %v2979
          %2992 = vst [vmem:[%s556 + $0x18] sm:$0xff] %v2980
        $region84: #{tpu_custom_call.1} parent=55 // pred_fallthru
          _
        %s2993 = sand.u32 %s281, 1
        %s2994 = scalar_lea.sflag [#allocation5], %s2993
        %s2995 = sand.u32 %s281, 1
        %s2996 = smul.addr %s2995, 32
        %s2997 = scalar_lea.vmem [#allocation12], %s2996
        // Predicated region
        $region85: #{tpu_custom_call.1} parent=55 // pred_check
          %p2998 = pneg %p291
        $region86: #{tpu_custom_call.1} parent=55 // pred_check_branch
          %3000 = sbr.rel (%p2998) target = $region88
        $region87: #{tpu_custom_call.1} parent=55 // pred_region
          %s3001 = smul.u32 2, %s36
          %s3003 = ssub.s32 512, 512
          %3004 = vsyncadd %s2994, %s3003
          %s3005 = smul.addr %s3001, 2
          %s3006 = smul.addr %s3005, 128
          %s3007 = scalar_lea.hbm %s9, %s3006
          %s3008 = sshll.u32 %s2997, 4
          %s3009 = int_to_ptr.vmem [resolvable:$true] %s3008
          %3014 = dma.vmem_to_hbm [thread:$0]  %s3009, 512, %s3007, %s2994, 128, 128, 8
        $region88: #{tpu_custom_call.1} parent=55 // pred_fallthru
          _
      $region56: #{tpu_custom_call.1} parent=5 // pred_fallthru
        _
      %p3015 = scmp.le.s32.totalorder 2, %s27
      // Predicated region
      $region89: #{tpu_custom_call.1} parent=5 // pred_check
        %p3016 = pneg %p3015
      $region90: #{tpu_custom_call.1} parent=5 // pred_check_branch
        %3018 = sbr.rel (%p3016) target = $region92
      $region91: #{tpu_custom_call.1} parent=5 // pred_region
        %s3019 = ssub.s32 %s27, 2
        // Predicated region
        $region93: #{tpu_custom_call.1} parent=91 // pred_check
          %p3020 = pneg %p297
        $region94: #{tpu_custom_call.1} parent=91 // pred_check_branch
          %3022 = sbr.rel (%p3020) target = $region96
        $region95: #{tpu_custom_call.1} parent=91 // pred_region
          %s3023 = sand.u32 %s282, 1
          %s3024 = scalar_lea.sflag [#allocation5], %s3023
          %s3025 = sand.u32 %s282, 1
          %s3026 = smul.addr %s3025, 32
          %s3027 = scalar_lea.vmem [#allocation12], %s3026
          %3028 = dma.done %s3024, 512
        $region96: #{tpu_custom_call.1} parent=91 // pred_fallthru
          _
      $region92: #{tpu_custom_call.1} parent=5 // pred_fallthru
        _
    $region6: #{tpu_custom_call.1} parent=1 // loop_footer
      %s31 = sadd.s32 1, %s27
    $region7: #{tpu_custom_call.1} parent=1 // loop_footer_branch
      %26 = sbr.rel target = $region3
    $region8: #{tpu_custom_call.1} parent=1 // loop_exit
      _
    %3029 = vsyncpa [#allocation4], 1
    %s3030 = scalar_lea.sflag [#allocation4], 1
    %3031 = vsyncpa %s3030, 1
    %3032 = vsyncpa [#allocation7], 1
    %s3033 = scalar_lea.sflag [#allocation7], 1
    %3034 = vsyncpa %s3033, 1
    %3035 = vsyncpa [#allocation10], 1
    %s3036 = scalar_lea.sflag [#allocation10], 1
    %3037 = vsyncpa %s3036, 1
    %3038 = vsyncpa [#allocation5], 1
    %s3039 = scalar_lea.sflag [#allocation5], 1
    %3040 = vsyncpa %s3039, 1

</llo_original>
